<compile_context>
chip_gen: v7x
topology: tpu7x:2x2x1
jax: 0.10.0
libtpu: 0.0.40
codegen_flags: <defaults>
</compile_context>

<pallas_src>
import jax
import jax.numpy as jnp
from jax.experimental import pallas as pl
from jax.experimental.pallas import tpu as pltpu


# ---------------------------------------------------------------------------
# Kernels
# ---------------------------------------------------------------------------
def _sage1_kernel(a_ref, xk_ref, xi_ref, wl1_ref, wr1_ref, b1_ref, wl2_ref,
                  h_ref, p_ref, acc_ref):
    """conv1 (mean-agg + two linears) + L2 normalize + ReLU; emits h @ wl2."""
    k = pl.program_id(1)

    @pl.when(k == 0)
    def _():
        acc_ref[...] = jnp.zeros_like(acc_ref)

    # Aggregation partial sum: A[i-tile, k-tile] @ X[k-tile]  (bf16 -> f32 acc)
    acc_ref[...] += jnp.dot(a_ref[...], xk_ref[...],
                            preferred_element_type=jnp.float32)

    @pl.when(k == pl.num_programs(1) - 1)
    def _():
        agg = acc_ref[...]
        xs = xi_ref[...].astype(jnp.float32)
        h = (jnp.dot(agg, wl1_ref[...], preferred_element_type=jnp.float32)
             + jnp.dot(xs, wr1_ref[...], preferred_element_type=jnp.float32)
             + b1_ref[...])
        # F.normalize(p=2, dim=-1, eps=1e-12): x / max(||x||, eps)
        ssq = jnp.sum(h * h, axis=-1, keepdims=True)
        h = h * jax.lax.rsqrt(jnp.maximum(ssq, jnp.float32(1e-24)))
        h = jnp.maximum(h, 0.0)                       # ReLU
        h_ref[...] = h
        # Project to classes now so layer 2's NxN matmul is only C wide.
        p_ref[...] = jnp.dot(h, wl2_ref[...],
                             preferred_element_type=jnp.float32
                             ).astype(p_ref.dtype)


def _sage2_kernel(a_ref, pk_ref, hi_ref, wr2_ref, b2_ref, out_ref, acc_ref):
    """conv2 (aggregate the pre-projected p) + self term + softmax."""
    k = pl.program_id(1)

    @pl.when(k == 0)
    def _():
        acc_ref[...] = jnp.zeros_like(acc_ref)

    acc_ref[...] += jnp.dot(a_ref[...], pk_ref[...],
                            preferred_element_type=jnp.float32)

    @pl.when(k == pl.num_programs(1) - 1)
    def _():
        z = (acc_ref[...]
             + jnp.dot(hi_ref[...], wr2_ref[...],
                       preferred_element_type=jnp.float32)
             + b2_ref[...])
        z = z - jnp.max(z, axis=-1, keepdims=True)
        e = jnp.exp(z)
        out_ref[...] = e * pl.reciprocal(
            jnp.sum(e, axis=-1, keepdims=True), approx=True)


# ---------------------------------------------------------------------------
# Wrapper
# ---------------------------------------------------------------------------
def build_mean_aggregation_matrix(edge_index, num_nodes):
    """Dense A with A[i, j] = 1/deg_in(i) for each edge j -> i (mean aggr).

    Depends only on the graph; build once and reuse across forward passes.
    """
    src, dst = edge_index[0], edge_index[1]
    adj = jnp.zeros((num_nodes, num_nodes), jnp.float32).at[dst, src].add(1.0)
    deg = adj.sum(axis=1, keepdims=True)
    return jnp.where(deg > 0, adj / jnp.maximum(deg, 1.0), 0.0)


def _choose_tile(n):
    for t in (512, 256, 128):
        if n >= t:
            return t
    return 128


def net_tpsgx_forward(x, edge_index, params):
    n, f = x.shape
    hid = params["wl1"].shape[1]
    c = params["wl2"].shape[1]

    # TODO(synk): for sparse graphs (E << N^2) replace the dense A with a
    # CSR gather driven by PrefetchScalarGridSpec instead of streaming N^2.
    a = build_mean_aggregation_matrix(edge_index, n)

    tile = _choose_tile(n)
    n_pad = pl.cdiv(n, tile) * tile
    grid = (n_pad // tile, n_pad // tile)

    # Pad to tile multiples (padded nodes have zero A rows/cols -> inert),
    # and stream the big operands in bf16.
    a_bf = jnp.pad(a, ((0, n_pad - n), (0, n_pad - n))).astype(jnp.bfloat16)
    x_bf = jnp.pad(x, ((0, n_pad - n), (0, 0))).astype(jnp.bfloat16)

    a_tile = lambda i, k: (i, k)
    row_tile = lambda i, k: (i, 0)      # output-row tile (constant over k)
    nbr_tile = lambda i, k: (k, 0)      # neighbor tile (reduction axis)
    resident = lambda i, k: (0, 0)      # tiny weights/bias stay resident

    cparams = pltpu.CompilerParams(
        dimension_semantics=("parallel", "arbitrary"))

    # ---- layer 1: conv1 + normalize + ReLU (also emits p = h @ wl2) -------
    h_pad, p_pad = pl.pallas_call(
        _sage1_kernel,
        out_shape=(jax.ShapeDtypeStruct((n_pad, hid), jnp.float32),
                   jax.ShapeDtypeStruct((n_pad, c), jnp.bfloat16)),
        grid_spec=pltpu.PrefetchScalarGridSpec(
            num_scalar_prefetch=0,
            grid=grid,
            in_specs=[
                pl.BlockSpec((tile, tile), a_tile),    # A
                pl.BlockSpec((tile, f), nbr_tile),     # X (neighbor rows)
                pl.BlockSpec((tile, f), row_tile),     # X (self rows)
                pl.BlockSpec((f, hid), resident),      # wl1
                pl.BlockSpec((f, hid), resident),      # wr1
                pl.BlockSpec((1, hid), resident),      # b1
                pl.BlockSpec((hid, c), resident),      # wl2
            ],
            out_specs=(
                pl.BlockSpec((tile, hid), row_tile),   # h
                pl.BlockSpec((tile, c), row_tile),     # p = h @ wl2
            ),
            scratch_shapes=[pltpu.VMEM((tile, f), jnp.float32)],
        ),
        compiler_params=cparams,
    )(a_bf, x_bf, x_bf,
      params["wl1"], params["wr1"], params["b1"], params["wl2"])

    # ---- layer 2: conv2 + softmax ------------------------------------------
    probs = pl.pallas_call(
        _sage2_kernel,
        out_shape=jax.ShapeDtypeStruct((n_pad, c), jnp.float32),
        grid_spec=pltpu.PrefetchScalarGridSpec(
            num_scalar_prefetch=0,
            grid=grid,
            in_specs=[
                pl.BlockSpec((tile, tile), a_tile),    # A
                pl.BlockSpec((tile, c), nbr_tile),     # p (neighbor rows)
                pl.BlockSpec((tile, hid), row_tile),   # h (self rows)
                pl.BlockSpec((hid, c), resident),      # wr2
                pl.BlockSpec((1, c), resident),        # b2
            ],
            out_specs=pl.BlockSpec((tile, c), row_tile),
            scratch_shapes=[pltpu.VMEM((tile, c), jnp.float32)],
        ),
        compiler_params=cparams,
    )(a_bf, p_pad, h_pad, params["wr2"], params["b2"])

    return probs[:n]


# ---------------------------------------------------------------------------
# Pure-JAX reference (f32) for a sanity check
# ---------------------------------------------------------------------------
def reference_forward(x, edge_index, params):
    n = x.shape[0]
    a = build_mean_aggregation_matrix(edge_index, n)
    h = a @ x @ params["wl1"] + x @ params["wr1"] + params["b1"]
    h = h / jnp.maximum(jnp.linalg.norm(h, axis=-1, keepdims=True), 1e-12)
    h = jnp.maximum(h, 0.0)
    z = a @ h @ params["wl2"] + h @ params["wr2"] + params["b2"]
    return jax.nn.softmax(z, axis=1)


def init_params(key, num_node_features, hidden, num_classes):
    ks = jax.random.split(key, 6)

    def lin(k, fan_in, fan_out):
        bound = 1.0 / jnp.sqrt(jnp.float32(fan_in))
        return jax.random.uniform(k, (fan_in, fan_out), jnp.float32,
                                  minval=-bound, maxval=bound)

    return {
        "wl1": lin(ks[0], num_node_features, hidden),
        "wr1": lin(ks[1], num_node_features, hidden),
        "b1":  jax.random.uniform(ks[2], (1, hidden), jnp.float32,
                                  minval=-0.1, maxval=0.1),
        "wl2": lin(ks[3], hidden, num_classes),
        "wr2": lin(ks[4], hidden, num_classes),
        "b2":  jax.random.uniform(ks[5], (1, num_classes), jnp.float32,
                                  minval=-0.1, maxval=0.1),
    }


if __name__ == "__main__":
    key = jax.random.PRNGKey(0)
    k_x, k_e, k_p = jax.random.split(key, 3)

    num_nodes = 192            # pads to 256 -> 2x2 grid of 128-tiles
    num_node_features = 8
    hidden = 16                # SAGEConv(num_node_features, 16)
    num_classes = 4
    num_edges = 512

    x = jax.random.normal(k_x, (num_nodes, num_node_features), jnp.float32)
    edge_index = jax.random.randint(k_e, (2, num_edges), 0, num_nodes,
                                    dtype=jnp.int32)
    params = init_params(k_p, num_node_features, hidden, num_classes)

    forward = jax.jit(net_tpsgx_forward)
    out = forward(x, edge_index, params)
    out = jax.block_until_ready(out)

    ref = reference_forward(x, edge_index, params)
    assert out.shape == (num_nodes, num_classes)
    # bf16 streaming of A / X / p (f32 accumulation) -> loosened tolerance.
    err = float(jnp.max(jnp.abs(out - ref)))
    assert err < 3e-2, f"max abs error {err}"

    print("KERNEL_OK")
</pallas_src>

<mosaic_0001>
module attributes {stable_mosaic.version = 11 : i64} {
  func.func private @main(%arg0: i32) attributes {dimension_semantics = [#tpu.dimension_semantics<core_parallel>], iteration_bounds = array<i64: 2>, tpu.core_type = #tpu.core_type<sc_scalar_subcore>, window_params = []} {
    return
  }
}

module attributes {stable_mosaic.version = 11 : i64} {
  func.func private @main(%arg0: i32) attributes {dimension_semantics = [#tpu.dimension_semantics<core_parallel>], iteration_bounds = array<i64: 2>, tpu.core_type = #tpu.core_type<sc_scalar_subcore>, window_params = []} {
    return
  }
}

module attributes {stable_mosaic.version = 11 : i64} {
  func.func @_sage2_kernel(%arg0: i32, %arg1: i32, %arg2: memref<128x128xbf16, #tpu.memory_space<vmem>>, %arg3: memref<128x4xbf16, #tpu.memory_space<vmem>>, %arg4: memref<128x16xf32, #tpu.memory_space<vmem>>, %arg5: memref<16x4xf32, #tpu.memory_space<vmem>>, %arg6: memref<1x4xf32, #tpu.memory_space<vmem>>, %arg7: memref<128x4xf32, #tpu.memory_space<vmem>>, %arg8: memref<128x4xf32, #tpu.memory_space<vmem>>) attributes {dimension_semantics = [#tpu.dimension_semantics<parallel>, #tpu.dimension_semantics<arbitrary>], iteration_bounds = array<i64: 2, 2>, scalar_prefetch = 0 : i64, scratch_operands = 1 : i64, tpu.core_type = #tpu.core_type<tc>, window_params = [{transform_indices = @transform_0, window_bounds = array<i64: 128, 128>}, {transform_indices = @transform_1, window_bounds = array<i64: 128, 4>}, {transform_indices = @transform_2, window_bounds = array<i64: 128, 16>}, {pipeline_mode = #tpu.pipeline_mode<synchronous>, transform_indices = @transform_3, window_bounds = array<i64: 16, 4>}, {pipeline_mode = #tpu.pipeline_mode<synchronous>, transform_indices = @transform_4, window_bounds = array<i64: 1, 4>}, {transform_indices = @transform_5, window_bounds = array<i64: 128, 4>}]} {
    %c0_i32 = arith.constant 0 : i32
    %0 = arith.cmpi eq, %arg1, %c0_i32 : i32
    %1 = arith.extui %0 : i1 to i32
    %c0_i32_0 = arith.constant 0 : i32
    %2 = arith.cmpi ne, %1, %c0_i32_0 : i32
    scf.if %2 {
      %cst_9 = arith.constant 0.000000e+00 : f32
      %12 = vector.broadcast %cst_9 : f32 to vector<128x4xf32>
      %c0_10 = arith.constant 0 : index
      %c0_11 = arith.constant 0 : index
      %13 = vector.load %arg8[%c0_10, %c0_11] : memref<128x4xf32, #tpu.memory_space<vmem>>, vector<128x4xf32>
      tpu.vector_store %arg8[%c0_10, %c0_11], %12 {strides = array<i32>} : memref<128x4xf32, #tpu.memory_space<vmem>>, vector<128x4xf32>,
    } else {
    }
    %c0 = arith.constant 0 : index
    %c0_1 = arith.constant 0 : index
    %3 = vector.load %arg8[%c0, %c0_1] : memref<128x4xf32, #tpu.memory_space<vmem>>, vector<128x4xf32>
    %c0_2 = arith.constant 0 : index
    %c0_3 = arith.constant 0 : index
    %4 = vector.load %arg2[%c0_2, %c0_3] : memref<128x128xbf16, #tpu.memory_space<vmem>>, vector<128x128xbf16>
    %c0_4 = arith.constant 0 : index
    %c0_5 = arith.constant 0 : index
    %5 = vector.load %arg3[%c0_4, %c0_5] : memref<128x4xbf16, #tpu.memory_space<vmem>>, vector<128x4xbf16>
    %cst = arith.constant dense<0.000000e+00> : vector<128x4xf32>
    %6 = tpu.matmul %4, %5, %cst {dimension_numbers = #tpu.dot_dimension_numbers<[1], [0], [0], [1], [0, 0, 1, 1], [], []>} : vector<128x128xbf16>, vector<128x4xbf16>, vector<128x4xf32> -> vector<128x4xf32>
    %7 = arith.addf %3, %6 : vector<128x4xf32>
    %c0_6 = arith.constant 0 : index
    %c0_7 = arith.constant 0 : index
    %8 = vector.load %arg8[%c0_6, %c0_7] : memref<128x4xf32, #tpu.memory_space<vmem>>, vector<128x4xf32>
    tpu.vector_store %arg8[%c0_6, %c0_7], %7 {strides = array<i32>} : memref<128x4xf32, #tpu.memory_space<vmem>>, vector<128x4xf32>,
    %c1_i32 = arith.constant 1 : i32
    %9 = arith.cmpi eq, %arg1, %c1_i32 : i32
    %10 = arith.extui %9 : i1 to i32
    %c0_i32_8 = arith.constant 0 : i32
    %11 = arith.cmpi ne, %10, %c0_i32_8 : i32
    scf.if %11 {
      %c0_9 = arith.constant 0 : index
      %c0_10 = arith.constant 0 : index
      %12 = vector.load %arg8[%c0_9, %c0_10] : memref<128x4xf32, #tpu.memory_space<vmem>>, vector<128x4xf32>
      %c0_11 = arith.constant 0 : index
      %c0_12 = arith.constant 0 : index
      %13 = vector.load %arg4[%c0_11, %c0_12] : memref<128x16xf32, #tpu.memory_space<vmem>>, vector<128x16xf32>
      %c0_13 = arith.constant 0 : index
      %c0_14 = arith.constant 0 : index
      %14 = vector.load %arg5[%c0_13, %c0_14] : memref<16x4xf32, #tpu.memory_space<vmem>>, vector<16x4xf32>
      %cst_15 = arith.constant dense<0.000000e+00> : vector<128x4xf32>
      %15 = tpu.matmul %13, %14, %cst_15 {dimension_numbers = #tpu.dot_dimension_numbers<[1], [0], [0], [1], [0, 0, 1, 1], [], []>} : vector<128x16xf32>, vector<16x4xf32>, vector<128x4xf32> -> vector<128x4xf32>
      %16 = arith.addf %12, %15 : vector<128x4xf32>
      %c0_16 = arith.constant 0 : index
      %c0_17 = arith.constant 0 : index
      %17 = vector.load %arg6[%c0_16, %c0_17] : memref<1x4xf32, #tpu.memory_space<vmem>>, vector<1x4xf32>
      %18 = vector.broadcast %17 : vector<1x4xf32> to vector<128x4xf32>
      %19 = arith.addf %16, %18 : vector<128x4xf32>
      %cst_18 = arith.constant dense<0xFF800000> : vector<128xf32>
      %20 = vector.multi_reduction <maximumf>, %19, %cst_18 [1] : vector<128x4xf32> to vector<128xf32>
      %21 = vector.shape_cast %20 : vector<128xf32> to vector<128x1xf32>
      %22 = vector.broadcast %21 : vector<128x1xf32> to vector<128x4xf32>
      %23 = arith.subf %19, %22 : vector<128x4xf32>
      %24 = math.exp %23 : vector<128x4xf32>
      %cst_19 = arith.constant dense<0.000000e+00> : vector<128xf32>
      %25 = vector.multi_reduction <add>, %24, %cst_19 [1] : vector<128x4xf32> to vector<128xf32>
      %26 = vector.shape_cast %25 : vector<128xf32> to vector<128x1xf32>
      %27 = tpu.reciprocal %26 {approx = true} : vector<128x1xf32> -> vector<128x1xf32>
      %28 = vector.broadcast %27 : vector<128x1xf32> to vector<128x4xf32>
      %29 = arith.mulf %24, %28 : vector<128x4xf32>
      %c0_20 = arith.constant 0 : index
      %c0_21 = arith.constant 0 : index
      %30 = vector.load %arg7[%c0_20, %c0_21] : memref<128x4xf32, #tpu.memory_space<vmem>>, vector<128x4xf32>
      tpu.vector_store %arg7[%c0_20, %c0_21], %29 {strides = array<i32>} : memref<128x4xf32, #tpu.memory_space<vmem>>, vector<128x4xf32>,
    } else {
    }
    return
  }
  func.func @transform_0(%arg0: i32, %arg1: i32) -> (i32, i32) {
    %c0_i32 = arith.constant 0 : i32
    return %arg0, %arg1 : i32, i32
  }
  func.func @transform_1(%arg0: i32, %arg1: i32) -> (i32, i32) {
    %c0_i32 = arith.constant 0 : i32
    %c0_i32_0 = arith.constant 0 : i32
    return %arg1, %c0_i32 : i32, i32
  }
  func.func @transform_2(%arg0: i32, %arg1: i32) -> (i32, i32) {
    %c0_i32 = arith.constant 0 : i32
    %c0_i32_0 = arith.constant 0 : i32
    return %arg0, %c0_i32 : i32, i32
  }
  func.func @transform_3(%arg0: i32, %arg1: i32) -> (i32, i32) {
    %c0_i32 = arith.constant 0 : i32
    %c0_i32_0 = arith.constant 0 : i32
    %c0_i32_1 = arith.constant 0 : i32
    return %c0_i32, %c0_i32_0 : i32, i32
  }
  func.func @transform_4(%arg0: i32, %arg1: i32) -> (i32, i32) {
    %c0_i32 = arith.constant 0 : i32
    %c0_i32_0 = arith.constant 0 : i32
    %c0_i32_1 = arith.constant 0 : i32
    return %c0_i32, %c0_i32_0 : i32, i32
  }
  func.func @transform_5(%arg0: i32, %arg1: i32) -> (i32, i32) {
    %c0_i32 = arith.constant 0 : i32
    %c0_i32_0 = arith.constant 0 : i32
    return %arg0, %c0_i32 : i32, i32
  }
}

module attributes {stable_mosaic.version = 11 : i64} {
  func.func @_sage1_kernel(%arg0: i32, %arg1: i32, %arg2: memref<128x128xbf16, #tpu.memory_space<vmem>>, %arg3: memref<128x8xbf16, #tpu.memory_space<vmem>>, %arg4: memref<128x8xbf16, #tpu.memory_space<vmem>>, %arg5: memref<8x16xf32, #tpu.memory_space<vmem>>, %arg6: memref<8x16xf32, #tpu.memory_space<vmem>>, %arg7: memref<1x16xf32, #tpu.memory_space<vmem>>, %arg8: memref<16x4xf32, #tpu.memory_space<vmem>>, %arg9: memref<128x16xf32, #tpu.memory_space<vmem>>, %arg10: memref<128x4xbf16, #tpu.memory_space<vmem>>, %arg11: memref<128x8xf32, #tpu.memory_space<vmem>>) attributes {dimension_semantics = [#tpu.dimension_semantics<parallel>, #tpu.dimension_semantics<arbitrary>], iteration_bounds = array<i64: 2, 2>, scalar_prefetch = 0 : i64, scratch_operands = 1 : i64, tpu.core_type = #tpu.core_type<tc>, window_params = [{transform_indices = @transform_0, window_bounds = array<i64: 128, 128>}, {transform_indices = @transform_1, window_bounds = array<i64: 128, 8>}, {transform_indices = @transform_2, window_bounds = array<i64: 128, 8>}, {pipeline_mode = #tpu.pipeline_mode<synchronous>, transform_indices = @transform_3, window_bounds = array<i64: 8, 16>}, {pipeline_mode = #tpu.pipeline_mode<synchronous>, transform_indices = @transform_4, window_bounds = array<i64: 8, 16>}, {pipeline_mode = #tpu.pipeline_mode<synchronous>, transform_indices = @transform_5, window_bounds = array<i64: 1, 16>}, {pipeline_mode = #tpu.pipeline_mode<synchronous>, transform_indices = @transform_6, window_bounds = array<i64: 16, 4>}, {transform_indices = @transform_7, window_bounds = array<i64: 128, 16>}, {transform_indices = @transform_8, window_bounds = array<i64: 128, 4>}]} {
    %c0_i32 = arith.constant 0 : i32
    %0 = arith.cmpi eq, %arg1, %c0_i32 : i32
    %1 = arith.extui %0 : i1 to i32
    %c0_i32_0 = arith.constant 0 : i32
    %2 = arith.cmpi ne, %1, %c0_i32_0 : i32
    scf.if %2 {
      %cst_9 = arith.constant 0.000000e+00 : f32
      %12 = vector.broadcast %cst_9 : f32 to vector<128x8xf32>
      %c0_10 = arith.constant 0 : index
      %c0_11 = arith.constant 0 : index
      %13 = vector.load %arg11[%c0_10, %c0_11] : memref<128x8xf32, #tpu.memory_space<vmem>>, vector<128x8xf32>
      tpu.vector_store %arg11[%c0_10, %c0_11], %12 {strides = array<i32>} : memref<128x8xf32, #tpu.memory_space<vmem>>, vector<128x8xf32>,
    } else {
    }
    %c0 = arith.constant 0 : index
    %c0_1 = arith.constant 0 : index
    %3 = vector.load %arg11[%c0, %c0_1] : memref<128x8xf32, #tpu.memory_space<vmem>>, vector<128x8xf32>
    %c0_2 = arith.constant 0 : index
    %c0_3 = arith.constant 0 : index
    %4 = vector.load %arg2[%c0_2, %c0_3] : memref<128x128xbf16, #tpu.memory_space<vmem>>, vector<128x128xbf16>
    %c0_4 = arith.constant 0 : index
    %c0_5 = arith.constant 0 : index
    %5 = vector.load %arg3[%c0_4, %c0_5] : memref<128x8xbf16, #tpu.memory_space<vmem>>, vector<128x8xbf16>
    %cst = arith.constant dense<0.000000e+00> : vector<128x8xf32>
    %6 = tpu.matmul %4, %5, %cst {dimension_numbers = #tpu.dot_dimension_numbers<[1], [0], [0], [1], [0, 0, 1, 1], [], []>} : vector<128x128xbf16>, vector<128x8xbf16>, vector<128x8xf32> -> vector<128x8xf32>
    %7 = arith.addf %3, %6 : vector<128x8xf32>
    %c0_6 = arith.constant 0 : index
    %c0_7 = arith.constant 0 : index
    %8 = vector.load %arg11[%c0_6, %c0_7] : memref<128x8xf32, #tpu.memory_space<vmem>>, vector<128x8xf32>
    tpu.vector_store %arg11[%c0_6, %c0_7], %7 {strides = array<i32>} : memref<128x8xf32, #tpu.memory_space<vmem>>, vector<128x8xf32>,
    %c1_i32 = arith.constant 1 : i32
    %9 = arith.cmpi eq, %arg1, %c1_i32 : i32
    %10 = arith.extui %9 : i1 to i32
    %c0_i32_8 = arith.constant 0 : i32
    %11 = arith.cmpi ne, %10, %c0_i32_8 : i32
    scf.if %11 {
      %c0_9 = arith.constant 0 : index
      %c0_10 = arith.constant 0 : index
      %12 = vector.load %arg11[%c0_9, %c0_10] : memref<128x8xf32, #tpu.memory_space<vmem>>, vector<128x8xf32>
      %c0_11 = arith.constant 0 : index
      %c0_12 = arith.constant 0 : index
      %13 = vector.load %arg4[%c0_11, %c0_12] : memref<128x8xbf16, #tpu.memory_space<vmem>>, vector<128x8xbf16>
      %14 = arith.extf %13 : vector<128x8xbf16> to vector<128x8xf32>
      %c0_13 = arith.constant 0 : index
      %c0_14 = arith.constant 0 : index
      %15 = vector.load %arg5[%c0_13, %c0_14] : memref<8x16xf32, #tpu.memory_space<vmem>>, vector<8x16xf32>
      %cst_15 = arith.constant dense<0.000000e+00> : vector<128x16xf32>
      %16 = tpu.matmul %12, %15, %cst_15 {dimension_numbers = #tpu.dot_dimension_numbers<[1], [0], [0], [1], [0, 0, 1, 1], [], []>} : vector<128x8xf32>, vector<8x16xf32>, vector<128x16xf32> -> vector<128x16xf32>
      %c0_16 = arith.constant 0 : index
      %c0_17 = arith.constant 0 : index
      %17 = vector.load %arg6[%c0_16, %c0_17] : memref<8x16xf32, #tpu.memory_space<vmem>>, vector<8x16xf32>
      %cst_18 = arith.constant dense<0.000000e+00> : vector<128x16xf32>
      %18 = tpu.matmul %14, %17, %cst_18 {dimension_numbers = #tpu.dot_dimension_numbers<[1], [0], [0], [1], [0, 0, 1, 1], [], []>} : vector<128x8xf32>, vector<8x16xf32>, vector<128x16xf32> -> vector<128x16xf32>
      %19 = arith.addf %16, %18 : vector<128x16xf32>
      %c0_19 = arith.constant 0 : index
      %c0_20 = arith.constant 0 : index
      %20 = vector.load %arg7[%c0_19, %c0_20] : memref<1x16xf32, #tpu.memory_space<vmem>>, vector<1x16xf32>
      %21 = vector.broadcast %20 : vector<1x16xf32> to vector<128x16xf32>
      %22 = arith.addf %19, %21 : vector<128x16xf32>
      %23 = arith.mulf %22, %22 : vector<128x16xf32>
      %cst_21 = arith.constant dense<0.000000e+00> : vector<128xf32>
      %24 = vector.multi_reduction <add>, %23, %cst_21 [1] : vector<128x16xf32> to vector<128xf32>
      %25 = vector.shape_cast %24 : vector<128xf32> to vector<128x1xf32>
      %cst_22 = arith.constant 1.000000e-24 : f32
      %26 = vector.broadcast %cst_22 : f32 to vector<128x1xf32>
      %27 = arith.maximumf %25, %26 : vector<128x1xf32>
      %28 = math.rsqrt %27 : vector<128x1xf32>
      %29 = vector.broadcast %28 : vector<128x1xf32> to vector<128x16xf32>
      %30 = arith.mulf %22, %29 : vector<128x16xf32>
      %cst_23 = arith.constant 0.000000e+00 : f32
      %31 = vector.broadcast %cst_23 : f32 to vector<128x16xf32>
      %32 = arith.maximumf %30, %31 : vector<128x16xf32>
      %c0_24 = arith.constant 0 : index
      %c0_25 = arith.constant 0 : index
      %33 = vector.load %arg9[%c0_24, %c0_25] : memref<128x16xf32, #tpu.memory_space<vmem>>, vector<128x16xf32>
      tpu.vector_store %arg9[%c0_24, %c0_25], %32 {strides = array<i32>} : memref<128x16xf32, #tpu.memory_space<vmem>>, vector<128x16xf32>,
      %c0_26 = arith.constant 0 : index
      %c0_27 = arith.constant 0 : index
      %34 = vector.load %arg8[%c0_26, %c0_27] : memref<16x4xf32, #tpu.memory_space<vmem>>, vector<16x4xf32>
      %cst_28 = arith.constant dense<0.000000e+00> : vector<128x4xf32>
      %35 = tpu.matmul %32, %34, %cst_28 {dimension_numbers = #tpu.dot_dimension_numbers<[1], [0], [0], [1], [0, 0, 1, 1], [], []>} : vector<128x16xf32>, vector<16x4xf32>, vector<128x4xf32> -> vector<128x4xf32>
      %36 = arith.truncf %35 : vector<128x4xf32> to vector<128x4xbf16>
      %c0_29 = arith.constant 0 : index
      %c0_30 = arith.constant 0 : index
      %37 = vector.load %arg10[%c0_29, %c0_30] : memref<128x4xbf16, #tpu.memory_space<vmem>>, vector<128x4xbf16>
      tpu.vector_store %arg10[%c0_29, %c0_30], %36 {strides = array<i32>} : memref<128x4xbf16, #tpu.memory_space<vmem>>, vector<128x4xbf16>,
    } else {
    }
    return
  }
  func.func @transform_0(%arg0: i32, %arg1: i32) -> (i32, i32) {
    %c0_i32 = arith.constant 0 : i32
    return %arg0, %arg1 : i32, i32
  }
  func.func @transform_1(%arg0: i32, %arg1: i32) -> (i32, i32) {
    %c0_i32 = arith.constant 0 : i32
    %c0_i32_0 = arith.constant 0 : i32
    return %arg1, %c0_i32 : i32, i32
  }
  func.func @transform_2(%arg0: i32, %arg1: i32) -> (i32, i32) {
    %c0_i32 = arith.constant 0 : i32
    %c0_i32_0 = arith.constant 0 : i32
    return %arg0, %c0_i32 : i32, i32
  }
  func.func @transform_3(%arg0: i32, %arg1: i32) -> (i32, i32) {
    %c0_i32 = arith.constant 0 : i32
    %c0_i32_0 = arith.constant 0 : i32
    %c0_i32_1 = arith.constant 0 : i32
    return %c0_i32, %c0_i32_0 : i32, i32
  }
  func.func @transform_4(%arg0: i32, %arg1: i32) -> (i32, i32) {
    %c0_i32 = arith.constant 0 : i32
    %c0_i32_0 = arith.constant 0 : i32
    %c0_i32_1 = arith.constant 0 : i32
    return %c0_i32, %c0_i32_0 : i32, i32
  }
  func.func @transform_5(%arg0: i32, %arg1: i32) -> (i32, i32) {
    %c0_i32 = arith.constant 0 : i32
    %c0_i32_0 = arith.constant 0 : i32
    %c0_i32_1 = arith.constant 0 : i32
    return %c0_i32, %c0_i32_0 : i32, i32
  }
  func.func @transform_6(%arg0: i32, %arg1: i32) -> (i32, i32) {
    %c0_i32 = arith.constant 0 : i32
    %c0_i32_0 = arith.constant 0 : i32
    %c0_i32_1 = arith.constant 0 : i32
    return %c0_i32, %c0_i32_0 : i32, i32
  }
  func.func @transform_7(%arg0: i32, %arg1: i32) -> (i32, i32) {
    %c0_i32 = arith.constant 0 : i32
    %c0_i32_0 = arith.constant 0 : i32
    return %arg0, %c0_i32 : i32, i32
  }
  func.func @transform_8(%arg0: i32, %arg1: i32) -> (i32, i32) {
    %c0_i32 = arith.constant 0 : i32
    %c0_i32_0 = arith.constant 0 : i32
    return %arg0, %c0_i32 : i32, i32
  }
}

</mosaic_0001>

<llo_original>
// kernel: net_tpsgx_forward.3
$region0: #{net_tpsgx_forward.3}
  #allocation0 [shape = 'u32[]', space=smem, size = 0x4, offset = 0x4, fixed_abs, tag = 'smem constant byte address 0x4 - core index']
  #allocation1 [shape = 'u32[144,128]{1,0:T(1,128)}', space=vmem, size = 0x12000, scoped, tag = 'internal scratch']
  #allocation2 [shape = 'f32[128,4]{1,0:T(8,128)}', space=vmem, size = 0x10000, scoped, tag = 'scratch operand']
  %s0 = inlined_call_operand.vmem [shape: bf16[256,256], index: 0, kind: input, shape index: {}]
  %s1 = inlined_call_operand.vmem [shape: bf16[256,4], index: 1, kind: input, shape index: {}]
  %s2 = inlined_call_operand.vmem [shape: f32[256,16], index: 2, kind: input, shape index: {}]
  %s3 = inlined_call_operand.vmem [shape: f32[16,4], index: 3, kind: input, shape index: {}]
  %s4 = inlined_call_operand.vmem [shape: f32[1,4], index: 4, kind: input, shape index: {}]
  %s5 = inlined_call_operand.vmem [shape: f32[256,4], index: 5, kind: output, shape index: {}]
  %s6 = sld [smem:[#allocation0]]
  $region102: #{net_tpsgx_forward.3} parent=0
    _
  %s8 = ssub.s32 1, %s6
  %s9 = scalar_select 0, %s8, %s6
  $region1: #{net_tpsgx_forward.3} parent=0
    #allocation3 [shape = 'u8[65536]{0}', space=vmem, size = 0x10000, scoped, tag = 'input window, operand 0']
    loop: start=0, step=1, limit=6
    $region2: #{net_tpsgx_forward.3} parent=1 // loop_pre_header
      _
    $region3: #{net_tpsgx_forward.3} parent=1 // loop_header
      %s11 = sphi 0, %s15
      %p12 = scmp.ge.s32.totalorder %s11, 6
      %s18 = sphi 0, %s30
      %s19 = sphi 0, %s26
      %s20 = sphi 0, %s18
      %s21 = sphi 0, %s19
      %s22 = sphi 0, %s20
      %s23 = sphi 0, %s21
      %s35 = sphi 0, %s37
      %s38 = sphi 0, %s35
      %s39 = sphi 0, %s38
      %s55 = sphi 0, %s39
      %s61 = sphi 0, %s63
      %s64 = sphi 0, %s61
      %s65 = sphi 0, %s64
      %s81 = sphi 0, %s65
      %s87 = sphi 0, %s89
      %s90 = sphi 0, %s87
      %s91 = sphi 0, %s90
      %s107 = sphi 0, %s91
      %s111 = sphi 0, %s111
      %s113 = sphi 0, %s111
      %s114 = sphi 0, %s113
      %s128 = sphi 0, %s114
      %s132 = sphi 0, %s132
      %s134 = sphi 0, %s132
      %s135 = sphi 0, %s134
      %s149 = sphi 0, %s135
      %s155 = sphi 0, %s157
      %s158 = sphi 0, %s155
      %s159 = sphi 0, %s158
      %s175 = sphi 0, %s159
    $region4: #{net_tpsgx_forward.3} parent=1 // loop_header_branch
      %14 = sbr.rel (%p12) target = $region8
    $region5: #{net_tpsgx_forward.3} parent=1 // loop_body
      %s16 = ssub.s32 %s11, 1
      %s17 = ssub.s32 %s11, 2
      %s24 = sadd.s32 1, %s19
      %p25 = scmp.ge.s32.totalorder %s24, 2
      %s26 = scalar_select %p25, 0, %s24
      %s27 = sadd.s32 1, %s18
      %s28 = scalar_select %p25, %s27, %s18
      %p29 = scmp.ge.s32.totalorder %s28, 2
      %s30 = scalar_select %p29, 0, %s28
      %s31 = ssub.s32 %s18, %s30
      %s32 = ssub.s32 %s19, %s26
      %s33 = sor.u32 %s31, %s32
      %p34 = scmp.eq.s32.totalorder %s33, 0
      %s36 = sadd.s32 %s35, 1
      %s37 = scalar_select %p34, %s35, %s36
      %p40 = pneg %p34
      %p41 = scmp.eq.s32.totalorder %s11, 3
      %p42 = por %p40, %p41
      %p43 = scmp.ne.s32.totalorder %s35, %s38
      %p44 = scmp.eq.s32.totalorder %s11, 0
      %p45 = por %p43, %p44
      %p46 = scmp.ne.s32.totalorder %s35, %s38
      %p47 = scmp.eq.s32.totalorder %s16, 3
      %p48 = por %p46, %p47
      %p49 = scmp.ne.s32.totalorder %s38, %s39
      %p50 = scmp.eq.s32.totalorder %s16, 0
      %p51 = por %p49, %p50
      %p52 = scmp.ne.s32.totalorder %s38, %s39
      %p53 = scmp.eq.s32.totalorder %s17, 3
      %p54 = por %p52, %p53
      %p56 = scmp.ne.s32.totalorder %s39, %s55
      %p57 = scmp.eq.s32.totalorder %s17, 0
      %p58 = por %p56, %p57
      %s59 = ssub.s32 %s19, %s26
      %p60 = scmp.eq.s32.totalorder %s59, 0
      %s62 = sadd.s32 %s61, 1
      %s63 = scalar_select %p60, %s61, %s62
      %p66 = pneg %p60
      %p67 = scmp.eq.s32.totalorder %s11, 3
      %p68 = por %p66, %p67
      %p69 = scmp.ne.s32.totalorder %s61, %s64
      %p70 = scmp.eq.s32.totalorder %s11, 0
      %p71 = por %p69, %p70
      %p72 = scmp.ne.s32.totalorder %s61, %s64
      %p73 = scmp.eq.s32.totalorder %s16, 3
      %p74 = por %p72, %p73
      %p75 = scmp.ne.s32.totalorder %s64, %s65
      %p76 = scmp.eq.s32.totalorder %s16, 0
      %p77 = por %p75, %p76
      %p78 = scmp.ne.s32.totalorder %s64, %s65
      %p79 = scmp.eq.s32.totalorder %s17, 3
      %p80 = por %p78, %p79
      %p82 = scmp.ne.s32.totalorder %s65, %s81
      %p83 = scmp.eq.s32.totalorder %s17, 0
      %p84 = por %p82, %p83
      %s85 = ssub.s32 %s18, %s30
      %p86 = scmp.eq.s32.totalorder %s85, 0
      %s88 = sadd.s32 %s87, 1
      %s89 = scalar_select %p86, %s87, %s88
      %p92 = pneg %p86
      %p93 = scmp.eq.s32.totalorder %s11, 3
      %p94 = por %p92, %p93
      %p95 = scmp.ne.s32.totalorder %s87, %s90
      %p96 = scmp.eq.s32.totalorder %s11, 0
      %p97 = por %p95, %p96
      %p98 = scmp.ne.s32.totalorder %s87, %s90
      %p99 = scmp.eq.s32.totalorder %s16, 3
      %p100 = por %p98, %p99
      %p101 = scmp.ne.s32.totalorder %s90, %s91
      %p102 = scmp.eq.s32.totalorder %s16, 0
      %p103 = por %p101, %p102
      %p104 = scmp.ne.s32.totalorder %s90, %s91
      %p105 = scmp.eq.s32.totalorder %s17, 3
      %p106 = por %p104, %p105
      %p108 = scmp.ne.s32.totalorder %s91, %s107
      %p109 = scmp.eq.s32.totalorder %s17, 0
      %p110 = por %p108, %p109
      %s112 = sadd.s32 %s111, 1
      %p115 = scmp.eq.s32.totalorder %s11, 3
      %p116 = scmp.ne.s32.totalorder %s111, %s113
      %p117 = scmp.eq.s32.totalorder %s11, 0
      %p118 = por %p116, %p117
      %p119 = scmp.ne.s32.totalorder %s111, %s113
      %p120 = scmp.eq.s32.totalorder %s16, 3
      %p121 = por %p119, %p120
      %p122 = scmp.ne.s32.totalorder %s113, %s114
      %p123 = scmp.eq.s32.totalorder %s16, 0
      %p124 = por %p122, %p123
      %p125 = scmp.ne.s32.totalorder %s113, %s114
      %p126 = scmp.eq.s32.totalorder %s17, 3
      %p127 = por %p125, %p126
      %p129 = scmp.ne.s32.totalorder %s114, %s128
      %p130 = scmp.eq.s32.totalorder %s17, 0
      %p131 = por %p129, %p130
      %s133 = sadd.s32 %s132, 1
      %p136 = scmp.eq.s32.totalorder %s11, 3
      %p137 = scmp.ne.s32.totalorder %s132, %s134
      %p138 = scmp.eq.s32.totalorder %s11, 0
      %p139 = por %p137, %p138
      %p140 = scmp.ne.s32.totalorder %s132, %s134
      %p141 = scmp.eq.s32.totalorder %s16, 3
      %p142 = por %p140, %p141
      %p143 = scmp.ne.s32.totalorder %s134, %s135
      %p144 = scmp.eq.s32.totalorder %s16, 0
      %p145 = por %p143, %p144
      %p146 = scmp.ne.s32.totalorder %s134, %s135
      %p147 = scmp.eq.s32.totalorder %s17, 3
      %p148 = por %p146, %p147
      %p150 = scmp.ne.s32.totalorder %s135, %s149
      %p151 = scmp.eq.s32.totalorder %s17, 0
      %p152 = por %p150, %p151
      %s153 = ssub.s32 %s18, %s30
      %p154 = scmp.eq.s32.totalorder %s153, 0
      %s156 = sadd.s32 %s155, 1
      %s157 = scalar_select %p154, %s155, %s156
      %p160 = pneg %p154
      %p161 = scmp.eq.s32.totalorder %s11, 3
      %p162 = por %p160, %p161
      %p163 = scmp.ne.s32.totalorder %s155, %s158
      %p164 = scmp.eq.s32.totalorder %s11, 0
      %p165 = por %p163, %p164
      %p166 = scmp.ne.s32.totalorder %s155, %s158
      %p167 = scmp.eq.s32.totalorder %s16, 3
      %p168 = por %p166, %p167
      %p169 = scmp.ne.s32.totalorder %s158, %s159
      %p170 = scmp.eq.s32.totalorder %s16, 0
      %p171 = por %p169, %p170
      %p172 = scmp.ne.s32.totalorder %s158, %s159
      %p173 = scmp.eq.s32.totalorder %s17, 3
      %p174 = por %p172, %p173
      %p176 = scmp.ne.s32.totalorder %s159, %s175
      %p177 = scmp.eq.s32.totalorder %s17, 0
      %p178 = por %p176, %p177
      %p179 = scmp.le.s32.totalorder 1, %s11
      %p180 = scmp.lt.s32.totalorder %s11, 5
      %p181 = pnand %p179, %p180
      %p182 = pneg %p181
      // Predicated region
      $region9: #{net_tpsgx_forward.3} parent=5 // pred_check
        _
      $region10: #{net_tpsgx_forward.3} parent=5 // pred_check_branch
        %184 = sbr.rel (%p181) target = $region12
      $region11: #{net_tpsgx_forward.3} parent=5 // pred_region
        %s185 = ssub.s32 %s11, 1
        // Predicated region
        $region13: #{net_tpsgx_forward.3} parent=11 // pred_check
          %p186 = pneg %p124
        $region14: #{net_tpsgx_forward.3} parent=11 // pred_check_branch
          %188 = sbr.rel (%p186) target = $region16
        $region15: #{net_tpsgx_forward.3} parent=11 // pred_region
          _
        $region16: #{net_tpsgx_forward.3} parent=11 // pred_fallthru
          _
        // Predicated region
        $region17: #{net_tpsgx_forward.3} parent=11 // pred_check
          %p189 = pneg %p145
        $region18: #{net_tpsgx_forward.3} parent=11 // pred_check_branch
          %191 = sbr.rel (%p189) target = $region20
        $region19: #{net_tpsgx_forward.3} parent=11 // pred_region
          _
        $region20: #{net_tpsgx_forward.3} parent=11 // pred_fallthru
          _
      $region12: #{net_tpsgx_forward.3} parent=5 // pred_fallthru
        _
      %p192 = scmp.lt.s32.totalorder %s11, 4
      // Predicated region
      $region21: #{net_tpsgx_forward.3} parent=5 // pred_check
        %p193 = pneg %p192
      $region22: #{net_tpsgx_forward.3} parent=5 // pred_check_branch
        %195 = sbr.rel (%p193) target = $region24
      $region23: #{net_tpsgx_forward.3} parent=5 // pred_region
        // Predicated region
        $region25: #{net_tpsgx_forward.3} parent=23 // pred_check
          %p196 = pneg %p45
        $region26: #{net_tpsgx_forward.3} parent=23 // pred_check_branch
          %198 = sbr.rel (%p196) target = $region28
        $region27: #{net_tpsgx_forward.3} parent=23 // pred_region
          %s199 = sand.u32 %s35, 1
          %s200 = sand.u32 %s35, 1
          %s201 = smul.addr %s200, 64
          %s202 = scalar_lea.vmem [#allocation3], %s201
          %s203 = smul.u32 16, %s18
          %s204 = smul.addr %s203, 2
          %s205 = sadd.s32 %s19, %s204
          %s206 = smul.addr %s205, 4
          %s207 = scalar_lea.vmem %s0, %s206
          // Predicated region
          $region29: #{net_tpsgx_forward.3} parent=27 // pred_check
            _
          $region30: #{net_tpsgx_forward.3} parent=27 // pred_check_branch
            %209 = sbr.rel (0) target = $region32
          $region31: #{net_tpsgx_forward.3} parent=27 // pred_region
            // Predicated region
            $region33: #{net_tpsgx_forward.3} parent=31 // pred_check
              _
            $region34: #{net_tpsgx_forward.3} parent=31 // pred_check_branch
              %211 = sbr.rel target = $region36
            $region35: #{net_tpsgx_forward.3} parent=31 // pred_region
              // Predicated region
              $region48: #{net_tpsgx_forward.3} parent=35 // pred_check
                _
              $region49: #{net_tpsgx_forward.3} parent=35 // pred_check_branch
                %256 = sbr.rel (0) target = $region51
              $region50: #{net_tpsgx_forward.3} parent=35 // pred_region
                loop: start=0, step=1, limit=1
                $region52: #{net_tpsgx_forward.3} parent=50 // loop_pre_header
                  _
                $region53: #{net_tpsgx_forward.3} parent=50 // loop_header
                  %s258 = sphi 0, %s262
                  %p259 = scmp.ge.s32.totalorder %s258, 1
                  %s263 = sphi %s207, %s207
                  %s264 = sphi %s202, %s202
                $region54: #{net_tpsgx_forward.3} parent=50 // loop_header_branch
                  %261 = sbr.rel (%p259) target = $region58
                $region55: #{net_tpsgx_forward.3} parent=50 // loop_body
                  _
                $region56: #{net_tpsgx_forward.3} parent=50 // loop_footer
                  %s262 = sadd.s32 1, %s258
                $region57: #{net_tpsgx_forward.3} parent=50 // loop_footer_branch
                  %257 = sbr.rel target = $region53
                $region58: #{net_tpsgx_forward.3} parent=50 // loop_exit
                  _
                loop: start=0, step=1, limit=1
                $region59: #{net_tpsgx_forward.3} parent=50 // loop_pre_header
                  _
                $region60: #{net_tpsgx_forward.3} parent=50 // loop_header
                  %s267 = sphi 0, %s271
                  %p268 = scmp.ge.s32.totalorder %s267, 1
                  %s272 = sphi %s207, %s207
                  %s273 = sphi %s202, %s202
                $region61: #{net_tpsgx_forward.3} parent=50 // loop_header_branch
                  %270 = sbr.rel (%p268) target = $region65
                $region62: #{net_tpsgx_forward.3} parent=50 // loop_body
                  %v274 = vld [vmem:[%s272] sm:$0xf]
                  %275 = vst [vmem:[%s273] sm:$0xf] %v274
                  %v276 = vld [vmem:[%s272 + $0x8] sm:$0xf]
                  %277 = vst [vmem:[%s273 + $0x4] sm:$0xf] %v276
                  %v278 = vld [vmem:[%s272 + $0x10] sm:$0xf]
                  %279 = vst [vmem:[%s273 + $0x8] sm:$0xf] %v278
                  %v280 = vld [vmem:[%s272 + $0x18] sm:$0xf]
                  %281 = vst [vmem:[%s273 + $0xc] sm:$0xf] %v280
                  %v282 = vld [vmem:[%s272 + $0x20] sm:$0xf]
                  %283 = vst [vmem:[%s273 + $0x10] sm:$0xf] %v282
                  %v284 = vld [vmem:[%s272 + $0x28] sm:$0xf]
                  %285 = vst [vmem:[%s273 + $0x14] sm:$0xf] %v284
                  %v286 = vld [vmem:[%s272 + $0x30] sm:$0xf]
                  %287 = vst [vmem:[%s273 + $0x18] sm:$0xf] %v286
                  %v288 = vld [vmem:[%s272 + $0x38] sm:$0xf]
                  %289 = vst [vmem:[%s273 + $0x1c] sm:$0xf] %v288
                  %v290 = vld [vmem:[%s272 + $0x40] sm:$0xf]
                  %291 = vst [vmem:[%s273 + $0x20] sm:$0xf] %v290
                  %v292 = vld [vmem:[%s272 + $0x48] sm:$0xf]
                  %293 = vst [vmem:[%s273 + $0x24] sm:$0xf] %v292
                  %v294 = vld [vmem:[%s272 + $0x50] sm:$0xf]
                  %295 = vst [vmem:[%s273 + $0x28] sm:$0xf] %v294
                  %v296 = vld [vmem:[%s272 + $0x58] sm:$0xf]
                  %297 = vst [vmem:[%s273 + $0x2c] sm:$0xf] %v296
                  %v298 = vld [vmem:[%s272 + $0x60] sm:$0xf]
                  %299 = vst [vmem:[%s273 + $0x30] sm:$0xf] %v298
                  %v300 = vld [vmem:[%s272 + $0x68] sm:$0xf]
                  %301 = vst [vmem:[%s273 + $0x34] sm:$0xf] %v300
                  %v302 = vld [vmem:[%s272 + $0x70] sm:$0xf]
                  %303 = vst [vmem:[%s273 + $0x38] sm:$0xf] %v302
                  %v304 = vld [vmem:[%s272 + $0x78] sm:$0xf]
                  %305 = vst [vmem:[%s273 + $0x3c] sm:$0xf] %v304
                $region63: #{net_tpsgx_forward.3} parent=50 // loop_footer
                  %s271 = sadd.s32 1, %s267
                $region64: #{net_tpsgx_forward.3} parent=50 // loop_footer_branch
                  %266 = sbr.rel target = $region60
                $region65: #{net_tpsgx_forward.3} parent=50 // loop_exit
                  _
              $region51: #{net_tpsgx_forward.3} parent=35 // pred_fallthru
                _
            $region36: #{net_tpsgx_forward.3} parent=31 // pred_fallthru
              _
            // Predicated region
            $region37: #{net_tpsgx_forward.3} parent=31 // pred_check
              _
            $region38: #{net_tpsgx_forward.3} parent=31 // pred_check_branch
              %213 = sbr.rel (0) target = $region40
            $region39: #{net_tpsgx_forward.3} parent=31 // pred_region
              loop: start=0, step=1, limit=1
              $region41: #{net_tpsgx_forward.3} parent=39 // loop_pre_header
                _
              $region42: #{net_tpsgx_forward.3} parent=39 // loop_header
                %s216 = sphi 0, %s220
                %p217 = scmp.ge.s32.totalorder %s216, 1
                %s221 = sphi %s207, %s207
                %s222 = sphi %s202, %s202
              $region43: #{net_tpsgx_forward.3} parent=39 // loop_header_branch
                %219 = sbr.rel (%p217) target = $region47
              $region44: #{net_tpsgx_forward.3} parent=39 // loop_body
                %v223 = vld [vmem:[%s221] sm:$0xf]
                %224 = vst [vmem:[%s222] sm:$0xf] %v223
                %v225 = vld [vmem:[%s221 + $0x8] sm:$0xf]
                %226 = vst [vmem:[%s222 + $0x4] sm:$0xf] %v225
                %v227 = vld [vmem:[%s221 + $0x10] sm:$0xf]
                %228 = vst [vmem:[%s222 + $0x8] sm:$0xf] %v227
                %v229 = vld [vmem:[%s221 + $0x18] sm:$0xf]
                %230 = vst [vmem:[%s222 + $0xc] sm:$0xf] %v229
                %v231 = vld [vmem:[%s221 + $0x20] sm:$0xf]
                %232 = vst [vmem:[%s222 + $0x10] sm:$0xf] %v231
                %v233 = vld [vmem:[%s221 + $0x28] sm:$0xf]
                %234 = vst [vmem:[%s222 + $0x14] sm:$0xf] %v233
                %v235 = vld [vmem:[%s221 + $0x30] sm:$0xf]
                %236 = vst [vmem:[%s222 + $0x18] sm:$0xf] %v235
                %v237 = vld [vmem:[%s221 + $0x38] sm:$0xf]
                %238 = vst [vmem:[%s222 + $0x1c] sm:$0xf] %v237
                %v239 = vld [vmem:[%s221 + $0x40] sm:$0xf]
                %240 = vst [vmem:[%s222 + $0x20] sm:$0xf] %v239
                %v241 = vld [vmem:[%s221 + $0x48] sm:$0xf]
                %242 = vst [vmem:[%s222 + $0x24] sm:$0xf] %v241
                %v243 = vld [vmem:[%s221 + $0x50] sm:$0xf]
                %244 = vst [vmem:[%s222 + $0x28] sm:$0xf] %v243
                %v245 = vld [vmem:[%s221 + $0x58] sm:$0xf]
                %246 = vst [vmem:[%s222 + $0x2c] sm:$0xf] %v245
                %v247 = vld [vmem:[%s221 + $0x60] sm:$0xf]
                %248 = vst [vmem:[%s222 + $0x30] sm:$0xf] %v247
                %v249 = vld [vmem:[%s221 + $0x68] sm:$0xf]
                %250 = vst [vmem:[%s222 + $0x34] sm:$0xf] %v249
                %v251 = vld [vmem:[%s221 + $0x70] sm:$0xf]
                %252 = vst [vmem:[%s222 + $0x38] sm:$0xf] %v251
                %v253 = vld [vmem:[%s221 + $0x78] sm:$0xf]
                %254 = vst [vmem:[%s222 + $0x3c] sm:$0xf] %v253
              $region45: #{net_tpsgx_forward.3} parent=39 // loop_footer
                %s220 = sadd.s32 1, %s216
              $region46: #{net_tpsgx_forward.3} parent=39 // loop_footer_branch
                %215 = sbr.rel target = $region42
              $region47: #{net_tpsgx_forward.3} parent=39 // loop_exit
                _
            $region40: #{net_tpsgx_forward.3} parent=31 // pred_fallthru
              _
          $region32: #{net_tpsgx_forward.3} parent=27 // pred_fallthru
            _
          %306 = vnop
        $region28: #{net_tpsgx_forward.3} parent=23 // pred_fallthru
          _
        // Predicated region
        $region66: #{net_tpsgx_forward.3} parent=23 // pred_check
          %p307 = pneg %p71
        $region67: #{net_tpsgx_forward.3} parent=23 // pred_check_branch
          %309 = sbr.rel (%p307) target = $region69
        $region68: #{net_tpsgx_forward.3} parent=23 // pred_region
          %s310 = smul.u32 16, %s19
          %p311 = scmp.lt.s32.totalorder %s310, 31
          %s312 = scalar_select %p311, %s310, 31
          %s313 = smul.addr %s312, 4
          %s314 = scalar_lea.vmem %s1, %s313
          %s315 = smul.u32 16, %s19
        $region69: #{net_tpsgx_forward.3} parent=23 // pred_fallthru
          _
        // Predicated region
        $region70: #{net_tpsgx_forward.3} parent=23 // pred_check
          %p316 = pneg %p97
        $region71: #{net_tpsgx_forward.3} parent=23 // pred_check_branch
          %318 = sbr.rel (%p316) target = $region73
        $region72: #{net_tpsgx_forward.3} parent=23 // pred_region
          %s319 = smul.u32 16, %s18
          %p320 = scmp.lt.s32.totalorder %s319, 31
          %s321 = scalar_select %p320, %s319, 31
          %s322 = smul.addr %s321, 8
          %s323 = scalar_lea.vmem %s2, %s322
          %s324 = smul.u32 16, %s18
        $region73: #{net_tpsgx_forward.3} parent=23 // pred_fallthru
          _
      $region24: #{net_tpsgx_forward.3} parent=5 // pred_fallthru
        _
      %p325 = scmp.le.s32.totalorder 1, %s11
      %p326 = scmp.lt.s32.totalorder %s11, 5
      %p327 = pnand %p325, %p326
      %p328 = pneg %p327
      // Predicated region
      $region74: #{net_tpsgx_forward.3} parent=5 // pred_check
        _
      $region75: #{net_tpsgx_forward.3} parent=5 // pred_check_branch
        %330 = sbr.rel (%p327) target = $region77
      $region76: #{net_tpsgx_forward.3} parent=5 // pred_region
        %s331 = ssub.s32 %s11, 1
        %s332 = sand.u32 %s38, 1
        %s333 = sand.u32 %s38, 1
        %s334 = smul.addr %s333, 64
        %s335 = scalar_lea.vmem [#allocation3], %s334
        // Predicated region
        $region78: #{net_tpsgx_forward.3} parent=76 // pred_check
          %p336 = pneg %p51
        $region79: #{net_tpsgx_forward.3} parent=76 // pred_check_branch
          %338 = sbr.rel (%p336) target = $region81
        $region80: #{net_tpsgx_forward.3} parent=76 // pred_region
          _
        $region81: #{net_tpsgx_forward.3} parent=76 // pred_fallthru
          _
        %s339 = sand.u32 %s38, 1
        %s340 = sand.u32 %s38, 1
        %s341 = smul.addr %s340, 64
        %s342 = scalar_lea.vmem [#allocation3], %s341
        %p343 = pneg %p51
        %p344 = pneg %p48
        %s345 = smul.u32 16, %s21
        %p346 = scmp.lt.s32.totalorder %s345, 31
        %s347 = scalar_select %p346, %s345, 31
        %s348 = smul.addr %s347, 4
        %s349 = scalar_lea.vmem %s1, %s348
        %p350 = pneg %p77
        %p351 = pneg %p74
        %s352 = smul.u32 16, %s20
        %p353 = scmp.lt.s32.totalorder %s352, 31
        %s354 = scalar_select %p353, %s352, 31
        %s355 = smul.addr %s354, 8
        %s356 = scalar_lea.vmem %s2, %s355
        %p357 = pneg %p103
        %p358 = pneg %p100
        %p359 = pneg %p124
        %p360 = pneg %p121
        %p361 = pneg %p145
        %p362 = pneg %p142
        %p363 = pneg %p171
        %p364 = pneg %p168
        %s365 = smul.u32 16, %s20
        %p366 = scmp.lt.s32.totalorder %s365, 31
        %s367 = scalar_select %p366, %s365, 31
        %s368 = smul.addr %s367, 8
        %s369 = scalar_lea.vmem %s5, %s368
        %s370 = smul.u32 16, %s20
        %s371 = smul.u32 16, %s21
        %p372 = scmp.lt.s32.totalorder %s371, 31
        %s373 = scalar_select %p372, %s371, 31
        %s374 = smul.addr %s373, 4
        %s375 = scalar_lea.vmem %s1, %s374
        %s376 = smul.u32 16, %s21
        %s377 = smul.u32 16, %s20
        %p378 = scmp.lt.s32.totalorder %s377, 31
        %s379 = scalar_select %p378, %s377, 31
        %s380 = smul.addr %s379, 8
        %s381 = scalar_lea.vmem %s2, %s380
        %s382 = smul.u32 16, %s20
        %s383 = smul.u32 16, %s20
        %p384 = scmp.lt.s32.totalorder %s383, 31
        %s385 = scalar_select %p384, %s383, 31
        %s386 = smul.addr %s385, 8
        %s387 = scalar_lea.vmem %s5, %s386
        %s388 = smul.u32 16, %s20
        %p390 = scmp.eq.s32.totalorder %s21, 0
        // Predicated region
        $region82: #{net_tpsgx_forward.3} parent=76 // pred_check
          %p391 = pneg %p390
        $region83: #{net_tpsgx_forward.3} parent=76 // pred_check_branch
          %393 = sbr.rel (%p391) target = $region85
        $region84: #{net_tpsgx_forward.3} parent=76 // pred_region
          %vm394 = vcmask 31744
          %395 = vst.msk [vmem:[#allocation2] sm:$0xff] %vm394, 0.0
          %396 = vst.msk [vmem:[#allocation2 + $0x8] sm:$0xff] %vm394, 0.0
          %397 = vst.msk [vmem:[#allocation2 + $0x10] sm:$0xff] %vm394, 0.0
          %398 = vst.msk [vmem:[#allocation2 + $0x18] sm:$0xff] %vm394, 0.0
          %399 = vst.msk [vmem:[#allocation2 + $0x20] sm:$0xff] %vm394, 0.0
          %400 = vst.msk [vmem:[#allocation2 + $0x28] sm:$0xff] %vm394, 0.0
          %401 = vst.msk [vmem:[#allocation2 + $0x30] sm:$0xff] %vm394, 0.0
          %402 = vst.msk [vmem:[#allocation2 + $0x38] sm:$0xff] %vm394, 0.0
          %403 = vst.msk [vmem:[#allocation2 + $0x40] sm:$0xff] %vm394, 0.0
          %404 = vst.msk [vmem:[#allocation2 + $0x48] sm:$0xff] %vm394, 0.0
          %405 = vst.msk [vmem:[#allocation2 + $0x50] sm:$0xff] %vm394, 0.0
          %406 = vst.msk [vmem:[#allocation2 + $0x58] sm:$0xff] %vm394, 0.0
          %407 = vst.msk [vmem:[#allocation2 + $0x60] sm:$0xff] %vm394, 0.0
          %408 = vst.msk [vmem:[#allocation2 + $0x68] sm:$0xff] %vm394, 0.0
          %409 = vst.msk [vmem:[#allocation2 + $0x70] sm:$0xff] %vm394, 0.0
          %410 = vst.msk [vmem:[#allocation2 + $0x78] sm:$0xff] %vm394, 0.0
        $region85: #{net_tpsgx_forward.3} parent=76 // pred_fallthru
          _
        %v411 = vld [vmem:[#allocation2] sm:$0xff]
        %v412 = vld [vmem:[#allocation2 + $0x8] sm:$0xff]
        %v413 = vld [vmem:[#allocation2 + $0x10] sm:$0xff]
        %v414 = vld [vmem:[#allocation2 + $0x18] sm:$0xff]
        %v415 = vld [vmem:[#allocation2 + $0x20] sm:$0xff]
        %v416 = vld [vmem:[#allocation2 + $0x28] sm:$0xff]
        %v417 = vld [vmem:[#allocation2 + $0x30] sm:$0xff]
        %v418 = vld [vmem:[#allocation2 + $0x38] sm:$0xff]
        %v419 = vld [vmem:[#allocation2 + $0x40] sm:$0xff]
        %v420 = vld [vmem:[#allocation2 + $0x48] sm:$0xff]
        %v421 = vld [vmem:[#allocation2 + $0x50] sm:$0xff]
        %v422 = vld [vmem:[#allocation2 + $0x58] sm:$0xff]
        %v423 = vld [vmem:[#allocation2 + $0x60] sm:$0xff]
        %v424 = vld [vmem:[#allocation2 + $0x68] sm:$0xff]
        %v425 = vld [vmem:[#allocation2 + $0x70] sm:$0xff]
        %v426 = vld [vmem:[#allocation2 + $0x78] sm:$0xff]
        %v427 = vld [vmem:[%s335] sm:$0xf]
        %v428 = vld [vmem:[%s335 + $0x4] sm:$0xf]
        %v429 = vld [vmem:[%s335 + $0x8] sm:$0xf]
        %v430 = vld [vmem:[%s335 + $0xc] sm:$0xf]
        %v431 = vld [vmem:[%s335 + $0x10] sm:$0xf]
        %v432 = vld [vmem:[%s335 + $0x14] sm:$0xf]
        %v433 = vld [vmem:[%s335 + $0x18] sm:$0xf]
        %v434 = vld [vmem:[%s335 + $0x1c] sm:$0xf]
        %v435 = vld [vmem:[%s335 + $0x20] sm:$0xf]
        %v436 = vld [vmem:[%s335 + $0x24] sm:$0xf]
        %v437 = vld [vmem:[%s335 + $0x28] sm:$0xf]
        %v438 = vld [vmem:[%s335 + $0x2c] sm:$0xf]
        %v439 = vld [vmem:[%s335 + $0x30] sm:$0xf]
        %v440 = vld [vmem:[%s335 + $0x34] sm:$0xf]
        %v441 = vld [vmem:[%s335 + $0x38] sm:$0xf]
        %v442 = vld [vmem:[%s335 + $0x3c] sm:$0xf]
        %v443 = vld [vmem:[%s375] sm:$0xf]
        %v444 = vld [vmem:[%s375 + $0x4] sm:$0xf]
        %v445 = vld [vmem:[%s375 + $0x8] sm:$0xf]
        %v446 = vld [vmem:[%s375 + $0xc] sm:$0xf]
        %v447 = vld [vmem:[%s375 + $0x10] sm:$0xf]
        %v448 = vld [vmem:[%s375 + $0x14] sm:$0xf]
        %v449 = vld [vmem:[%s375 + $0x18] sm:$0xf]
        %v450 = vld [vmem:[%s375 + $0x1c] sm:$0xf]
        %v451 = vld [vmem:[%s375 + $0x20] sm:$0xf]
        %v452 = vld [vmem:[%s375 + $0x24] sm:$0xf]
        %v453 = vld [vmem:[%s375 + $0x28] sm:$0xf]
        %v454 = vld [vmem:[%s375 + $0x2c] sm:$0xf]
        %v455 = vld [vmem:[%s375 + $0x30] sm:$0xf]
        %v456 = vld [vmem:[%s375 + $0x34] sm:$0xf]
        %v457 = vld [vmem:[%s375 + $0x38] sm:$0xf]
        %v458 = vld [vmem:[%s375 + $0x3c] sm:$0xf]
        %v475 = vunpack.c.l.b16 %v427
        %v476 = vunpack.c.l.b16 %v428
        %v477 = vunpack.c.l.b16 %v429
        %v478 = vunpack.c.l.b16 %v430
        %v479 = vunpack.c.l.b16 %v431
        %v480 = vunpack.c.l.b16 %v432
        %v481 = vunpack.c.l.b16 %v433
        %v482 = vunpack.c.l.b16 %v434
        %v483 = vunpack.c.l.b16 %v435
        %v484 = vunpack.c.l.b16 %v436
        %v485 = vunpack.c.l.b16 %v437
        %v486 = vunpack.c.l.b16 %v438
        %v487 = vunpack.c.l.b16 %v439
        %v488 = vunpack.c.l.b16 %v440
        %v489 = vunpack.c.l.b16 %v441
        %v490 = vunpack.c.l.b16 %v442
        %v491 = vpack.c.b16 %v476, %v475
        %v492 = vpack.c.b16 %v478, %v477
        %v493 = vpack.c.b16 %v480, %v479
        %v494 = vpack.c.b16 %v482, %v481
        %v495 = vpack.c.b16 %v484, %v483
        %v496 = vpack.c.b16 %v486, %v485
        %v497 = vpack.c.b16 %v488, %v487
        %v498 = vpack.c.b16 %v490, %v489
        %v523 = vunpack.c.l.b16 %v443
        %v524 = vunpack.c.l.b16 %v444
        %v525 = vunpack.c.l.b16 %v445
        %v526 = vunpack.c.l.b16 %v446
        %v527 = vunpack.c.l.b16 %v447
        %v528 = vunpack.c.l.b16 %v448
        %v529 = vunpack.c.l.b16 %v449
        %v530 = vunpack.c.l.b16 %v450
        %v531 = vunpack.c.l.b16 %v451
        %v532 = vunpack.c.l.b16 %v452
        %v533 = vunpack.c.l.b16 %v453
        %v534 = vunpack.c.l.b16 %v454
        %v535 = vunpack.c.l.b16 %v455
        %v536 = vunpack.c.l.b16 %v456
        %v537 = vunpack.c.l.b16 %v457
        %v538 = vunpack.c.l.b16 %v458
        %v539 = vpack.c.b16 %v524, %v523
        %v540 = vpack.c.b16 %v526, %v525
        %v541 = vpack.c.b16 %v528, %v527
        %v542 = vpack.c.b16 %v530, %v529
        %v543 = vpack.c.b16 %v532, %v531
        %v544 = vpack.c.b16 %v534, %v533
        %v545 = vpack.c.b16 %v536, %v535
        %v546 = vpack.c.b16 %v538, %v537
        %555 = vmatprep.subr.bf16.mxu0 0
        %556 = vmatpush1.bf16.msra.mxu0 %v539
        %557 = vmatprep.subr.bf16.mxu0 0
        %558 = vmatpush1.bf16.msra.mxu0 %v540
        %559 = vmatprep.subr.bf16.mxu0 0
        %560 = vmatpush1.bf16.msra.mxu0 %v541
        %561 = vmatprep.subr.bf16.mxu0 0
        %562 = vmatpush1.bf16.msra.mxu0 %v542
        %563 = vmatprep.subr.bf16.mxu0 0
        %564 = vmatpush1.bf16.msra.mxu0 %v543
        %565 = vmatprep.subr.bf16.mxu0 0
        %566 = vmatpush1.bf16.msra.mxu0 %v544
        %567 = vmatprep.subr.bf16.mxu0 0
        %568 = vmatpush1.bf16.msra.mxu0 %v545
        %569 = vmatprep.subr.bf16.mxu0 0
        %570 = vmatpush1.bf16.msra.mxu0 %v546
        %571 = vmatprep.subr.bf16.mxu0 0
        %572 = vmatpush1.bf16.msra.mxu0 0
        %573 = vmatprep.subr.bf16.mxu0 0
        %574 = vmatpush1.bf16.msra.mxu0 0
        %575 = vmatprep.subr.bf16.mxu0 0
        %576 = vmatpush1.bf16.msra.mxu0 0
        %577 = vmatprep.subr.bf16.mxu0 0
        %578 = vmatpush1.bf16.msra.mxu0 0
        %579 = vmatprep.subr.bf16.mxu0 0
        %580 = vmatpush1.bf16.msra.mxu0 0
        %581 = vmatprep.subr.bf16.mxu0 0
        %582 = vmatpush1.bf16.msra.mxu0 0
        %583 = vmatprep.subr.bf16.mxu0 0
        %584 = vmatpush1.bf16.msra.mxu0 0
        %585 = vmatprep.subr.bf16.mxu0 0
        %586 = vmatpush1.bf16.msra.mxu0 0
        %587 = vmatprep.mubr.bf16.mxu0 0
        %588 = vmatmul.mubr.bf16.gmra.mrb[0].mxu0 %v491
        %v589 = vpop.f32.mrb[0].mxu0
        %v590 = vadd.f32 0.0, %v589
        %v591 = vpop.f32.mrb[0].mxu0
        %v592 = vpop.f32.mrb[0].mxu0
        %v593 = vadd.f32 0.0, %v592
        %v594 = vpop.f32.mrb[0].mxu0
        %595 = vmatprep.mubr.bf16.mxu0 0
        %596 = vmatmul.mubr.bf16.gmra.mrb[0].mxu0 %v492
        %v597 = vpop.f32.mrb[0].mxu0
        %v598 = vadd.f32 0.0, %v597
        %v599 = vpop.f32.mrb[0].mxu0
        %v600 = vpop.f32.mrb[0].mxu0
        %v601 = vadd.f32 0.0, %v600
        %v602 = vpop.f32.mrb[0].mxu0
        %603 = vmatprep.mubr.bf16.mxu0 0
        %604 = vmatmul.mubr.bf16.gmra.mrb[0].mxu0 %v493
        %v605 = vpop.f32.mrb[0].mxu0
        %v606 = vadd.f32 0.0, %v605
        %v607 = vpop.f32.mrb[0].mxu0
        %v608 = vpop.f32.mrb[0].mxu0
        %v609 = vadd.f32 0.0, %v608
        %v610 = vpop.f32.mrb[0].mxu0
        %611 = vmatprep.mubr.bf16.mxu0 0
        %612 = vmatmul.mubr.bf16.gmra.mrb[0].mxu0 %v494
        %v613 = vpop.f32.mrb[0].mxu0
        %v614 = vadd.f32 0.0, %v613
        %v615 = vpop.f32.mrb[0].mxu0
        %v616 = vpop.f32.mrb[0].mxu0
        %v617 = vadd.f32 0.0, %v616
        %v618 = vpop.f32.mrb[0].mxu0
        %619 = vmatprep.mubr.bf16.mxu0 0
        %620 = vmatmul.mubr.bf16.gmra.mrb[0].mxu0 %v495
        %v621 = vpop.f32.mrb[0].mxu0
        %v622 = vadd.f32 0.0, %v621
        %v623 = vpop.f32.mrb[0].mxu0
        %v624 = vpop.f32.mrb[0].mxu0
        %v625 = vadd.f32 0.0, %v624
        %v626 = vpop.f32.mrb[0].mxu0
        %627 = vmatprep.mubr.bf16.mxu0 0
        %628 = vmatmul.mubr.bf16.gmra.mrb[0].mxu0 %v496
        %v629 = vpop.f32.mrb[0].mxu0
        %v630 = vadd.f32 0.0, %v629
        %v631 = vpop.f32.mrb[0].mxu0
        %v632 = vpop.f32.mrb[0].mxu0
        %v633 = vadd.f32 0.0, %v632
        %v634 = vpop.f32.mrb[0].mxu0
        %635 = vmatprep.mubr.bf16.mxu0 0
        %636 = vmatmul.mubr.bf16.gmra.mrb[0].mxu0 %v497
        %v637 = vpop.f32.mrb[0].mxu0
        %v638 = vadd.f32 0.0, %v637
        %v639 = vpop.f32.mrb[0].mxu0
        %v640 = vpop.f32.mrb[0].mxu0
        %v641 = vadd.f32 0.0, %v640
        %v642 = vpop.f32.mrb[0].mxu0
        %643 = vmatprep.mubr.bf16.mxu0 0
        %644 = vmatmul.mubr.bf16.gmra.mrb[0].mxu0 %v498
        %v645 = vpop.f32.mrb[0].mxu0
        %v646 = vadd.f32 0.0, %v645
        %v647 = vpop.f32.mrb[0].mxu0
        %v648 = vpop.f32.mrb[0].mxu0
        %v649 = vadd.f32 0.0, %v648
        %v650 = vpop.f32.mrb[0].mxu0
        %651 = vdwg.mxu0
        %v652 = vadd.f32 %v411, %v590
        %v653 = vadd.f32 %v412, %v593
        %v654 = vadd.f32 %v413, %v598
        %v655 = vadd.f32 %v414, %v601
        %v656 = vadd.f32 %v415, %v606
        %v657 = vadd.f32 %v416, %v609
        %v658 = vadd.f32 %v417, %v614
        %v659 = vadd.f32 %v418, %v617
        %v660 = vadd.f32 %v419, %v622
        %v661 = vadd.f32 %v420, %v625
        %v662 = vadd.f32 %v421, %v630
        %v663 = vadd.f32 %v422, %v633
        %v664 = vadd.f32 %v423, %v638
        %v665 = vadd.f32 %v424, %v641
        %v666 = vadd.f32 %v425, %v646
        %v667 = vadd.f32 %v426, %v649
        %vm668 = vcmask 31744
        %669 = vst.msk [vmem:[#allocation2] sm:$0xff] %vm668, %v652
        %670 = vst.msk [vmem:[#allocation2 + $0x8] sm:$0xff] %vm668, %v653
        %671 = vst.msk [vmem:[#allocation2 + $0x10] sm:$0xff] %vm668, %v654
        %672 = vst.msk [vmem:[#allocation2 + $0x18] sm:$0xff] %vm668, %v655
        %673 = vst.msk [vmem:[#allocation2 + $0x20] sm:$0xff] %vm668, %v656
        %674 = vst.msk [vmem:[#allocation2 + $0x28] sm:$0xff] %vm668, %v657
        %675 = vst.msk [vmem:[#allocation2 + $0x30] sm:$0xff] %vm668, %v658
        %676 = vst.msk [vmem:[#allocation2 + $0x38] sm:$0xff] %vm668, %v659
        %677 = vst.msk [vmem:[#allocation2 + $0x40] sm:$0xff] %vm668, %v660
        %678 = vst.msk [vmem:[#allocation2 + $0x48] sm:$0xff] %vm668, %v661
        %679 = vst.msk [vmem:[#allocation2 + $0x50] sm:$0xff] %vm668, %v662
        %680 = vst.msk [vmem:[#allocation2 + $0x58] sm:$0xff] %vm668, %v663
        %681 = vst.msk [vmem:[#allocation2 + $0x60] sm:$0xff] %vm668, %v664
        %682 = vst.msk [vmem:[#allocation2 + $0x68] sm:$0xff] %vm668, %v665
        %683 = vst.msk [vmem:[#allocation2 + $0x70] sm:$0xff] %vm668, %v666
        %684 = vst.msk [vmem:[#allocation2 + $0x78] sm:$0xff] %vm668, %v667
        %p685 = scmp.eq.s32.totalorder %s21, 1
        // Predicated region
        $region86: #{net_tpsgx_forward.3} parent=76 // pred_check
          %p686 = pneg %p685
        $region87: #{net_tpsgx_forward.3} parent=76 // pred_check_branch
          %688 = sbr.rel (%p686) target = $region89
        $region88: #{net_tpsgx_forward.3} parent=76 // pred_region
          %v689 = vld [vmem:[#allocation2] sm:$0xff]
          %v690 = vld [vmem:[#allocation2 + $0x8] sm:$0xff]
          %v691 = vld [vmem:[#allocation2 + $0x10] sm:$0xff]
          %v692 = vld [vmem:[#allocation2 + $0x18] sm:$0xff]
          %v693 = vld [vmem:[#allocation2 + $0x20] sm:$0xff]
          %v694 = vld [vmem:[#allocation2 + $0x28] sm:$0xff]
          %v695 = vld [vmem:[#allocation2 + $0x30] sm:$0xff]
          %v696 = vld [vmem:[#allocation2 + $0x38] sm:$0xff]
          %v697 = vld [vmem:[#allocation2 + $0x40] sm:$0xff]
          %v698 = vld [vmem:[#allocation2 + $0x48] sm:$0xff]
          %v699 = vld [vmem:[#allocation2 + $0x50] sm:$0xff]
          %v700 = vld [vmem:[#allocation2 + $0x58] sm:$0xff]
          %v701 = vld [vmem:[#allocation2 + $0x60] sm:$0xff]
          %v702 = vld [vmem:[#allocation2 + $0x68] sm:$0xff]
          %v703 = vld [vmem:[#allocation2 + $0x70] sm:$0xff]
          %v704 = vld [vmem:[#allocation2 + $0x78] sm:$0xff]
          %v705 = vld [vmem:[%s381] sm:$0xff]
          %v706 = vld [vmem:[%s381 + $0x8] sm:$0xff]
          %v707 = vld [vmem:[%s381 + $0x10] sm:$0xff]
          %v708 = vld [vmem:[%s381 + $0x18] sm:$0xff]
          %v709 = vld [vmem:[%s381 + $0x20] sm:$0xff]
          %v710 = vld [vmem:[%s381 + $0x28] sm:$0xff]
          %v711 = vld [vmem:[%s381 + $0x30] sm:$0xff]
          %v712 = vld [vmem:[%s381 + $0x38] sm:$0xff]
          %v713 = vld [vmem:[%s381 + $0x40] sm:$0xff]
          %v714 = vld [vmem:[%s381 + $0x48] sm:$0xff]
          %v715 = vld [vmem:[%s381 + $0x50] sm:$0xff]
          %v716 = vld [vmem:[%s381 + $0x58] sm:$0xff]
          %v717 = vld [vmem:[%s381 + $0x60] sm:$0xff]
          %v718 = vld [vmem:[%s381 + $0x68] sm:$0xff]
          %v719 = vld [vmem:[%s381 + $0x70] sm:$0xff]
          %v720 = vld [vmem:[%s381 + $0x78] sm:$0xff]
          %v721 = vld [vmem:[%s3] sm:$0xff]
          %v722 = vld [vmem:[%s3 + $0x8] sm:$0xff]
          %vm723 = vcmask 130048
          %v725 = vsel %vm723, %v705, 0
          %v728 = vsel %vm723, %v706, 0
          %v731 = vsel %vm723, %v707, 0
          %v734 = vsel %vm723, %v708, 0
          %v737 = vsel %vm723, %v709, 0
          %v740 = vsel %vm723, %v710, 0
          %v743 = vsel %vm723, %v711, 0
          %v746 = vsel %vm723, %v712, 0
          %v749 = vsel %vm723, %v713, 0
          %v752 = vsel %vm723, %v714, 0
          %v755 = vsel %vm723, %v715, 0
          %v758 = vsel %vm723, %v716, 0
          %v761 = vsel %vm723, %v717, 0
          %v764 = vsel %vm723, %v718, 0
          %v767 = vsel %vm723, %v719, 0
          %v770 = vsel %vm723, %v720, 0
          %772 = vmatprep.subr.mxu0 0.0
          %773 = vmatpush1.msra.mxu0 %v721
          %774 = vmatprep.subr.mxu0 0.0
          %775 = vmatpush1.msra.mxu0 %v722
          %776 = vmatprep.subr.mxu0 0.0
          %777 = vmatpush1.msra.mxu0 0.0
          %778 = vmatprep.subr.mxu0 0.0
          %779 = vmatpush1.msra.mxu0 0.0
          %780 = vmatprep.subr.mxu0 0.0
          %781 = vmatpush1.msra.mxu0 0.0
          %782 = vmatprep.subr.mxu0 0.0
          %783 = vmatpush1.msra.mxu0 0.0
          %784 = vmatprep.subr.mxu0 0.0
          %785 = vmatpush1.msra.mxu0 0.0
          %786 = vmatprep.subr.mxu0 0.0
          %787 = vmatpush1.msra.mxu0 0.0
          %788 = vmatprep.subr.mxu0 0.0
          %789 = vmatpush1.msra.mxu0 0.0
          %790 = vmatprep.subr.mxu0 0.0
          %791 = vmatpush1.msra.mxu0 0.0
          %792 = vmatprep.subr.mxu0 0.0
          %793 = vmatpush1.msra.mxu0 0.0
          %794 = vmatprep.subr.mxu0 0.0
          %795 = vmatpush1.msra.mxu0 0.0
          %796 = vmatprep.subr.mxu0 0.0
          %797 = vmatpush1.msra.mxu0 0.0
          %798 = vmatprep.subr.mxu0 0.0
          %799 = vmatpush1.msra.mxu0 0.0
          %800 = vmatprep.subr.mxu0 0.0
          %801 = vmatpush1.msra.mxu0 0.0
          %802 = vmatprep.subr.mxu0 0.0
          %803 = vmatpush1.msra.mxu0 0.0
          %804 = vmatprep.subr.mxu0 0.0
          %805 = vmatpush1.msra.mxu0 0.0
          %806 = vmatprep.subr.mxu0 0.0
          %807 = vmatpush1.msra.mxu0 0.0
          %808 = vmatprep.subr.mxu0 0.0
          %809 = vmatpush1.msra.mxu0 0.0
          %810 = vmatprep.subr.mxu0 0.0
          %811 = vmatpush1.msra.mxu0 0.0
          %812 = vmatprep.subr.mxu0 0.0
          %813 = vmatpush1.msra.mxu0 0.0
          %814 = vmatprep.subr.mxu0 0.0
          %815 = vmatpush1.msra.mxu0 0.0
          %816 = vmatprep.subr.mxu0 0.0
          %817 = vmatpush1.msra.mxu0 0.0
          %818 = vmatprep.subr.mxu0 0.0
          %819 = vmatpush1.msra.mxu0 0.0
          %820 = vmatprep.subr.mxu0 0.0
          %821 = vmatpush1.msra.mxu0 0.0
          %822 = vmatprep.subr.mxu0 0.0
          %823 = vmatpush1.msra.mxu0 0.0
          %824 = vmatprep.subr.mxu0 0.0
          %825 = vmatpush1.msra.mxu0 0.0
          %826 = vmatprep.subr.mxu0 0.0
          %827 = vmatpush1.msra.mxu0 0.0
          %828 = vmatprep.subr.mxu0 0.0
          %829 = vmatpush1.msra.mxu0 0.0
          %830 = vmatprep.subr.mxu0 0.0
          %831 = vmatpush1.msra.mxu0 0.0
          %832 = vmatprep.subr.mxu0 0.0
          %833 = vmatpush1.msra.mxu0 0.0
          %834 = vmatprep.subr.mxu0 0.0
          %835 = vmatpush1.msra.mxu0 0.0
          %836 = vmatprep.mubr.f32.mxu0 0.0
          %837 = vmatmul.mubr.f32.gmra.mrb[0].mxu0 %v725
          %v838 = vpop.f32.mrb[0].mxu0
          %v839 = vadd.f32 0.0, %v838
          %v840 = vpop.f32.mrb[0].mxu0
          %841 = vmatprep.mubr.f32.mxu0 0.0
          %842 = vmatmul.mubr.f32.gmra.mrb[0].mxu0 %v728
          %v843 = vpop.f32.mrb[0].mxu0
          %v844 = vadd.f32 0.0, %v843
          %v845 = vpop.f32.mrb[0].mxu0
          %846 = vmatprep.mubr.f32.mxu0 0.0
          %847 = vmatmul.mubr.f32.gmra.mrb[0].mxu0 %v731
          %v848 = vpop.f32.mrb[0].mxu0
          %v849 = vadd.f32 0.0, %v848
          %v850 = vpop.f32.mrb[0].mxu0
          %851 = vmatprep.mubr.f32.mxu0 0.0
          %852 = vmatmul.mubr.f32.gmra.mrb[0].mxu0 %v734
          %v853 = vpop.f32.mrb[0].mxu0
          %v854 = vadd.f32 0.0, %v853
          %v855 = vpop.f32.mrb[0].mxu0
          %856 = vmatprep.mubr.f32.mxu0 0.0
          %857 = vmatmul.mubr.f32.gmra.mrb[0].mxu0 %v737
          %v858 = vpop.f32.mrb[0].mxu0
          %v859 = vadd.f32 0.0, %v858
          %v860 = vpop.f32.mrb[0].mxu0
          %861 = vmatprep.mubr.f32.mxu0 0.0
          %862 = vmatmul.mubr.f32.gmra.mrb[0].mxu0 %v740
          %v863 = vpop.f32.mrb[0].mxu0
          %v864 = vadd.f32 0.0, %v863
          %v865 = vpop.f32.mrb[0].mxu0
          %866 = vmatprep.mubr.f32.mxu0 0.0
          %867 = vmatmul.mubr.f32.gmra.mrb[0].mxu0 %v743
          %v868 = vpop.f32.mrb[0].mxu0
          %v869 = vadd.f32 0.0, %v868
          %v870 = vpop.f32.mrb[0].mxu0
          %871 = vmatprep.mubr.f32.mxu0 0.0
          %872 = vmatmul.mubr.f32.gmra.mrb[0].mxu0 %v746
          %v873 = vpop.f32.mrb[0].mxu0
          %v874 = vadd.f32 0.0, %v873
          %v875 = vpop.f32.mrb[0].mxu0
          %876 = vmatprep.mubr.f32.mxu0 0.0
          %877 = vmatmul.mubr.f32.gmra.mrb[0].mxu0 %v749
          %v878 = vpop.f32.mrb[0].mxu0
          %v879 = vadd.f32 0.0, %v878
          %v880 = vpop.f32.mrb[0].mxu0
          %881 = vmatprep.mubr.f32.mxu0 0.0
          %882 = vmatmul.mubr.f32.gmra.mrb[0].mxu0 %v752
          %v883 = vpop.f32.mrb[0].mxu0
          %v884 = vadd.f32 0.0, %v883
          %v885 = vpop.f32.mrb[0].mxu0
          %886 = vmatprep.mubr.f32.mxu0 0.0
          %887 = vmatmul.mubr.f32.gmra.mrb[0].mxu0 %v755
          %v888 = vpop.f32.mrb[0].mxu0
          %v889 = vadd.f32 0.0, %v888
          %v890 = vpop.f32.mrb[0].mxu0
          %891 = vmatprep.mubr.f32.mxu0 0.0
          %892 = vmatmul.mubr.f32.gmra.mrb[0].mxu0 %v758
          %v893 = vpop.f32.mrb[0].mxu0
          %v894 = vadd.f32 0.0, %v893
          %v895 = vpop.f32.mrb[0].mxu0
          %896 = vmatprep.mubr.f32.mxu0 0.0
          %897 = vmatmul.mubr.f32.gmra.mrb[0].mxu0 %v761
          %v898 = vpop.f32.mrb[0].mxu0
          %v899 = vadd.f32 0.0, %v898
          %v900 = vpop.f32.mrb[0].mxu0
          %901 = vmatprep.mubr.f32.mxu0 0.0
          %902 = vmatmul.mubr.f32.gmra.mrb[0].mxu0 %v764
          %v903 = vpop.f32.mrb[0].mxu0
          %v904 = vadd.f32 0.0, %v903
          %v905 = vpop.f32.mrb[0].mxu0
          %906 = vmatprep.mubr.f32.mxu0 0.0
          %907 = vmatmul.mubr.f32.gmra.mrb[0].mxu0 %v767
          %v908 = vpop.f32.mrb[0].mxu0
          %v909 = vadd.f32 0.0, %v908
          %v910 = vpop.f32.mrb[0].mxu0
          %911 = vmatprep.mubr.f32.mxu0 0.0
          %912 = vmatmul.mubr.f32.gmra.mrb[0].mxu0 %v770
          %v913 = vpop.f32.mrb[0].mxu0
          %v914 = vadd.f32 0.0, %v913
          %v915 = vpop.f32.mrb[0].mxu0
          %916 = vdwg.mxu0
          %v917 = vadd.f32 %v689, %v839
          %v918 = vadd.f32 %v690, %v844
          %v919 = vadd.f32 %v691, %v849
          %v920 = vadd.f32 %v692, %v854
          %v921 = vadd.f32 %v693, %v859
          %v922 = vadd.f32 %v694, %v864
          %v923 = vadd.f32 %v695, %v869
          %v924 = vadd.f32 %v696, %v874
          %v925 = vadd.f32 %v697, %v879
          %v926 = vadd.f32 %v698, %v884
          %v927 = vadd.f32 %v699, %v889
          %v928 = vadd.f32 %v700, %v894
          %v929 = vadd.f32 %v701, %v899
          %v930 = vadd.f32 %v702, %v904
          %v931 = vadd.f32 %v703, %v909
          %v932 = vadd.f32 %v704, %v914
          %v933 = vld [vmem:[%s4] sm:$0x1]
          %v935 = vlaneseq
          %v936 = vshrl.u32 %v935, 7
          %v937 = vsub.s32 0, %v936
          %v938 = vrot.slane %v933, %v937
          %v940 = vadd.f32 %v917, %v938
          %v941 = vadd.f32 %v918, %v938
          %v942 = vadd.f32 %v919, %v938
          %v943 = vadd.f32 %v920, %v938
          %v944 = vadd.f32 %v921, %v938
          %v945 = vadd.f32 %v922, %v938
          %v946 = vadd.f32 %v923, %v938
          %v947 = vadd.f32 %v924, %v938
          %v948 = vadd.f32 %v925, %v938
          %v949 = vadd.f32 %v926, %v938
          %v950 = vadd.f32 %v927, %v938
          %v951 = vadd.f32 %v928, %v938
          %v952 = vadd.f32 %v929, %v938
          %v953 = vadd.f32 %v930, %v938
          %v954 = vadd.f32 %v931, %v938
          %v955 = vadd.f32 %v932, %v938
          %v956 = vsel %vm668, %v940, -inf
          %957 = vmax.xlane.f32.xlu0 %v956
          %v958 = vpop.xlane.xlu0 %957
          %v959 = vsel %vm668, %v941, -inf
          %960 = vmax.xlane.f32.xlu0 %v959
          %v961 = vpop.xlane.xlu0 %960
          %v962 = vsel %vm668, %v942, -inf
          %963 = vmax.xlane.f32.xlu0 %v962
          %v964 = vpop.xlane.xlu0 %963
          %v965 = vsel %vm668, %v943, -inf
          %966 = vmax.xlane.f32.xlu0 %v965
          %v967 = vpop.xlane.xlu0 %966
          %v968 = vsel %vm668, %v944, -inf
          %969 = vmax.xlane.f32.xlu0 %v968
          %v970 = vpop.xlane.xlu0 %969
          %v971 = vsel %vm668, %v945, -inf
          %972 = vmax.xlane.f32.xlu0 %v971
          %v973 = vpop.xlane.xlu0 %972
          %v974 = vsel %vm668, %v946, -inf
          %975 = vmax.xlane.f32.xlu0 %v974
          %v976 = vpop.xlane.xlu0 %975
          %v977 = vsel %vm668, %v947, -inf
          %978 = vmax.xlane.f32.xlu0 %v977
          %v979 = vpop.xlane.xlu0 %978
          %v980 = vsel %vm668, %v948, -inf
          %981 = vmax.xlane.f32.xlu0 %v980
          %v982 = vpop.xlane.xlu0 %981
          %v983 = vsel %vm668, %v949, -inf
          %984 = vmax.xlane.f32.xlu0 %v983
          %v985 = vpop.xlane.xlu0 %984
          %v986 = vsel %vm668, %v950, -inf
          %987 = vmax.xlane.f32.xlu0 %v986
          %v988 = vpop.xlane.xlu0 %987
          %v989 = vsel %vm668, %v951, -inf
          %990 = vmax.xlane.f32.xlu0 %v989
          %v991 = vpop.xlane.xlu0 %990
          %v992 = vsel %vm668, %v952, -inf
          %993 = vmax.xlane.f32.xlu0 %v992
          %v994 = vpop.xlane.xlu0 %993
          %v995 = vsel %vm668, %v953, -inf
          %996 = vmax.xlane.f32.xlu0 %v995
          %v997 = vpop.xlane.xlu0 %996
          %v998 = vsel %vm668, %v954, -inf
          %999 = vmax.xlane.f32.xlu0 %v998
          %v1000 = vpop.xlane.xlu0 %999
          %v1001 = vsel %vm668, %v955, -inf
          %1002 = vmax.xlane.f32.xlu0 %v1001
          %v1003 = vpop.xlane.xlu0 %1002
          %v1004 = vsub.f32 %v940, %v958
          %v1005 = vsub.f32 %v941, %v961
          %v1006 = vsub.f32 %v942, %v964
          %v1007 = vsub.f32 %v943, %v967
          %v1008 = vsub.f32 %v944, %v970
          %v1009 = vsub.f32 %v945, %v973
          %v1010 = vsub.f32 %v946, %v976
          %v1011 = vsub.f32 %v947, %v979
          %v1012 = vsub.f32 %v948, %v982
          %v1013 = vsub.f32 %v949, %v985
          %v1014 = vsub.f32 %v950, %v988
          %v1015 = vsub.f32 %v951, %v991
          %v1016 = vsub.f32 %v952, %v994
          %v1017 = vsub.f32 %v953, %v997
          %v1018 = vsub.f32 %v954, %v1000
          %v1019 = vsub.f32 %v955, %v1003
          %v1020 = vmul.f32 %v1004, 1.442695
          %v1021 = vpow.pop %v1020
          %v1022 = vmul.f32 %v1005, 1.442695
          %v1023 = vpow.pop %v1022
          %v1024 = vmul.f32 %v1006, 1.442695
          %v1025 = vpow.pop %v1024
          %v1026 = vmul.f32 %v1007, 1.442695
          %v1027 = vpow.pop %v1026
          %v1028 = vmul.f32 %v1008, 1.442695
          %v1029 = vpow.pop %v1028
          %v1030 = vmul.f32 %v1009, 1.442695
          %v1031 = vpow.pop %v1030
          %v1032 = vmul.f32 %v1010, 1.442695
          %v1033 = vpow.pop %v1032
          %v1034 = vmul.f32 %v1011, 1.442695
          %v1035 = vpow.pop %v1034
          %v1036 = vmul.f32 %v1012, 1.442695
          %v1037 = vpow.pop %v1036
          %v1038 = vmul.f32 %v1013, 1.442695
          %v1039 = vpow.pop %v1038
          %v1040 = vmul.f32 %v1014, 1.442695
          %v1041 = vpow.pop %v1040
          %v1042 = vmul.f32 %v1015, 1.442695
          %v1043 = vpow.pop %v1042
          %v1044 = vmul.f32 %v1016, 1.442695
          %v1045 = vpow.pop %v1044
          %v1046 = vmul.f32 %v1017, 1.442695
          %v1047 = vpow.pop %v1046
          %v1048 = vmul.f32 %v1018, 1.442695
          %v1049 = vpow.pop %v1048
          %v1050 = vmul.f32 %v1019, 1.442695
          %v1051 = vpow.pop %v1050
          %v1052 = vsel %vm668, %v1021, 0.0
          %1053 = vadd.xlane.f32.xlu0 %v1052
          %v1054 = vpop.xlane.xlu0 %1053
          %v1055 = vsel %vm668, %v1023, 0.0
          %1056 = vadd.xlane.f32.xlu0 %v1055
          %v1057 = vpop.xlane.xlu0 %1056
          %v1058 = vsel %vm668, %v1025, 0.0
          %1059 = vadd.xlane.f32.xlu0 %v1058
          %v1060 = vpop.xlane.xlu0 %1059
          %v1061 = vsel %vm668, %v1027, 0.0
          %1062 = vadd.xlane.f32.xlu0 %v1061
          %v1063 = vpop.xlane.xlu0 %1062
          %v1064 = vsel %vm668, %v1029, 0.0
          %1065 = vadd.xlane.f32.xlu0 %v1064
          %v1066 = vpop.xlane.xlu0 %1065
          %v1067 = vsel %vm668, %v1031, 0.0
          %1068 = vadd.xlane.f32.xlu0 %v1067
          %v1069 = vpop.xlane.xlu0 %1068
          %v1070 = vsel %vm668, %v1033, 0.0
          %1071 = vadd.xlane.f32.xlu0 %v1070
          %v1072 = vpop.xlane.xlu0 %1071
          %v1073 = vsel %vm668, %v1035, 0.0
          %1074 = vadd.xlane.f32.xlu0 %v1073
          %v1075 = vpop.xlane.xlu0 %1074
          %v1076 = vsel %vm668, %v1037, 0.0
          %1077 = vadd.xlane.f32.xlu0 %v1076
          %v1078 = vpop.xlane.xlu0 %1077
          %v1079 = vsel %vm668, %v1039, 0.0
          %1080 = vadd.xlane.f32.xlu0 %v1079
          %v1081 = vpop.xlane.xlu0 %1080
          %v1082 = vsel %vm668, %v1041, 0.0
          %1083 = vadd.xlane.f32.xlu0 %v1082
          %v1084 = vpop.xlane.xlu0 %1083
          %v1085 = vsel %vm668, %v1043, 0.0
          %1086 = vadd.xlane.f32.xlu0 %v1085
          %v1087 = vpop.xlane.xlu0 %1086
          %v1088 = vsel %vm668, %v1045, 0.0
          %1089 = vadd.xlane.f32.xlu0 %v1088
          %v1090 = vpop.xlane.xlu0 %1089
          %v1091 = vsel %vm668, %v1047, 0.0
          %1092 = vadd.xlane.f32.xlu0 %v1091
          %v1093 = vpop.xlane.xlu0 %1092
          %v1094 = vsel %vm668, %v1049, 0.0
          %1095 = vadd.xlane.f32.xlu0 %v1094
          %v1096 = vpop.xlane.xlu0 %1095
          %v1097 = vsel %vm668, %v1051, 0.0
          %1098 = vadd.xlane.f32.xlu0 %v1097
          %v1099 = vpop.xlane.xlu0 %1098
          %v1100 = vrcp.pop %v1054
          %v1101 = vrcp.pop %v1057
          %v1102 = vrcp.pop %v1060
          %v1103 = vrcp.pop %v1063
          %v1104 = vrcp.pop %v1066
          %v1105 = vrcp.pop %v1069
          %v1106 = vrcp.pop %v1072
          %v1107 = vrcp.pop %v1075
          %v1108 = vrcp.pop %v1078
          %v1109 = vrcp.pop %v1081
          %v1110 = vrcp.pop %v1084
          %v1111 = vrcp.pop %v1087
          %v1112 = vrcp.pop %v1090
          %v1113 = vrcp.pop %v1093
          %v1114 = vrcp.pop %v1096
          %v1115 = vrcp.pop %v1099
          %v1116 = vmul.f32 %v1021, %v1100
          %v1117 = vmul.f32 %v1023, %v1101
          %v1118 = vmul.f32 %v1025, %v1102
          %v1119 = vmul.f32 %v1027, %v1103
          %v1120 = vmul.f32 %v1029, %v1104
          %v1121 = vmul.f32 %v1031, %v1105
          %v1122 = vmul.f32 %v1033, %v1106
          %v1123 = vmul.f32 %v1035, %v1107
          %v1124 = vmul.f32 %v1037, %v1108
          %v1125 = vmul.f32 %v1039, %v1109
          %v1126 = vmul.f32 %v1041, %v1110
          %v1127 = vmul.f32 %v1043, %v1111
          %v1128 = vmul.f32 %v1045, %v1112
          %v1129 = vmul.f32 %v1047, %v1113
          %v1130 = vmul.f32 %v1049, %v1114
          %v1131 = vmul.f32 %v1051, %v1115
          %1132 = vst.msk [vmem:[%s387] sm:$0xff] %vm668, %v1116
          %1133 = vst.msk [vmem:[%s387 + $0x8] sm:$0xff] %vm668, %v1117
          %1134 = vst.msk [vmem:[%s387 + $0x10] sm:$0xff] %vm668, %v1118
          %1135 = vst.msk [vmem:[%s387 + $0x18] sm:$0xff] %vm668, %v1119
          %1136 = vst.msk [vmem:[%s387 + $0x20] sm:$0xff] %vm668, %v1120
          %1137 = vst.msk [vmem:[%s387 + $0x28] sm:$0xff] %vm668, %v1121
          %1138 = vst.msk [vmem:[%s387 + $0x30] sm:$0xff] %vm668, %v1122
          %1139 = vst.msk [vmem:[%s387 + $0x38] sm:$0xff] %vm668, %v1123
          %1140 = vst.msk [vmem:[%s387 + $0x40] sm:$0xff] %vm668, %v1124
          %1141 = vst.msk [vmem:[%s387 + $0x48] sm:$0xff] %vm668, %v1125
          %1142 = vst.msk [vmem:[%s387 + $0x50] sm:$0xff] %vm668, %v1126
          %1143 = vst.msk [vmem:[%s387 + $0x58] sm:$0xff] %vm668, %v1127
          %1144 = vst.msk [vmem:[%s387 + $0x60] sm:$0xff] %vm668, %v1128
          %1145 = vst.msk [vmem:[%s387 + $0x68] sm:$0xff] %vm668, %v1129
          %1146 = vst.msk [vmem:[%s387 + $0x70] sm:$0xff] %vm668, %v1130
          %1147 = vst.msk [vmem:[%s387 + $0x78] sm:$0xff] %vm668, %v1131
        $region89: #{net_tpsgx_forward.3} parent=76 // pred_fallthru
          _
        %s1148 = smul.u32 16, %s20
        %p1149 = scmp.lt.s32.totalorder %s1148, 31
        %s1150 = scalar_select %p1149, %s1148, 31
        %s1151 = smul.addr %s1150, 8
        %s1152 = scalar_lea.vmem %s5, %s1151
        // Predicated region
        $region90: #{net_tpsgx_forward.3} parent=76 // pred_check
          %p1153 = pneg %p168
        $region91: #{net_tpsgx_forward.3} parent=76 // pred_check_branch
          %1155 = sbr.rel (%p1153) target = $region93
        $region92: #{net_tpsgx_forward.3} parent=76 // pred_region
          %s1156 = smul.u32 16, %s20
        $region93: #{net_tpsgx_forward.3} parent=76 // pred_fallthru
          _
      $region77: #{net_tpsgx_forward.3} parent=5 // pred_fallthru
        _
      %p1157 = scmp.le.s32.totalorder 2, %s11
      // Predicated region
      $region94: #{net_tpsgx_forward.3} parent=5 // pred_check
        %p1158 = pneg %p1157
      $region95: #{net_tpsgx_forward.3} parent=5 // pred_check_branch
        %1160 = sbr.rel (%p1158) target = $region97
      $region96: #{net_tpsgx_forward.3} parent=5 // pred_region
        %s1161 = ssub.s32 %s11, 2
        // Predicated region
        $region98: #{net_tpsgx_forward.3} parent=96 // pred_check
          %p1162 = pneg %p174
        $region99: #{net_tpsgx_forward.3} parent=96 // pred_check_branch
          %1164 = sbr.rel (%p1162) target = $region101
        $region100: #{net_tpsgx_forward.3} parent=96 // pred_region
          %s1165 = smul.u32 16, %s22
          %p1166 = scmp.lt.s32.totalorder %s1165, 31
          %s1167 = scalar_select %p1166, %s1165, 31
          %s1168 = smul.addr %s1167, 8
          %s1169 = scalar_lea.vmem %s5, %s1168
        $region101: #{net_tpsgx_forward.3} parent=96 // pred_fallthru
          _
      $region97: #{net_tpsgx_forward.3} parent=5 // pred_fallthru
        _
    $region6: #{net_tpsgx_forward.3} parent=1 // loop_footer
      %s15 = sadd.s32 1, %s11
    $region7: #{net_tpsgx_forward.3} parent=1 // loop_footer_branch
      %10 = sbr.rel target = $region3
    $region8: #{net_tpsgx_forward.3} parent=1 // loop_exit
      _

// kernel: net_tpsgx_forward.2
$region0: #{net_tpsgx_forward.2}
  #allocation0 [shape = 'u32[]', space=smem, size = 0x4, offset = 0x4, fixed_abs, tag = 'smem constant byte address 0x4 - core index']
  #allocation1 [shape = 'u32[144,128]{1,0:T(1,128)}', space=vmem, size = 0x12000, scoped, tag = 'internal scratch']
  #allocation2 [shape = 'f32[128,8]{1,0:T(8,128)}', space=vmem, size = 0x10000, scoped, tag = 'scratch operand']
  %s0 = inlined_call_operand.vmem [shape: bf16[256,256], index: 0, kind: input, shape index: {}]
  %s1 = inlined_call_operand.vmem [shape: bf16[256,8], index: 1, kind: input, shape index: {}, may-alias: {1,2}]
  %s2 = inlined_call_operand.vmem [shape: bf16[256,8], index: 2, kind: input, shape index: {}, may-alias: {1,2}]
  %s3 = inlined_call_operand.vmem [shape: f32[8,16], index: 3, kind: input, shape index: {}]
  %s4 = inlined_call_operand.vmem [shape: f32[8,16], index: 4, kind: input, shape index: {}]
  %s5 = inlined_call_operand.vmem [shape: f32[1,16], index: 5, kind: input, shape index: {}]
  %s6 = inlined_call_operand.vmem [shape: f32[16,4], index: 6, kind: input, shape index: {}]
  %s7 = inlined_call_operand.vmem [shape: f32[256,16], index: 7, kind: output, shape index: {0}]
  %s8 = inlined_call_operand.vmem [shape: bf16[256,4], index: 8, kind: output, shape index: {1}]
  %9 = xla_tuple %s7, %s8
  %s10 = sld [smem:[#allocation0]]
  $region118: #{net_tpsgx_forward.2} parent=0
    _
  %s12 = ssub.s32 1, %s10
  %s13 = scalar_select 0, %s12, %s10
  $region1: #{net_tpsgx_forward.2} parent=0
    #allocation3 [shape = 'u8[65536]{0}', space=vmem, size = 0x10000, scoped, tag = 'input window, operand 0']
    loop: start=0, step=1, limit=6
    $region2: #{net_tpsgx_forward.2} parent=1 // loop_pre_header
      _
    $region3: #{net_tpsgx_forward.2} parent=1 // loop_header
      %s15 = sphi 0, %s19
      %p16 = scmp.ge.s32.totalorder %s15, 6
      %s22 = sphi 0, %s34
      %s23 = sphi 0, %s30
      %s24 = sphi 0, %s22
      %s25 = sphi 0, %s23
      %s26 = sphi 0, %s24
      %s27 = sphi 0, %s25
      %s39 = sphi 0, %s41
      %s42 = sphi 0, %s39
      %s43 = sphi 0, %s42
      %s59 = sphi 0, %s43
      %s65 = sphi 0, %s67
      %s68 = sphi 0, %s65
      %s69 = sphi 0, %s68
      %s85 = sphi 0, %s69
      %s91 = sphi 0, %s93
      %s94 = sphi 0, %s91
      %s95 = sphi 0, %s94
      %s111 = sphi 0, %s95
      %s115 = sphi 0, %s115
      %s117 = sphi 0, %s115
      %s118 = sphi 0, %s117
      %s132 = sphi 0, %s118
      %s136 = sphi 0, %s136
      %s138 = sphi 0, %s136
      %s139 = sphi 0, %s138
      %s153 = sphi 0, %s139
      %s157 = sphi 0, %s157
      %s159 = sphi 0, %s157
      %s160 = sphi 0, %s159
      %s174 = sphi 0, %s160
      %s178 = sphi 0, %s178
      %s180 = sphi 0, %s178
      %s181 = sphi 0, %s180
      %s195 = sphi 0, %s181
      %s201 = sphi 0, %s203
      %s204 = sphi 0, %s201
      %s205 = sphi 0, %s204
      %s221 = sphi 0, %s205
      %s227 = sphi 0, %s229
      %s230 = sphi 0, %s227
      %s231 = sphi 0, %s230
      %s247 = sphi 0, %s231
    $region4: #{net_tpsgx_forward.2} parent=1 // loop_header_branch
      %18 = sbr.rel (%p16) target = $region8
    $region5: #{net_tpsgx_forward.2} parent=1 // loop_body
      %s20 = ssub.s32 %s15, 1
      %s21 = ssub.s32 %s15, 2
      %s28 = sadd.s32 1, %s23
      %p29 = scmp.ge.s32.totalorder %s28, 2
      %s30 = scalar_select %p29, 0, %s28
      %s31 = sadd.s32 1, %s22
      %s32 = scalar_select %p29, %s31, %s22
      %p33 = scmp.ge.s32.totalorder %s32, 2
      %s34 = scalar_select %p33, 0, %s32
      %s35 = ssub.s32 %s22, %s34
      %s36 = ssub.s32 %s23, %s30
      %s37 = sor.u32 %s35, %s36
      %p38 = scmp.eq.s32.totalorder %s37, 0
      %s40 = sadd.s32 %s39, 1
      %s41 = scalar_select %p38, %s39, %s40
      %p44 = pneg %p38
      %p45 = scmp.eq.s32.totalorder %s15, 3
      %p46 = por %p44, %p45
      %p47 = scmp.ne.s32.totalorder %s39, %s42
      %p48 = scmp.eq.s32.totalorder %s15, 0
      %p49 = por %p47, %p48
      %p50 = scmp.ne.s32.totalorder %s39, %s42
      %p51 = scmp.eq.s32.totalorder %s20, 3
      %p52 = por %p50, %p51
      %p53 = scmp.ne.s32.totalorder %s42, %s43
      %p54 = scmp.eq.s32.totalorder %s20, 0
      %p55 = por %p53, %p54
      %p56 = scmp.ne.s32.totalorder %s42, %s43
      %p57 = scmp.eq.s32.totalorder %s21, 3
      %p58 = por %p56, %p57
      %p60 = scmp.ne.s32.totalorder %s43, %s59
      %p61 = scmp.eq.s32.totalorder %s21, 0
      %p62 = por %p60, %p61
      %s63 = ssub.s32 %s23, %s30
      %p64 = scmp.eq.s32.totalorder %s63, 0
      %s66 = sadd.s32 %s65, 1
      %s67 = scalar_select %p64, %s65, %s66
      %p70 = pneg %p64
      %p71 = scmp.eq.s32.totalorder %s15, 3
      %p72 = por %p70, %p71
      %p73 = scmp.ne.s32.totalorder %s65, %s68
      %p74 = scmp.eq.s32.totalorder %s15, 0
      %p75 = por %p73, %p74
      %p76 = scmp.ne.s32.totalorder %s65, %s68
      %p77 = scmp.eq.s32.totalorder %s20, 3
      %p78 = por %p76, %p77
      %p79 = scmp.ne.s32.totalorder %s68, %s69
      %p80 = scmp.eq.s32.totalorder %s20, 0
      %p81 = por %p79, %p80
      %p82 = scmp.ne.s32.totalorder %s68, %s69
      %p83 = scmp.eq.s32.totalorder %s21, 3
      %p84 = por %p82, %p83
      %p86 = scmp.ne.s32.totalorder %s69, %s85
      %p87 = scmp.eq.s32.totalorder %s21, 0
      %p88 = por %p86, %p87
      %s89 = ssub.s32 %s22, %s34
      %p90 = scmp.eq.s32.totalorder %s89, 0
      %s92 = sadd.s32 %s91, 1
      %s93 = scalar_select %p90, %s91, %s92
      %p96 = pneg %p90
      %p97 = scmp.eq.s32.totalorder %s15, 3
      %p98 = por %p96, %p97
      %p99 = scmp.ne.s32.totalorder %s91, %s94
      %p100 = scmp.eq.s32.totalorder %s15, 0
      %p101 = por %p99, %p100
      %p102 = scmp.ne.s32.totalorder %s91, %s94
      %p103 = scmp.eq.s32.totalorder %s20, 3
      %p104 = por %p102, %p103
      %p105 = scmp.ne.s32.totalorder %s94, %s95
      %p106 = scmp.eq.s32.totalorder %s20, 0
      %p107 = por %p105, %p106
      %p108 = scmp.ne.s32.totalorder %s94, %s95
      %p109 = scmp.eq.s32.totalorder %s21, 3
      %p110 = por %p108, %p109
      %p112 = scmp.ne.s32.totalorder %s95, %s111
      %p113 = scmp.eq.s32.totalorder %s21, 0
      %p114 = por %p112, %p113
      %s116 = sadd.s32 %s115, 1
      %p119 = scmp.eq.s32.totalorder %s15, 3
      %p120 = scmp.ne.s32.totalorder %s115, %s117
      %p121 = scmp.eq.s32.totalorder %s15, 0
      %p122 = por %p120, %p121
      %p123 = scmp.ne.s32.totalorder %s115, %s117
      %p124 = scmp.eq.s32.totalorder %s20, 3
      %p125 = por %p123, %p124
      %p126 = scmp.ne.s32.totalorder %s117, %s118
      %p127 = scmp.eq.s32.totalorder %s20, 0
      %p128 = por %p126, %p127
      %p129 = scmp.ne.s32.totalorder %s117, %s118
      %p130 = scmp.eq.s32.totalorder %s21, 3
      %p131 = por %p129, %p130
      %p133 = scmp.ne.s32.totalorder %s118, %s132
      %p134 = scmp.eq.s32.totalorder %s21, 0
      %p135 = por %p133, %p134
      %s137 = sadd.s32 %s136, 1
      %p140 = scmp.eq.s32.totalorder %s15, 3
      %p141 = scmp.ne.s32.totalorder %s136, %s138
      %p142 = scmp.eq.s32.totalorder %s15, 0
      %p143 = por %p141, %p142
      %p144 = scmp.ne.s32.totalorder %s136, %s138
      %p145 = scmp.eq.s32.totalorder %s20, 3
      %p146 = por %p144, %p145
      %p147 = scmp.ne.s32.totalorder %s138, %s139
      %p148 = scmp.eq.s32.totalorder %s20, 0
      %p149 = por %p147, %p148
      %p150 = scmp.ne.s32.totalorder %s138, %s139
      %p151 = scmp.eq.s32.totalorder %s21, 3
      %p152 = por %p150, %p151
      %p154 = scmp.ne.s32.totalorder %s139, %s153
      %p155 = scmp.eq.s32.totalorder %s21, 0
      %p156 = por %p154, %p155
      %s158 = sadd.s32 %s157, 1
      %p161 = scmp.eq.s32.totalorder %s15, 3
      %p162 = scmp.ne.s32.totalorder %s157, %s159
      %p163 = scmp.eq.s32.totalorder %s15, 0
      %p164 = por %p162, %p163
      %p165 = scmp.ne.s32.totalorder %s157, %s159
      %p166 = scmp.eq.s32.totalorder %s20, 3
      %p167 = por %p165, %p166
      %p168 = scmp.ne.s32.totalorder %s159, %s160
      %p169 = scmp.eq.s32.totalorder %s20, 0
      %p170 = por %p168, %p169
      %p171 = scmp.ne.s32.totalorder %s159, %s160
      %p172 = scmp.eq.s32.totalorder %s21, 3
      %p173 = por %p171, %p172
      %p175 = scmp.ne.s32.totalorder %s160, %s174
      %p176 = scmp.eq.s32.totalorder %s21, 0
      %p177 = por %p175, %p176
      %s179 = sadd.s32 %s178, 1
      %p182 = scmp.eq.s32.totalorder %s15, 3
      %p183 = scmp.ne.s32.totalorder %s178, %s180
      %p184 = scmp.eq.s32.totalorder %s15, 0
      %p185 = por %p183, %p184
      %p186 = scmp.ne.s32.totalorder %s178, %s180
      %p187 = scmp.eq.s32.totalorder %s20, 3
      %p188 = por %p186, %p187
      %p189 = scmp.ne.s32.totalorder %s180, %s181
      %p190 = scmp.eq.s32.totalorder %s20, 0
      %p191 = por %p189, %p190
      %p192 = scmp.ne.s32.totalorder %s180, %s181
      %p193 = scmp.eq.s32.totalorder %s21, 3
      %p194 = por %p192, %p193
      %p196 = scmp.ne.s32.totalorder %s181, %s195
      %p197 = scmp.eq.s32.totalorder %s21, 0
      %p198 = por %p196, %p197
      %s199 = ssub.s32 %s22, %s34
      %p200 = scmp.eq.s32.totalorder %s199, 0
      %s202 = sadd.s32 %s201, 1
      %s203 = scalar_select %p200, %s201, %s202
      %p206 = pneg %p200
      %p207 = scmp.eq.s32.totalorder %s15, 3
      %p208 = por %p206, %p207
      %p209 = scmp.ne.s32.totalorder %s201, %s204
      %p210 = scmp.eq.s32.totalorder %s15, 0
      %p211 = por %p209, %p210
      %p212 = scmp.ne.s32.totalorder %s201, %s204
      %p213 = scmp.eq.s32.totalorder %s20, 3
      %p214 = por %p212, %p213
      %p215 = scmp.ne.s32.totalorder %s204, %s205
      %p216 = scmp.eq.s32.totalorder %s20, 0
      %p217 = por %p215, %p216
      %p218 = scmp.ne.s32.totalorder %s204, %s205
      %p219 = scmp.eq.s32.totalorder %s21, 3
      %p220 = por %p218, %p219
      %p222 = scmp.ne.s32.totalorder %s205, %s221
      %p223 = scmp.eq.s32.totalorder %s21, 0
      %p224 = por %p222, %p223
      %s225 = ssub.s32 %s22, %s34
      %p226 = scmp.eq.s32.totalorder %s225, 0
      %s228 = sadd.s32 %s227, 1
      %s229 = scalar_select %p226, %s227, %s228
      %p232 = pneg %p226
      %p233 = scmp.eq.s32.totalorder %s15, 3
      %p234 = por %p232, %p233
      %p235 = scmp.ne.s32.totalorder %s227, %s230
      %p236 = scmp.eq.s32.totalorder %s15, 0
      %p237 = por %p235, %p236
      %p238 = scmp.ne.s32.totalorder %s227, %s230
      %p239 = scmp.eq.s32.totalorder %s20, 3
      %p240 = por %p238, %p239
      %p241 = scmp.ne.s32.totalorder %s230, %s231
      %p242 = scmp.eq.s32.totalorder %s20, 0
      %p243 = por %p241, %p242
      %p244 = scmp.ne.s32.totalorder %s230, %s231
      %p245 = scmp.eq.s32.totalorder %s21, 3
      %p246 = por %p244, %p245
      %p248 = scmp.ne.s32.totalorder %s231, %s247
      %p249 = scmp.eq.s32.totalorder %s21, 0
      %p250 = por %p248, %p249
      %p251 = scmp.le.s32.totalorder 1, %s15
      %p252 = scmp.lt.s32.totalorder %s15, 5
      %p253 = pnand %p251, %p252
      %p254 = pneg %p253
      // Predicated region
      $region9: #{net_tpsgx_forward.2} parent=5 // pred_check
        _
      $region10: #{net_tpsgx_forward.2} parent=5 // pred_check_branch
        %256 = sbr.rel (%p253) target = $region12
      $region11: #{net_tpsgx_forward.2} parent=5 // pred_region
        %s257 = ssub.s32 %s15, 1
        // Predicated region
        $region13: #{net_tpsgx_forward.2} parent=11 // pred_check
          %p258 = pneg %p128
        $region14: #{net_tpsgx_forward.2} parent=11 // pred_check_branch
          %260 = sbr.rel (%p258) target = $region16
        $region15: #{net_tpsgx_forward.2} parent=11 // pred_region
          _
        $region16: #{net_tpsgx_forward.2} parent=11 // pred_fallthru
          _
        // Predicated region
        $region17: #{net_tpsgx_forward.2} parent=11 // pred_check
          %p261 = pneg %p149
        $region18: #{net_tpsgx_forward.2} parent=11 // pred_check_branch
          %263 = sbr.rel (%p261) target = $region20
        $region19: #{net_tpsgx_forward.2} parent=11 // pred_region
          _
        $region20: #{net_tpsgx_forward.2} parent=11 // pred_fallthru
          _
        // Predicated region
        $region21: #{net_tpsgx_forward.2} parent=11 // pred_check
          %p264 = pneg %p170
        $region22: #{net_tpsgx_forward.2} parent=11 // pred_check_branch
          %266 = sbr.rel (%p264) target = $region24
        $region23: #{net_tpsgx_forward.2} parent=11 // pred_region
          _
        $region24: #{net_tpsgx_forward.2} parent=11 // pred_fallthru
          _
        // Predicated region
        $region25: #{net_tpsgx_forward.2} parent=11 // pred_check
          %p267 = pneg %p191
        $region26: #{net_tpsgx_forward.2} parent=11 // pred_check_branch
          %269 = sbr.rel (%p267) target = $region28
        $region27: #{net_tpsgx_forward.2} parent=11 // pred_region
          _
        $region28: #{net_tpsgx_forward.2} parent=11 // pred_fallthru
          _
      $region12: #{net_tpsgx_forward.2} parent=5 // pred_fallthru
        _
      %p270 = scmp.lt.s32.totalorder %s15, 4
      // Predicated region
      $region29: #{net_tpsgx_forward.2} parent=5 // pred_check
        %p271 = pneg %p270
      $region30: #{net_tpsgx_forward.2} parent=5 // pred_check_branch
        %273 = sbr.rel (%p271) target = $region32
      $region31: #{net_tpsgx_forward.2} parent=5 // pred_region
        // Predicated region
        $region33: #{net_tpsgx_forward.2} parent=31 // pred_check
          %p274 = pneg %p49
        $region34: #{net_tpsgx_forward.2} parent=31 // pred_check_branch
          %276 = sbr.rel (%p274) target = $region36
        $region35: #{net_tpsgx_forward.2} parent=31 // pred_region
          %s277 = sand.u32 %s39, 1
          %s278 = sand.u32 %s39, 1
          %s279 = smul.addr %s278, 64
          %s280 = scalar_lea.vmem [#allocation3], %s279
          %s281 = smul.u32 16, %s22
          %s282 = smul.addr %s281, 2
          %s283 = sadd.s32 %s23, %s282
          %s284 = smul.addr %s283, 4
          %s285 = scalar_lea.vmem %s0, %s284
          // Predicated region
          $region37: #{net_tpsgx_forward.2} parent=35 // pred_check
            _
          $region38: #{net_tpsgx_forward.2} parent=35 // pred_check_branch
            %287 = sbr.rel (0) target = $region40
          $region39: #{net_tpsgx_forward.2} parent=35 // pred_region
            // Predicated region
            $region41: #{net_tpsgx_forward.2} parent=39 // pred_check
              _
            $region42: #{net_tpsgx_forward.2} parent=39 // pred_check_branch
              %289 = sbr.rel target = $region44
            $region43: #{net_tpsgx_forward.2} parent=39 // pred_region
              // Predicated region
              $region56: #{net_tpsgx_forward.2} parent=43 // pred_check
                _
              $region57: #{net_tpsgx_forward.2} parent=43 // pred_check_branch
                %334 = sbr.rel (0) target = $region59
              $region58: #{net_tpsgx_forward.2} parent=43 // pred_region
                loop: start=0, step=1, limit=1
                $region60: #{net_tpsgx_forward.2} parent=58 // loop_pre_header
                  _
                $region61: #{net_tpsgx_forward.2} parent=58 // loop_header
                  %s336 = sphi 0, %s340
                  %p337 = scmp.ge.s32.totalorder %s336, 1
                  %s341 = sphi %s285, %s285
                  %s342 = sphi %s280, %s280
                $region62: #{net_tpsgx_forward.2} parent=58 // loop_header_branch
                  %339 = sbr.rel (%p337) target = $region66
                $region63: #{net_tpsgx_forward.2} parent=58 // loop_body
                  _
                $region64: #{net_tpsgx_forward.2} parent=58 // loop_footer
                  %s340 = sadd.s32 1, %s336
                $region65: #{net_tpsgx_forward.2} parent=58 // loop_footer_branch
                  %335 = sbr.rel target = $region61
                $region66: #{net_tpsgx_forward.2} parent=58 // loop_exit
                  _
                loop: start=0, step=1, limit=1
                $region67: #{net_tpsgx_forward.2} parent=58 // loop_pre_header
                  _
                $region68: #{net_tpsgx_forward.2} parent=58 // loop_header
                  %s345 = sphi 0, %s349
                  %p346 = scmp.ge.s32.totalorder %s345, 1
                  %s350 = sphi %s285, %s285
                  %s351 = sphi %s280, %s280
                $region69: #{net_tpsgx_forward.2} parent=58 // loop_header_branch
                  %348 = sbr.rel (%p346) target = $region73
                $region70: #{net_tpsgx_forward.2} parent=58 // loop_body
                  %v352 = vld [vmem:[%s350] sm:$0xf]
                  %353 = vst [vmem:[%s351] sm:$0xf] %v352
                  %v354 = vld [vmem:[%s350 + $0x8] sm:$0xf]
                  %355 = vst [vmem:[%s351 + $0x4] sm:$0xf] %v354
                  %v356 = vld [vmem:[%s350 + $0x10] sm:$0xf]
                  %357 = vst [vmem:[%s351 + $0x8] sm:$0xf] %v356
                  %v358 = vld [vmem:[%s350 + $0x18] sm:$0xf]
                  %359 = vst [vmem:[%s351 + $0xc] sm:$0xf] %v358
                  %v360 = vld [vmem:[%s350 + $0x20] sm:$0xf]
                  %361 = vst [vmem:[%s351 + $0x10] sm:$0xf] %v360
                  %v362 = vld [vmem:[%s350 + $0x28] sm:$0xf]
                  %363 = vst [vmem:[%s351 + $0x14] sm:$0xf] %v362
                  %v364 = vld [vmem:[%s350 + $0x30] sm:$0xf]
                  %365 = vst [vmem:[%s351 + $0x18] sm:$0xf] %v364
                  %v366 = vld [vmem:[%s350 + $0x38] sm:$0xf]
                  %367 = vst [vmem:[%s351 + $0x1c] sm:$0xf] %v366
                  %v368 = vld [vmem:[%s350 + $0x40] sm:$0xf]
                  %369 = vst [vmem:[%s351 + $0x20] sm:$0xf] %v368
                  %v370 = vld [vmem:[%s350 + $0x48] sm:$0xf]
                  %371 = vst [vmem:[%s351 + $0x24] sm:$0xf] %v370
                  %v372 = vld [vmem:[%s350 + $0x50] sm:$0xf]
                  %373 = vst [vmem:[%s351 + $0x28] sm:$0xf] %v372
                  %v374 = vld [vmem:[%s350 + $0x58] sm:$0xf]
                  %375 = vst [vmem:[%s351 + $0x2c] sm:$0xf] %v374
                  %v376 = vld [vmem:[%s350 + $0x60] sm:$0xf]
                  %377 = vst [vmem:[%s351 + $0x30] sm:$0xf] %v376
                  %v378 = vld [vmem:[%s350 + $0x68] sm:$0xf]
                  %379 = vst [vmem:[%s351 + $0x34] sm:$0xf] %v378
                  %v380 = vld [vmem:[%s350 + $0x70] sm:$0xf]
                  %381 = vst [vmem:[%s351 + $0x38] sm:$0xf] %v380
                  %v382 = vld [vmem:[%s350 + $0x78] sm:$0xf]
                  %383 = vst [vmem:[%s351 + $0x3c] sm:$0xf] %v382
                $region71: #{net_tpsgx_forward.2} parent=58 // loop_footer
                  %s349 = sadd.s32 1, %s345
                $region72: #{net_tpsgx_forward.2} parent=58 // loop_footer_branch
                  %344 = sbr.rel target = $region68
                $region73: #{net_tpsgx_forward.2} parent=58 // loop_exit
                  _
              $region59: #{net_tpsgx_forward.2} parent=43 // pred_fallthru
                _
            $region44: #{net_tpsgx_forward.2} parent=39 // pred_fallthru
              _
            // Predicated region
            $region45: #{net_tpsgx_forward.2} parent=39 // pred_check
              _
            $region46: #{net_tpsgx_forward.2} parent=39 // pred_check_branch
              %291 = sbr.rel (0) target = $region48
            $region47: #{net_tpsgx_forward.2} parent=39 // pred_region
              loop: start=0, step=1, limit=1
              $region49: #{net_tpsgx_forward.2} parent=47 // loop_pre_header
                _
              $region50: #{net_tpsgx_forward.2} parent=47 // loop_header
                %s294 = sphi 0, %s298
                %p295 = scmp.ge.s32.totalorder %s294, 1
                %s299 = sphi %s285, %s285
                %s300 = sphi %s280, %s280
              $region51: #{net_tpsgx_forward.2} parent=47 // loop_header_branch
                %297 = sbr.rel (%p295) target = $region55
              $region52: #{net_tpsgx_forward.2} parent=47 // loop_body
                %v301 = vld [vmem:[%s299] sm:$0xf]
                %302 = vst [vmem:[%s300] sm:$0xf] %v301
                %v303 = vld [vmem:[%s299 + $0x8] sm:$0xf]
                %304 = vst [vmem:[%s300 + $0x4] sm:$0xf] %v303
                %v305 = vld [vmem:[%s299 + $0x10] sm:$0xf]
                %306 = vst [vmem:[%s300 + $0x8] sm:$0xf] %v305
                %v307 = vld [vmem:[%s299 + $0x18] sm:$0xf]
                %308 = vst [vmem:[%s300 + $0xc] sm:$0xf] %v307
                %v309 = vld [vmem:[%s299 + $0x20] sm:$0xf]
                %310 = vst [vmem:[%s300 + $0x10] sm:$0xf] %v309
                %v311 = vld [vmem:[%s299 + $0x28] sm:$0xf]
                %312 = vst [vmem:[%s300 + $0x14] sm:$0xf] %v311
                %v313 = vld [vmem:[%s299 + $0x30] sm:$0xf]
                %314 = vst [vmem:[%s300 + $0x18] sm:$0xf] %v313
                %v315 = vld [vmem:[%s299 + $0x38] sm:$0xf]
                %316 = vst [vmem:[%s300 + $0x1c] sm:$0xf] %v315
                %v317 = vld [vmem:[%s299 + $0x40] sm:$0xf]
                %318 = vst [vmem:[%s300 + $0x20] sm:$0xf] %v317
                %v319 = vld [vmem:[%s299 + $0x48] sm:$0xf]
                %320 = vst [vmem:[%s300 + $0x24] sm:$0xf] %v319
                %v321 = vld [vmem:[%s299 + $0x50] sm:$0xf]
                %322 = vst [vmem:[%s300 + $0x28] sm:$0xf] %v321
                %v323 = vld [vmem:[%s299 + $0x58] sm:$0xf]
                %324 = vst [vmem:[%s300 + $0x2c] sm:$0xf] %v323
                %v325 = vld [vmem:[%s299 + $0x60] sm:$0xf]
                %326 = vst [vmem:[%s300 + $0x30] sm:$0xf] %v325
                %v327 = vld [vmem:[%s299 + $0x68] sm:$0xf]
                %328 = vst [vmem:[%s300 + $0x34] sm:$0xf] %v327
                %v329 = vld [vmem:[%s299 + $0x70] sm:$0xf]
                %330 = vst [vmem:[%s300 + $0x38] sm:$0xf] %v329
                %v331 = vld [vmem:[%s299 + $0x78] sm:$0xf]
                %332 = vst [vmem:[%s300 + $0x3c] sm:$0xf] %v331
              $region53: #{net_tpsgx_forward.2} parent=47 // loop_footer
                %s298 = sadd.s32 1, %s294
              $region54: #{net_tpsgx_forward.2} parent=47 // loop_footer_branch
                %293 = sbr.rel target = $region50
              $region55: #{net_tpsgx_forward.2} parent=47 // loop_exit
                _
            $region48: #{net_tpsgx_forward.2} parent=39 // pred_fallthru
              _
          $region40: #{net_tpsgx_forward.2} parent=35 // pred_fallthru
            _
          %384 = vnop
        $region36: #{net_tpsgx_forward.2} parent=31 // pred_fallthru
          _
        // Predicated region
        $region74: #{net_tpsgx_forward.2} parent=31 // pred_check
          %p385 = pneg %p75
        $region75: #{net_tpsgx_forward.2} parent=31 // pred_check_branch
          %387 = sbr.rel (%p385) target = $region77
        $region76: #{net_tpsgx_forward.2} parent=31 // pred_region
          %s388 = smul.u32 16, %s23
          %p389 = scmp.lt.s32.totalorder %s388, 31
          %s390 = scalar_select %p389, %s388, 31
          %s391 = smul.addr %s390, 4
          %s392 = scalar_lea.vmem %s1, %s391
          %s393 = smul.u32 16, %s23
        $region77: #{net_tpsgx_forward.2} parent=31 // pred_fallthru
          _
        // Predicated region
        $region78: #{net_tpsgx_forward.2} parent=31 // pred_check
          %p394 = pneg %p101
        $region79: #{net_tpsgx_forward.2} parent=31 // pred_check_branch
          %396 = sbr.rel (%p394) target = $region81
        $region80: #{net_tpsgx_forward.2} parent=31 // pred_region
          %s397 = smul.u32 16, %s22
          %p398 = scmp.lt.s32.totalorder %s397, 31
          %s399 = scalar_select %p398, %s397, 31
          %s400 = smul.addr %s399, 4
          %s401 = scalar_lea.vmem %s2, %s400
          %s402 = smul.u32 16, %s22
        $region81: #{net_tpsgx_forward.2} parent=31 // pred_fallthru
          _
      $region32: #{net_tpsgx_forward.2} parent=5 // pred_fallthru
        _
      %p403 = scmp.le.s32.totalorder 1, %s15
      %p404 = scmp.lt.s32.totalorder %s15, 5
      %p405 = pnand %p403, %p404
      %p406 = pneg %p405
      // Predicated region
      $region82: #{net_tpsgx_forward.2} parent=5 // pred_check
        _
      $region83: #{net_tpsgx_forward.2} parent=5 // pred_check_branch
        %408 = sbr.rel (%p405) target = $region85
      $region84: #{net_tpsgx_forward.2} parent=5 // pred_region
        %s409 = ssub.s32 %s15, 1
        %s410 = sand.u32 %s42, 1
        %s411 = sand.u32 %s42, 1
        %s412 = smul.addr %s411, 64
        %s413 = scalar_lea.vmem [#allocation3], %s412
        // Predicated region
        $region86: #{net_tpsgx_forward.2} parent=84 // pred_check
          %p414 = pneg %p55
        $region87: #{net_tpsgx_forward.2} parent=84 // pred_check_branch
          %416 = sbr.rel (%p414) target = $region89
        $region88: #{net_tpsgx_forward.2} parent=84 // pred_region
          _
        $region89: #{net_tpsgx_forward.2} parent=84 // pred_fallthru
          _
        %s417 = sand.u32 %s42, 1
        %s418 = sand.u32 %s42, 1
        %s419 = smul.addr %s418, 64
        %s420 = scalar_lea.vmem [#allocation3], %s419
        %p421 = pneg %p55
        %p422 = pneg %p52
        %s423 = smul.u32 16, %s25
        %p424 = scmp.lt.s32.totalorder %s423, 31
        %s425 = scalar_select %p424, %s423, 31
        %s426 = smul.addr %s425, 4
        %s427 = scalar_lea.vmem %s1, %s426
        %p428 = pneg %p81
        %p429 = pneg %p78
        %s430 = smul.u32 16, %s24
        %p431 = scmp.lt.s32.totalorder %s430, 31
        %s432 = scalar_select %p431, %s430, 31
        %s433 = smul.addr %s432, 4
        %s434 = scalar_lea.vmem %s2, %s433
        %p435 = pneg %p107
        %p436 = pneg %p104
        %p437 = pneg %p128
        %p438 = pneg %p125
        %p439 = pneg %p149
        %p440 = pneg %p146
        %p441 = pneg %p170
        %p442 = pneg %p167
        %p443 = pneg %p191
        %p444 = pneg %p188
        %p445 = pneg %p217
        %p446 = pneg %p214
        %s447 = smul.u32 16, %s24
        %p448 = scmp.lt.s32.totalorder %s447, 31
        %s449 = scalar_select %p448, %s447, 31
        %s450 = smul.addr %s449, 8
        %s451 = scalar_lea.vmem %s7, %s450
        %p452 = pneg %p243
        %p453 = pneg %p240
        %s454 = smul.u32 16, %s24
        %p455 = scmp.lt.s32.totalorder %s454, 31
        %s456 = scalar_select %p455, %s454, 31
        %s457 = smul.addr %s456, 4
        %s458 = scalar_lea.vmem %s8, %s457
        %s459 = smul.u32 16, %s24
        %s460 = smul.u32 16, %s25
        %p461 = scmp.lt.s32.totalorder %s460, 31
        %s462 = scalar_select %p461, %s460, 31
        %s463 = smul.addr %s462, 4
        %s464 = scalar_lea.vmem %s1, %s463
        %s465 = smul.u32 16, %s25
        %s466 = smul.u32 16, %s24
        %p467 = scmp.lt.s32.totalorder %s466, 31
        %s468 = scalar_select %p467, %s466, 31
        %s469 = smul.addr %s468, 4
        %s470 = scalar_lea.vmem %s2, %s469
        %s471 = smul.u32 16, %s24
        %s472 = smul.u32 16, %s24
        %p473 = scmp.lt.s32.totalorder %s472, 31
        %s474 = scalar_select %p473, %s472, 31
        %s475 = smul.addr %s474, 8
        %s476 = scalar_lea.vmem %s7, %s475
        %s477 = smul.u32 16, %s24
        %s478 = smul.u32 16, %s24
        %p479 = scmp.lt.s32.totalorder %s478, 31
        %s480 = scalar_select %p479, %s478, 31
        %s481 = smul.addr %s480, 4
        %s482 = scalar_lea.vmem %s8, %s481
        %s483 = smul.u32 16, %s24
        %p485 = scmp.eq.s32.totalorder %s25, 0
        // Predicated region
        $region90: #{net_tpsgx_forward.2} parent=84 // pred_check
          %p486 = pneg %p485
        $region91: #{net_tpsgx_forward.2} parent=84 // pred_check_branch
          %488 = sbr.rel (%p486) target = $region93
        $region92: #{net_tpsgx_forward.2} parent=84 // pred_region
          %vm489 = vcmask 64512
          %490 = vst.msk [vmem:[#allocation2] sm:$0xff] %vm489, 0.0
          %491 = vst.msk [vmem:[#allocation2 + $0x8] sm:$0xff] %vm489, 0.0
          %492 = vst.msk [vmem:[#allocation2 + $0x10] sm:$0xff] %vm489, 0.0
          %493 = vst.msk [vmem:[#allocation2 + $0x18] sm:$0xff] %vm489, 0.0
          %494 = vst.msk [vmem:[#allocation2 + $0x20] sm:$0xff] %vm489, 0.0
          %495 = vst.msk [vmem:[#allocation2 + $0x28] sm:$0xff] %vm489, 0.0
          %496 = vst.msk [vmem:[#allocation2 + $0x30] sm:$0xff] %vm489, 0.0
          %497 = vst.msk [vmem:[#allocation2 + $0x38] sm:$0xff] %vm489, 0.0
          %498 = vst.msk [vmem:[#allocation2 + $0x40] sm:$0xff] %vm489, 0.0
          %499 = vst.msk [vmem:[#allocation2 + $0x48] sm:$0xff] %vm489, 0.0
          %500 = vst.msk [vmem:[#allocation2 + $0x50] sm:$0xff] %vm489, 0.0
          %501 = vst.msk [vmem:[#allocation2 + $0x58] sm:$0xff] %vm489, 0.0
          %502 = vst.msk [vmem:[#allocation2 + $0x60] sm:$0xff] %vm489, 0.0
          %503 = vst.msk [vmem:[#allocation2 + $0x68] sm:$0xff] %vm489, 0.0
          %504 = vst.msk [vmem:[#allocation2 + $0x70] sm:$0xff] %vm489, 0.0
          %505 = vst.msk [vmem:[#allocation2 + $0x78] sm:$0xff] %vm489, 0.0
        $region93: #{net_tpsgx_forward.2} parent=84 // pred_fallthru
          _
        %v506 = vld [vmem:[#allocation2] sm:$0xff]
        %v507 = vld [vmem:[#allocation2 + $0x8] sm:$0xff]
        %v508 = vld [vmem:[#allocation2 + $0x10] sm:$0xff]
        %v509 = vld [vmem:[#allocation2 + $0x18] sm:$0xff]
        %v510 = vld [vmem:[#allocation2 + $0x20] sm:$0xff]
        %v511 = vld [vmem:[#allocation2 + $0x28] sm:$0xff]
        %v512 = vld [vmem:[#allocation2 + $0x30] sm:$0xff]
        %v513 = vld [vmem:[#allocation2 + $0x38] sm:$0xff]
        %v514 = vld [vmem:[#allocation2 + $0x40] sm:$0xff]
        %v515 = vld [vmem:[#allocation2 + $0x48] sm:$0xff]
        %v516 = vld [vmem:[#allocation2 + $0x50] sm:$0xff]
        %v517 = vld [vmem:[#allocation2 + $0x58] sm:$0xff]
        %v518 = vld [vmem:[#allocation2 + $0x60] sm:$0xff]
        %v519 = vld [vmem:[#allocation2 + $0x68] sm:$0xff]
        %v520 = vld [vmem:[#allocation2 + $0x70] sm:$0xff]
        %v521 = vld [vmem:[#allocation2 + $0x78] sm:$0xff]
        %v522 = vld [vmem:[%s413] sm:$0xf]
        %v523 = vld [vmem:[%s413 + $0x4] sm:$0xf]
        %v524 = vld [vmem:[%s413 + $0x8] sm:$0xf]
        %v525 = vld [vmem:[%s413 + $0xc] sm:$0xf]
        %v526 = vld [vmem:[%s413 + $0x10] sm:$0xf]
        %v527 = vld [vmem:[%s413 + $0x14] sm:$0xf]
        %v528 = vld [vmem:[%s413 + $0x18] sm:$0xf]
        %v529 = vld [vmem:[%s413 + $0x1c] sm:$0xf]
        %v530 = vld [vmem:[%s413 + $0x20] sm:$0xf]
        %v531 = vld [vmem:[%s413 + $0x24] sm:$0xf]
        %v532 = vld [vmem:[%s413 + $0x28] sm:$0xf]
        %v533 = vld [vmem:[%s413 + $0x2c] sm:$0xf]
        %v534 = vld [vmem:[%s413 + $0x30] sm:$0xf]
        %v535 = vld [vmem:[%s413 + $0x34] sm:$0xf]
        %v536 = vld [vmem:[%s413 + $0x38] sm:$0xf]
        %v537 = vld [vmem:[%s413 + $0x3c] sm:$0xf]
        %v538 = vld [vmem:[%s464] sm:$0xf]
        %v539 = vld [vmem:[%s464 + $0x4] sm:$0xf]
        %v540 = vld [vmem:[%s464 + $0x8] sm:$0xf]
        %v541 = vld [vmem:[%s464 + $0xc] sm:$0xf]
        %v542 = vld [vmem:[%s464 + $0x10] sm:$0xf]
        %v543 = vld [vmem:[%s464 + $0x14] sm:$0xf]
        %v544 = vld [vmem:[%s464 + $0x18] sm:$0xf]
        %v545 = vld [vmem:[%s464 + $0x1c] sm:$0xf]
        %v546 = vld [vmem:[%s464 + $0x20] sm:$0xf]
        %v547 = vld [vmem:[%s464 + $0x24] sm:$0xf]
        %v548 = vld [vmem:[%s464 + $0x28] sm:$0xf]
        %v549 = vld [vmem:[%s464 + $0x2c] sm:$0xf]
        %v550 = vld [vmem:[%s464 + $0x30] sm:$0xf]
        %v551 = vld [vmem:[%s464 + $0x34] sm:$0xf]
        %v552 = vld [vmem:[%s464 + $0x38] sm:$0xf]
        %v553 = vld [vmem:[%s464 + $0x3c] sm:$0xf]
        %v570 = vunpack.c.l.b16 %v522
        %v571 = vunpack.c.l.b16 %v523
        %v572 = vunpack.c.l.b16 %v524
        %v573 = vunpack.c.l.b16 %v525
        %v574 = vunpack.c.l.b16 %v526
        %v575 = vunpack.c.l.b16 %v527
        %v576 = vunpack.c.l.b16 %v528
        %v577 = vunpack.c.l.b16 %v529
        %v578 = vunpack.c.l.b16 %v530
        %v579 = vunpack.c.l.b16 %v531
        %v580 = vunpack.c.l.b16 %v532
        %v581 = vunpack.c.l.b16 %v533
        %v582 = vunpack.c.l.b16 %v534
        %v583 = vunpack.c.l.b16 %v535
        %v584 = vunpack.c.l.b16 %v536
        %v585 = vunpack.c.l.b16 %v537
        %v586 = vpack.c.b16 %v571, %v570
        %v587 = vpack.c.b16 %v573, %v572
        %v588 = vpack.c.b16 %v575, %v574
        %v589 = vpack.c.b16 %v577, %v576
        %v590 = vpack.c.b16 %v579, %v578
        %v591 = vpack.c.b16 %v581, %v580
        %v592 = vpack.c.b16 %v583, %v582
        %v593 = vpack.c.b16 %v585, %v584
        %v618 = vunpack.c.l.b16 %v538
        %v619 = vunpack.c.l.b16 %v539
        %v620 = vunpack.c.l.b16 %v540
        %v621 = vunpack.c.l.b16 %v541
        %v622 = vunpack.c.l.b16 %v542
        %v623 = vunpack.c.l.b16 %v543
        %v624 = vunpack.c.l.b16 %v544
        %v625 = vunpack.c.l.b16 %v545
        %v626 = vunpack.c.l.b16 %v546
        %v627 = vunpack.c.l.b16 %v547
        %v628 = vunpack.c.l.b16 %v548
        %v629 = vunpack.c.l.b16 %v549
        %v630 = vunpack.c.l.b16 %v550
        %v631 = vunpack.c.l.b16 %v551
        %v632 = vunpack.c.l.b16 %v552
        %v633 = vunpack.c.l.b16 %v553
        %v634 = vpack.c.b16 %v619, %v618
        %v635 = vpack.c.b16 %v621, %v620
        %v636 = vpack.c.b16 %v623, %v622
        %v637 = vpack.c.b16 %v625, %v624
        %v638 = vpack.c.b16 %v627, %v626
        %v639 = vpack.c.b16 %v629, %v628
        %v640 = vpack.c.b16 %v631, %v630
        %v641 = vpack.c.b16 %v633, %v632
        %650 = vmatprep.subr.bf16.mxu0 0
        %651 = vmatpush1.bf16.msra.mxu0 %v634
        %652 = vmatprep.subr.bf16.mxu0 0
        %653 = vmatpush1.bf16.msra.mxu0 %v635
        %654 = vmatprep.subr.bf16.mxu0 0
        %655 = vmatpush1.bf16.msra.mxu0 %v636
        %656 = vmatprep.subr.bf16.mxu0 0
        %657 = vmatpush1.bf16.msra.mxu0 %v637
        %658 = vmatprep.subr.bf16.mxu0 0
        %659 = vmatpush1.bf16.msra.mxu0 %v638
        %660 = vmatprep.subr.bf16.mxu0 0
        %661 = vmatpush1.bf16.msra.mxu0 %v639
        %662 = vmatprep.subr.bf16.mxu0 0
        %663 = vmatpush1.bf16.msra.mxu0 %v640
        %664 = vmatprep.subr.bf16.mxu0 0
        %665 = vmatpush1.bf16.msra.mxu0 %v641
        %666 = vmatprep.subr.bf16.mxu0 0
        %667 = vmatpush1.bf16.msra.mxu0 0
        %668 = vmatprep.subr.bf16.mxu0 0
        %669 = vmatpush1.bf16.msra.mxu0 0
        %670 = vmatprep.subr.bf16.mxu0 0
        %671 = vmatpush1.bf16.msra.mxu0 0
        %672 = vmatprep.subr.bf16.mxu0 0
        %673 = vmatpush1.bf16.msra.mxu0 0
        %674 = vmatprep.subr.bf16.mxu0 0
        %675 = vmatpush1.bf16.msra.mxu0 0
        %676 = vmatprep.subr.bf16.mxu0 0
        %677 = vmatpush1.bf16.msra.mxu0 0
        %678 = vmatprep.subr.bf16.mxu0 0
        %679 = vmatpush1.bf16.msra.mxu0 0
        %680 = vmatprep.subr.bf16.mxu0 0
        %681 = vmatpush1.bf16.msra.mxu0 0
        %682 = vmatprep.mubr.bf16.mxu0 0
        %683 = vmatmul.mubr.bf16.gmra.mrb[0].mxu0 %v586
        %v684 = vpop.f32.mrb[0].mxu0
        %v685 = vadd.f32 0.0, %v684
        %v686 = vpop.f32.mrb[0].mxu0
        %v687 = vpop.f32.mrb[0].mxu0
        %v688 = vadd.f32 0.0, %v687
        %v689 = vpop.f32.mrb[0].mxu0
        %690 = vmatprep.mubr.bf16.mxu0 0
        %691 = vmatmul.mubr.bf16.gmra.mrb[0].mxu0 %v587
        %v692 = vpop.f32.mrb[0].mxu0
        %v693 = vadd.f32 0.0, %v692
        %v694 = vpop.f32.mrb[0].mxu0
        %v695 = vpop.f32.mrb[0].mxu0
        %v696 = vadd.f32 0.0, %v695
        %v697 = vpop.f32.mrb[0].mxu0
        %698 = vmatprep.mubr.bf16.mxu0 0
        %699 = vmatmul.mubr.bf16.gmra.mrb[0].mxu0 %v588
        %v700 = vpop.f32.mrb[0].mxu0
        %v701 = vadd.f32 0.0, %v700
        %v702 = vpop.f32.mrb[0].mxu0
        %v703 = vpop.f32.mrb[0].mxu0
        %v704 = vadd.f32 0.0, %v703
        %v705 = vpop.f32.mrb[0].mxu0
        %706 = vmatprep.mubr.bf16.mxu0 0
        %707 = vmatmul.mubr.bf16.gmra.mrb[0].mxu0 %v589
        %v708 = vpop.f32.mrb[0].mxu0
        %v709 = vadd.f32 0.0, %v708
        %v710 = vpop.f32.mrb[0].mxu0
        %v711 = vpop.f32.mrb[0].mxu0
        %v712 = vadd.f32 0.0, %v711
        %v713 = vpop.f32.mrb[0].mxu0
        %714 = vmatprep.mubr.bf16.mxu0 0
        %715 = vmatmul.mubr.bf16.gmra.mrb[0].mxu0 %v590
        %v716 = vpop.f32.mrb[0].mxu0
        %v717 = vadd.f32 0.0, %v716
        %v718 = vpop.f32.mrb[0].mxu0
        %v719 = vpop.f32.mrb[0].mxu0
        %v720 = vadd.f32 0.0, %v719
        %v721 = vpop.f32.mrb[0].mxu0
        %722 = vmatprep.mubr.bf16.mxu0 0
        %723 = vmatmul.mubr.bf16.gmra.mrb[0].mxu0 %v591
        %v724 = vpop.f32.mrb[0].mxu0
        %v725 = vadd.f32 0.0, %v724
        %v726 = vpop.f32.mrb[0].mxu0
        %v727 = vpop.f32.mrb[0].mxu0
        %v728 = vadd.f32 0.0, %v727
        %v729 = vpop.f32.mrb[0].mxu0
        %730 = vmatprep.mubr.bf16.mxu0 0
        %731 = vmatmul.mubr.bf16.gmra.mrb[0].mxu0 %v592
        %v732 = vpop.f32.mrb[0].mxu0
        %v733 = vadd.f32 0.0, %v732
        %v734 = vpop.f32.mrb[0].mxu0
        %v735 = vpop.f32.mrb[0].mxu0
        %v736 = vadd.f32 0.0, %v735
        %v737 = vpop.f32.mrb[0].mxu0
        %738 = vmatprep.mubr.bf16.mxu0 0
        %739 = vmatmul.mubr.bf16.gmra.mrb[0].mxu0 %v593
        %v740 = vpop.f32.mrb[0].mxu0
        %v741 = vadd.f32 0.0, %v740
        %v742 = vpop.f32.mrb[0].mxu0
        %v743 = vpop.f32.mrb[0].mxu0
        %v744 = vadd.f32 0.0, %v743
        %v745 = vpop.f32.mrb[0].mxu0
        %746 = vdwg.mxu0
        %v747 = vadd.f32 %v506, %v685
        %v748 = vadd.f32 %v507, %v688
        %v749 = vadd.f32 %v508, %v693
        %v750 = vadd.f32 %v509, %v696
        %v751 = vadd.f32 %v510, %v701
        %v752 = vadd.f32 %v511, %v704
        %v753 = vadd.f32 %v512, %v709
        %v754 = vadd.f32 %v513, %v712
        %v755 = vadd.f32 %v514, %v717
        %v756 = vadd.f32 %v515, %v720
        %v757 = vadd.f32 %v516, %v725
        %v758 = vadd.f32 %v517, %v728
        %v759 = vadd.f32 %v518, %v733
        %v760 = vadd.f32 %v519, %v736
        %v761 = vadd.f32 %v520, %v741
        %v762 = vadd.f32 %v521, %v744
        %vm763 = vcmask 64512
        %764 = vst.msk [vmem:[#allocation2] sm:$0xff] %vm763, %v747
        %765 = vst.msk [vmem:[#allocation2 + $0x8] sm:$0xff] %vm763, %v748
        %766 = vst.msk [vmem:[#allocation2 + $0x10] sm:$0xff] %vm763, %v749
        %767 = vst.msk [vmem:[#allocation2 + $0x18] sm:$0xff] %vm763, %v750
        %768 = vst.msk [vmem:[#allocation2 + $0x20] sm:$0xff] %vm763, %v751
        %769 = vst.msk [vmem:[#allocation2 + $0x28] sm:$0xff] %vm763, %v752
        %770 = vst.msk [vmem:[#allocation2 + $0x30] sm:$0xff] %vm763, %v753
        %771 = vst.msk [vmem:[#allocation2 + $0x38] sm:$0xff] %vm763, %v754
        %772 = vst.msk [vmem:[#allocation2 + $0x40] sm:$0xff] %vm763, %v755
        %773 = vst.msk [vmem:[#allocation2 + $0x48] sm:$0xff] %vm763, %v756
        %774 = vst.msk [vmem:[#allocation2 + $0x50] sm:$0xff] %vm763, %v757
        %775 = vst.msk [vmem:[#allocation2 + $0x58] sm:$0xff] %vm763, %v758
        %776 = vst.msk [vmem:[#allocation2 + $0x60] sm:$0xff] %vm763, %v759
        %777 = vst.msk [vmem:[#allocation2 + $0x68] sm:$0xff] %vm763, %v760
        %778 = vst.msk [vmem:[#allocation2 + $0x70] sm:$0xff] %vm763, %v761
        %779 = vst.msk [vmem:[#allocation2 + $0x78] sm:$0xff] %vm763, %v762
        %p780 = scmp.eq.s32.totalorder %s25, 1
        // Predicated region
        $region94: #{net_tpsgx_forward.2} parent=84 // pred_check
          %p781 = pneg %p780
        $region95: #{net_tpsgx_forward.2} parent=84 // pred_check_branch
          %783 = sbr.rel (%p781) target = $region97
        $region96: #{net_tpsgx_forward.2} parent=84 // pred_region
          %v784 = vld [vmem:[#allocation2] sm:$0xff]
          %v785 = vld [vmem:[#allocation2 + $0x8] sm:$0xff]
          %v786 = vld [vmem:[#allocation2 + $0x10] sm:$0xff]
          %v787 = vld [vmem:[#allocation2 + $0x18] sm:$0xff]
          %v788 = vld [vmem:[#allocation2 + $0x20] sm:$0xff]
          %v789 = vld [vmem:[#allocation2 + $0x28] sm:$0xff]
          %v790 = vld [vmem:[#allocation2 + $0x30] sm:$0xff]
          %v791 = vld [vmem:[#allocation2 + $0x38] sm:$0xff]
          %v792 = vld [vmem:[#allocation2 + $0x40] sm:$0xff]
          %v793 = vld [vmem:[#allocation2 + $0x48] sm:$0xff]
          %v794 = vld [vmem:[#allocation2 + $0x50] sm:$0xff]
          %v795 = vld [vmem:[#allocation2 + $0x58] sm:$0xff]
          %v796 = vld [vmem:[#allocation2 + $0x60] sm:$0xff]
          %v797 = vld [vmem:[#allocation2 + $0x68] sm:$0xff]
          %v798 = vld [vmem:[#allocation2 + $0x70] sm:$0xff]
          %v799 = vld [vmem:[#allocation2 + $0x78] sm:$0xff]
          %v800 = vld [vmem:[%s470] sm:$0xf]
          %v801 = vld [vmem:[%s470 + $0x4] sm:$0xf]
          %v802 = vld [vmem:[%s470 + $0x8] sm:$0xf]
          %v803 = vld [vmem:[%s470 + $0xc] sm:$0xf]
          %v804 = vld [vmem:[%s470 + $0x10] sm:$0xf]
          %v805 = vld [vmem:[%s470 + $0x14] sm:$0xf]
          %v806 = vld [vmem:[%s470 + $0x18] sm:$0xf]
          %v807 = vld [vmem:[%s470 + $0x1c] sm:$0xf]
          %v808 = vld [vmem:[%s470 + $0x20] sm:$0xf]
          %v809 = vld [vmem:[%s470 + $0x24] sm:$0xf]
          %v810 = vld [vmem:[%s470 + $0x28] sm:$0xf]
          %v811 = vld [vmem:[%s470 + $0x2c] sm:$0xf]
          %v812 = vld [vmem:[%s470 + $0x30] sm:$0xf]
          %v813 = vld [vmem:[%s470 + $0x34] sm:$0xf]
          %v814 = vld [vmem:[%s470 + $0x38] sm:$0xf]
          %v815 = vld [vmem:[%s470 + $0x3c] sm:$0xf]
          %v816 = vunpack.c.l.bf16 %v800
          %v817 = vunpack.c.l.bf16 %v801
          %v818 = vunpack.c.l.bf16 %v802
          %v819 = vunpack.c.l.bf16 %v803
          %v820 = vunpack.c.l.bf16 %v804
          %v821 = vunpack.c.l.bf16 %v805
          %v822 = vunpack.c.l.bf16 %v806
          %v823 = vunpack.c.l.bf16 %v807
          %v824 = vunpack.c.l.bf16 %v808
          %v825 = vunpack.c.l.bf16 %v809
          %v826 = vunpack.c.l.bf16 %v810
          %v827 = vunpack.c.l.bf16 %v811
          %v828 = vunpack.c.l.bf16 %v812
          %v829 = vunpack.c.l.bf16 %v813
          %v830 = vunpack.c.l.bf16 %v814
          %v831 = vunpack.c.l.bf16 %v815
          %v832 = vld [vmem:[%s3] sm:$0xff]
          %v833 = vld [vmem:[%s4] sm:$0xff]
          %v835 = vsel %vm763, %v816, 0
          %v838 = vsel %vm763, %v817, 0
          %v841 = vsel %vm763, %v818, 0
          %v844 = vsel %vm763, %v819, 0
          %v847 = vsel %vm763, %v820, 0
          %v850 = vsel %vm763, %v821, 0
          %v853 = vsel %vm763, %v822, 0
          %v856 = vsel %vm763, %v823, 0
          %v859 = vsel %vm763, %v824, 0
          %v862 = vsel %vm763, %v825, 0
          %v865 = vsel %vm763, %v826, 0
          %v868 = vsel %vm763, %v827, 0
          %v871 = vsel %vm763, %v828, 0
          %v874 = vsel %vm763, %v829, 0
          %v877 = vsel %vm763, %v830, 0
          %v880 = vsel %vm763, %v831, 0
          %882 = vmatprep.subr.mxu0 0.0
          %883 = vmatpush1.msra.mxu0 %v833
          %884 = vmatprep.subr.mxu0 0.0
          %885 = vmatpush1.msra.mxu0 0.0
          %886 = vmatprep.subr.mxu0 0.0
          %887 = vmatpush1.msra.mxu0 0.0
          %888 = vmatprep.subr.mxu0 0.0
          %889 = vmatpush1.msra.mxu0 0.0
          %890 = vmatprep.subr.mxu0 0.0
          %891 = vmatpush1.msra.mxu0 0.0
          %892 = vmatprep.subr.mxu0 0.0
          %893 = vmatpush1.msra.mxu0 0.0
          %894 = vmatprep.subr.mxu0 0.0
          %895 = vmatpush1.msra.mxu0 0.0
          %896 = vmatprep.subr.mxu0 0.0
          %897 = vmatpush1.msra.mxu0 0.0
          %898 = vmatprep.subr.mxu0 0.0
          %899 = vmatpush1.msra.mxu0 0.0
          %900 = vmatprep.subr.mxu0 0.0
          %901 = vmatpush1.msra.mxu0 0.0
          %902 = vmatprep.subr.mxu0 0.0
          %903 = vmatpush1.msra.mxu0 0.0
          %904 = vmatprep.subr.mxu0 0.0
          %905 = vmatpush1.msra.mxu0 0.0
          %906 = vmatprep.subr.mxu0 0.0
          %907 = vmatpush1.msra.mxu0 0.0
          %908 = vmatprep.subr.mxu0 0.0
          %909 = vmatpush1.msra.mxu0 0.0
          %910 = vmatprep.subr.mxu0 0.0
          %911 = vmatpush1.msra.mxu0 0.0
          %912 = vmatprep.subr.mxu0 0.0
          %913 = vmatpush1.msra.mxu0 0.0
          %914 = vmatprep.subr.mxu0 0.0
          %915 = vmatpush1.msra.mxu0 0.0
          %916 = vmatprep.subr.mxu0 0.0
          %917 = vmatpush1.msra.mxu0 0.0
          %918 = vmatprep.subr.mxu0 0.0
          %919 = vmatpush1.msra.mxu0 0.0
          %920 = vmatprep.subr.mxu0 0.0
          %921 = vmatpush1.msra.mxu0 0.0
          %922 = vmatprep.subr.mxu0 0.0
          %923 = vmatpush1.msra.mxu0 0.0
          %924 = vmatprep.subr.mxu0 0.0
          %925 = vmatpush1.msra.mxu0 0.0
          %926 = vmatprep.subr.mxu0 0.0
          %927 = vmatpush1.msra.mxu0 0.0
          %928 = vmatprep.subr.mxu0 0.0
          %929 = vmatpush1.msra.mxu0 0.0
          %930 = vmatprep.subr.mxu0 0.0
          %931 = vmatpush1.msra.mxu0 0.0
          %932 = vmatprep.subr.mxu0 0.0
          %933 = vmatpush1.msra.mxu0 0.0
          %934 = vmatprep.subr.mxu0 0.0
          %935 = vmatpush1.msra.mxu0 0.0
          %936 = vmatprep.subr.mxu0 0.0
          %937 = vmatpush1.msra.mxu0 0.0
          %938 = vmatprep.subr.mxu0 0.0
          %939 = vmatpush1.msra.mxu0 0.0
          %940 = vmatprep.subr.mxu0 0.0
          %941 = vmatpush1.msra.mxu0 0.0
          %942 = vmatprep.subr.mxu0 0.0
          %943 = vmatpush1.msra.mxu0 0.0
          %944 = vmatprep.subr.mxu0 0.0
          %945 = vmatpush1.msra.mxu0 0.0
          %946 = vmatprep.mubr.f32.mxu0 0.0
          %947 = vmatmul.mubr.f32.gmra.mrb[0].mxu0 %v835
          %v948 = vpop.f32.mrb[0].mxu0
          %v949 = vadd.f32 0.0, %v948
          %v950 = vpop.f32.mrb[0].mxu0
          %951 = vmatprep.mubr.f32.mxu0 0.0
          %952 = vmatmul.mubr.f32.gmra.mrb[0].mxu0 %v838
          %v953 = vpop.f32.mrb[0].mxu0
          %v954 = vadd.f32 0.0, %v953
          %v955 = vpop.f32.mrb[0].mxu0
          %956 = vmatprep.mubr.f32.mxu0 0.0
          %957 = vmatmul.mubr.f32.gmra.mrb[0].mxu0 %v841
          %v958 = vpop.f32.mrb[0].mxu0
          %v959 = vadd.f32 0.0, %v958
          %v960 = vpop.f32.mrb[0].mxu0
          %961 = vmatprep.mubr.f32.mxu0 0.0
          %962 = vmatmul.mubr.f32.gmra.mrb[0].mxu0 %v844
          %v963 = vpop.f32.mrb[0].mxu0
          %v964 = vadd.f32 0.0, %v963
          %v965 = vpop.f32.mrb[0].mxu0
          %966 = vmatprep.mubr.f32.mxu0 0.0
          %967 = vmatmul.mubr.f32.gmra.mrb[0].mxu0 %v847
          %v968 = vpop.f32.mrb[0].mxu0
          %v969 = vadd.f32 0.0, %v968
          %v970 = vpop.f32.mrb[0].mxu0
          %971 = vmatprep.mubr.f32.mxu0 0.0
          %972 = vmatmul.mubr.f32.gmra.mrb[0].mxu0 %v850
          %v973 = vpop.f32.mrb[0].mxu0
          %v974 = vadd.f32 0.0, %v973
          %v975 = vpop.f32.mrb[0].mxu0
          %976 = vmatprep.mubr.f32.mxu0 0.0
          %977 = vmatmul.mubr.f32.gmra.mrb[0].mxu0 %v853
          %v978 = vpop.f32.mrb[0].mxu0
          %v979 = vadd.f32 0.0, %v978
          %v980 = vpop.f32.mrb[0].mxu0
          %981 = vmatprep.mubr.f32.mxu0 0.0
          %982 = vmatmul.mubr.f32.gmra.mrb[0].mxu0 %v856
          %v983 = vpop.f32.mrb[0].mxu0
          %v984 = vadd.f32 0.0, %v983
          %v985 = vpop.f32.mrb[0].mxu0
          %986 = vmatprep.mubr.f32.mxu0 0.0
          %987 = vmatmul.mubr.f32.gmra.mrb[0].mxu0 %v859
          %v988 = vpop.f32.mrb[0].mxu0
          %v989 = vadd.f32 0.0, %v988
          %v990 = vpop.f32.mrb[0].mxu0
          %991 = vmatprep.mubr.f32.mxu0 0.0
          %992 = vmatmul.mubr.f32.gmra.mrb[0].mxu0 %v862
          %v993 = vpop.f32.mrb[0].mxu0
          %v994 = vadd.f32 0.0, %v993
          %v995 = vpop.f32.mrb[0].mxu0
          %996 = vmatprep.mubr.f32.mxu0 0.0
          %997 = vmatmul.mubr.f32.gmra.mrb[0].mxu0 %v865
          %v998 = vpop.f32.mrb[0].mxu0
          %v999 = vadd.f32 0.0, %v998
          %v1000 = vpop.f32.mrb[0].mxu0
          %1001 = vmatprep.mubr.f32.mxu0 0.0
          %1002 = vmatmul.mubr.f32.gmra.mrb[0].mxu0 %v868
          %v1003 = vpop.f32.mrb[0].mxu0
          %v1004 = vadd.f32 0.0, %v1003
          %v1005 = vpop.f32.mrb[0].mxu0
          %1006 = vmatprep.mubr.f32.mxu0 0.0
          %1007 = vmatmul.mubr.f32.gmra.mrb[0].mxu0 %v871
          %v1008 = vpop.f32.mrb[0].mxu0
          %v1009 = vadd.f32 0.0, %v1008
          %v1010 = vpop.f32.mrb[0].mxu0
          %1011 = vmatprep.mubr.f32.mxu0 0.0
          %1012 = vmatmul.mubr.f32.gmra.mrb[0].mxu0 %v874
          %v1013 = vpop.f32.mrb[0].mxu0
          %v1014 = vadd.f32 0.0, %v1013
          %v1015 = vpop.f32.mrb[0].mxu0
          %1016 = vmatprep.mubr.f32.mxu0 0.0
          %1017 = vmatmul.mubr.f32.gmra.mrb[0].mxu0 %v877
          %v1018 = vpop.f32.mrb[0].mxu0
          %v1019 = vadd.f32 0.0, %v1018
          %v1020 = vpop.f32.mrb[0].mxu0
          %1021 = vmatprep.mubr.f32.mxu0 0.0
          %1022 = vmatmul.mubr.f32.gmra.mrb[0].mxu0 %v880
          %v1023 = vpop.f32.mrb[0].mxu0
          %v1024 = vadd.f32 0.0, %v1023
          %v1025 = vpop.f32.mrb[0].mxu0
          %1026 = vdwg.mxu0
          %v1028 = vsel %vm763, %v784, 0
          %v1031 = vsel %vm763, %v785, 0
          %v1034 = vsel %vm763, %v786, 0
          %v1037 = vsel %vm763, %v787, 0
          %v1040 = vsel %vm763, %v788, 0
          %v1043 = vsel %vm763, %v789, 0
          %v1046 = vsel %vm763, %v790, 0
          %v1049 = vsel %vm763, %v791, 0
          %v1052 = vsel %vm763, %v792, 0
          %v1055 = vsel %vm763, %v793, 0
          %v1058 = vsel %vm763, %v794, 0
          %v1061 = vsel %vm763, %v795, 0
          %v1064 = vsel %vm763, %v796, 0
          %v1067 = vsel %vm763, %v797, 0
          %v1070 = vsel %vm763, %v798, 0
          %v1073 = vsel %vm763, %v799, 0
          %1075 = vmatprep.subr.mxu0 0.0
          %1076 = vmatpush1.msra.mxu0 %v832
          %1077 = vmatprep.subr.mxu0 0.0
          %1078 = vmatpush1.msra.mxu0 0.0
          %1079 = vmatprep.subr.mxu0 0.0
          %1080 = vmatpush1.msra.mxu0 0.0
          %1081 = vmatprep.subr.mxu0 0.0
          %1082 = vmatpush1.msra.mxu0 0.0
          %1083 = vmatprep.subr.mxu0 0.0
          %1084 = vmatpush1.msra.mxu0 0.0
          %1085 = vmatprep.subr.mxu0 0.0
          %1086 = vmatpush1.msra.mxu0 0.0
          %1087 = vmatprep.subr.mxu0 0.0
          %1088 = vmatpush1.msra.mxu0 0.0
          %1089 = vmatprep.subr.mxu0 0.0
          %1090 = vmatpush1.msra.mxu0 0.0
          %1091 = vmatprep.subr.mxu0 0.0
          %1092 = vmatpush1.msra.mxu0 0.0
          %1093 = vmatprep.subr.mxu0 0.0
          %1094 = vmatpush1.msra.mxu0 0.0
          %1095 = vmatprep.subr.mxu0 0.0
          %1096 = vmatpush1.msra.mxu0 0.0
          %1097 = vmatprep.subr.mxu0 0.0
          %1098 = vmatpush1.msra.mxu0 0.0
          %1099 = vmatprep.subr.mxu0 0.0
          %1100 = vmatpush1.msra.mxu0 0.0
          %1101 = vmatprep.subr.mxu0 0.0
          %1102 = vmatpush1.msra.mxu0 0.0
          %1103 = vmatprep.subr.mxu0 0.0
          %1104 = vmatpush1.msra.mxu0 0.0
          %1105 = vmatprep.subr.mxu0 0.0
          %1106 = vmatpush1.msra.mxu0 0.0
          %1107 = vmatprep.subr.mxu0 0.0
          %1108 = vmatpush1.msra.mxu0 0.0
          %1109 = vmatprep.subr.mxu0 0.0
          %1110 = vmatpush1.msra.mxu0 0.0
          %1111 = vmatprep.subr.mxu0 0.0
          %1112 = vmatpush1.msra.mxu0 0.0
          %1113 = vmatprep.subr.mxu0 0.0
          %1114 = vmatpush1.msra.mxu0 0.0
          %1115 = vmatprep.subr.mxu0 0.0
          %1116 = vmatpush1.msra.mxu0 0.0
          %1117 = vmatprep.subr.mxu0 0.0
          %1118 = vmatpush1.msra.mxu0 0.0
          %1119 = vmatprep.subr.mxu0 0.0
          %1120 = vmatpush1.msra.mxu0 0.0
          %1121 = vmatprep.subr.mxu0 0.0
          %1122 = vmatpush1.msra.mxu0 0.0
          %1123 = vmatprep.subr.mxu0 0.0
          %1124 = vmatpush1.msra.mxu0 0.0
          %1125 = vmatprep.subr.mxu0 0.0
          %1126 = vmatpush1.msra.mxu0 0.0
          %1127 = vmatprep.subr.mxu0 0.0
          %1128 = vmatpush1.msra.mxu0 0.0
          %1129 = vmatprep.subr.mxu0 0.0
          %1130 = vmatpush1.msra.mxu0 0.0
          %1131 = vmatprep.subr.mxu0 0.0
          %1132 = vmatpush1.msra.mxu0 0.0
          %1133 = vmatprep.subr.mxu0 0.0
          %1134 = vmatpush1.msra.mxu0 0.0
          %1135 = vmatprep.subr.mxu0 0.0
          %1136 = vmatpush1.msra.mxu0 0.0
          %1137 = vmatprep.subr.mxu0 0.0
          %1138 = vmatpush1.msra.mxu0 0.0
          %1139 = vmatprep.mubr.f32.mxu0 0.0
          %1140 = vmatmul.mubr.f32.gmra.mrb[0].mxu0 %v1028
          %v1141 = vpop.f32.mrb[0].mxu0
          %v1142 = vadd.f32 %v949, %v1141
          %v1143 = vpop.f32.mrb[0].mxu0
          %1144 = vmatprep.mubr.f32.mxu0 0.0
          %1145 = vmatmul.mubr.f32.gmra.mrb[0].mxu0 %v1031
          %v1146 = vpop.f32.mrb[0].mxu0
          %v1147 = vadd.f32 %v954, %v1146
          %v1148 = vpop.f32.mrb[0].mxu0
          %1149 = vmatprep.mubr.f32.mxu0 0.0
          %1150 = vmatmul.mubr.f32.gmra.mrb[0].mxu0 %v1034
          %v1151 = vpop.f32.mrb[0].mxu0
          %v1152 = vadd.f32 %v959, %v1151
          %v1153 = vpop.f32.mrb[0].mxu0
          %1154 = vmatprep.mubr.f32.mxu0 0.0
          %1155 = vmatmul.mubr.f32.gmra.mrb[0].mxu0 %v1037
          %v1156 = vpop.f32.mrb[0].mxu0
          %v1157 = vadd.f32 %v964, %v1156
          %v1158 = vpop.f32.mrb[0].mxu0
          %1159 = vmatprep.mubr.f32.mxu0 0.0
          %1160 = vmatmul.mubr.f32.gmra.mrb[0].mxu0 %v1040
          %v1161 = vpop.f32.mrb[0].mxu0
          %v1162 = vadd.f32 %v969, %v1161
          %v1163 = vpop.f32.mrb[0].mxu0
          %1164 = vmatprep.mubr.f32.mxu0 0.0
          %1165 = vmatmul.mubr.f32.gmra.mrb[0].mxu0 %v1043
          %v1166 = vpop.f32.mrb[0].mxu0
          %v1167 = vadd.f32 %v974, %v1166
          %v1168 = vpop.f32.mrb[0].mxu0
          %1169 = vmatprep.mubr.f32.mxu0 0.0
          %1170 = vmatmul.mubr.f32.gmra.mrb[0].mxu0 %v1046
          %v1171 = vpop.f32.mrb[0].mxu0
          %v1172 = vadd.f32 %v979, %v1171
          %v1173 = vpop.f32.mrb[0].mxu0
          %1174 = vmatprep.mubr.f32.mxu0 0.0
          %1175 = vmatmul.mubr.f32.gmra.mrb[0].mxu0 %v1049
          %v1176 = vpop.f32.mrb[0].mxu0
          %v1177 = vadd.f32 %v984, %v1176
          %v1178 = vpop.f32.mrb[0].mxu0
          %1179 = vmatprep.mubr.f32.mxu0 0.0
          %1180 = vmatmul.mubr.f32.gmra.mrb[0].mxu0 %v1052
          %v1181 = vpop.f32.mrb[0].mxu0
          %v1182 = vadd.f32 %v989, %v1181
          %v1183 = vpop.f32.mrb[0].mxu0
          %1184 = vmatprep.mubr.f32.mxu0 0.0
          %1185 = vmatmul.mubr.f32.gmra.mrb[0].mxu0 %v1055
          %v1186 = vpop.f32.mrb[0].mxu0
          %v1187 = vadd.f32 %v994, %v1186
          %v1188 = vpop.f32.mrb[0].mxu0
          %1189 = vmatprep.mubr.f32.mxu0 0.0
          %1190 = vmatmul.mubr.f32.gmra.mrb[0].mxu0 %v1058
          %v1191 = vpop.f32.mrb[0].mxu0
          %v1192 = vadd.f32 %v999, %v1191
          %v1193 = vpop.f32.mrb[0].mxu0
          %1194 = vmatprep.mubr.f32.mxu0 0.0
          %1195 = vmatmul.mubr.f32.gmra.mrb[0].mxu0 %v1061
          %v1196 = vpop.f32.mrb[0].mxu0
          %v1197 = vadd.f32 %v1004, %v1196
          %v1198 = vpop.f32.mrb[0].mxu0
          %1199 = vmatprep.mubr.f32.mxu0 0.0
          %1200 = vmatmul.mubr.f32.gmra.mrb[0].mxu0 %v1064
          %v1201 = vpop.f32.mrb[0].mxu0
          %v1202 = vadd.f32 %v1009, %v1201
          %v1203 = vpop.f32.mrb[0].mxu0
          %1204 = vmatprep.mubr.f32.mxu0 0.0
          %1205 = vmatmul.mubr.f32.gmra.mrb[0].mxu0 %v1067
          %v1206 = vpop.f32.mrb[0].mxu0
          %v1207 = vadd.f32 %v1014, %v1206
          %v1208 = vpop.f32.mrb[0].mxu0
          %1209 = vmatprep.mubr.f32.mxu0 0.0
          %1210 = vmatmul.mubr.f32.gmra.mrb[0].mxu0 %v1070
          %v1211 = vpop.f32.mrb[0].mxu0
          %v1212 = vadd.f32 %v1019, %v1211
          %v1213 = vpop.f32.mrb[0].mxu0
          %1214 = vmatprep.mubr.f32.mxu0 0.0
          %1215 = vmatmul.mubr.f32.gmra.mrb[0].mxu0 %v1073
          %v1216 = vpop.f32.mrb[0].mxu0
          %v1217 = vadd.f32 %v1024, %v1216
          %v1218 = vpop.f32.mrb[0].mxu0
          %1219 = vdwg.mxu0
          %v1220 = vld [vmem:[%s5] sm:$0x1]
          %v1222 = vlaneseq
          %v1223 = vshrl.u32 %v1222, 7
          %v1224 = vsub.s32 0, %v1223
          %v1225 = vrot.slane %v1220, %v1224
          %v1227 = vadd.f32 %v1142, %v1225
          %v1228 = vadd.f32 %v1147, %v1225
          %v1229 = vadd.f32 %v1152, %v1225
          %v1230 = vadd.f32 %v1157, %v1225
          %v1231 = vadd.f32 %v1162, %v1225
          %v1232 = vadd.f32 %v1167, %v1225
          %v1233 = vadd.f32 %v1172, %v1225
          %v1234 = vadd.f32 %v1177, %v1225
          %v1235 = vadd.f32 %v1182, %v1225
          %v1236 = vadd.f32 %v1187, %v1225
          %v1237 = vadd.f32 %v1192, %v1225
          %v1238 = vadd.f32 %v1197, %v1225
          %v1239 = vadd.f32 %v1202, %v1225
          %v1240 = vadd.f32 %v1207, %v1225
          %v1241 = vadd.f32 %v1212, %v1225
          %v1242 = vadd.f32 %v1217, %v1225
          %v1243 = vmul.f32 %v1227, %v1227
          %v1244 = vmul.f32 %v1228, %v1228
          %v1245 = vmul.f32 %v1229, %v1229
          %v1246 = vmul.f32 %v1230, %v1230
          %v1247 = vmul.f32 %v1231, %v1231
          %v1248 = vmul.f32 %v1232, %v1232
          %v1249 = vmul.f32 %v1233, %v1233
          %v1250 = vmul.f32 %v1234, %v1234
          %v1251 = vmul.f32 %v1235, %v1235
          %v1252 = vmul.f32 %v1236, %v1236
          %v1253 = vmul.f32 %v1237, %v1237
          %v1254 = vmul.f32 %v1238, %v1238
          %v1255 = vmul.f32 %v1239, %v1239
          %v1256 = vmul.f32 %v1240, %v1240
          %v1257 = vmul.f32 %v1241, %v1241
          %v1258 = vmul.f32 %v1242, %v1242
          %vm1259 = vcmask 130048
          %v1260 = vsel %vm1259, %v1243, 0.0
          %1261 = vadd.xlane.f32.xlu0 %v1260
          %v1262 = vpop.xlane.xlu0 %1261
          %v1263 = vsel %vm1259, %v1244, 0.0
          %1264 = vadd.xlane.f32.xlu0 %v1263
          %v1265 = vpop.xlane.xlu0 %1264
          %v1266 = vsel %vm1259, %v1245, 0.0
          %1267 = vadd.xlane.f32.xlu0 %v1266
          %v1268 = vpop.xlane.xlu0 %1267
          %v1269 = vsel %vm1259, %v1246, 0.0
          %1270 = vadd.xlane.f32.xlu0 %v1269
          %v1271 = vpop.xlane.xlu0 %1270
          %v1272 = vsel %vm1259, %v1247, 0.0
          %1273 = vadd.xlane.f32.xlu0 %v1272
          %v1274 = vpop.xlane.xlu0 %1273
          %v1275 = vsel %vm1259, %v1248, 0.0
          %1276 = vadd.xlane.f32.xlu0 %v1275
          %v1277 = vpop.xlane.xlu0 %1276
          %v1278 = vsel %vm1259, %v1249, 0.0
          %1279 = vadd.xlane.f32.xlu0 %v1278
          %v1280 = vpop.xlane.xlu0 %1279
          %v1281 = vsel %vm1259, %v1250, 0.0
          %1282 = vadd.xlane.f32.xlu0 %v1281
          %v1283 = vpop.xlane.xlu0 %1282
          %v1284 = vsel %vm1259, %v1251, 0.0
          %1285 = vadd.xlane.f32.xlu0 %v1284
          %v1286 = vpop.xlane.xlu0 %1285
          %v1287 = vsel %vm1259, %v1252, 0.0
          %1288 = vadd.xlane.f32.xlu0 %v1287
          %v1289 = vpop.xlane.xlu0 %1288
          %v1290 = vsel %vm1259, %v1253, 0.0
          %1291 = vadd.xlane.f32.xlu0 %v1290
          %v1292 = vpop.xlane.xlu0 %1291
          %v1293 = vsel %vm1259, %v1254, 0.0
          %1294 = vadd.xlane.f32.xlu0 %v1293
          %v1295 = vpop.xlane.xlu0 %1294
          %v1296 = vsel %vm1259, %v1255, 0.0
          %1297 = vadd.xlane.f32.xlu0 %v1296
          %v1298 = vpop.xlane.xlu0 %1297
          %v1299 = vsel %vm1259, %v1256, 0.0
          %1300 = vadd.xlane.f32.xlu0 %v1299
          %v1301 = vpop.xlane.xlu0 %1300
          %v1302 = vsel %vm1259, %v1257, 0.0
          %1303 = vadd.xlane.f32.xlu0 %v1302
          %v1304 = vpop.xlane.xlu0 %1303
          %v1305 = vsel %vm1259, %v1258, 0.0
          %1306 = vadd.xlane.f32.xlu0 %v1305
          %v1307 = vpop.xlane.xlu0 %1306
          %v1308 = vmax.f32 %v1262, 1e-24
          %v1309 = vmax.f32 %v1265, 1e-24
          %v1310 = vmax.f32 %v1268, 1e-24
          %v1311 = vmax.f32 %v1271, 1e-24
          %v1312 = vmax.f32 %v1274, 1e-24
          %v1313 = vmax.f32 %v1277, 1e-24
          %v1314 = vmax.f32 %v1280, 1e-24
          %v1315 = vmax.f32 %v1283, 1e-24
          %v1316 = vmax.f32 %v1286, 1e-24
          %v1317 = vmax.f32 %v1289, 1e-24
          %v1318 = vmax.f32 %v1292, 1e-24
          %v1319 = vmax.f32 %v1295, 1e-24
          %v1320 = vmax.f32 %v1298, 1e-24
          %v1321 = vmax.f32 %v1301, 1e-24
          %v1322 = vmax.f32 %v1304, 1e-24
          %v1323 = vmax.f32 %v1307, 1e-24
          %v1324 = vrsqrt.pop %v1308
          %v1325 = vrsqrt.pop %v1309
          %v1326 = vrsqrt.pop %v1310
          %v1327 = vrsqrt.pop %v1311
          %v1328 = vrsqrt.pop %v1312
          %v1329 = vrsqrt.pop %v1313
          %v1330 = vrsqrt.pop %v1314
          %v1331 = vrsqrt.pop %v1315
          %v1332 = vrsqrt.pop %v1316
          %v1333 = vrsqrt.pop %v1317
          %v1334 = vrsqrt.pop %v1318
          %v1335 = vrsqrt.pop %v1319
          %v1336 = vrsqrt.pop %v1320
          %v1337 = vrsqrt.pop %v1321
          %v1338 = vrsqrt.pop %v1322
          %v1339 = vrsqrt.pop %v1323
          %v1340 = vmul.f32 %v1227, %v1324
          %v1341 = vmul.f32 %v1228, %v1325
          %v1342 = vmul.f32 %v1229, %v1326
          %v1343 = vmul.f32 %v1230, %v1327
          %v1344 = vmul.f32 %v1231, %v1328
          %v1345 = vmul.f32 %v1232, %v1329
          %v1346 = vmul.f32 %v1233, %v1330
          %v1347 = vmul.f32 %v1234, %v1331
          %v1348 = vmul.f32 %v1235, %v1332
          %v1349 = vmul.f32 %v1236, %v1333
          %v1350 = vmul.f32 %v1237, %v1334
          %v1351 = vmul.f32 %v1238, %v1335
          %v1352 = vmul.f32 %v1239, %v1336
          %v1353 = vmul.f32 %v1240, %v1337
          %v1354 = vmul.f32 %v1241, %v1338
          %v1355 = vmul.f32 %v1242, %v1339
          %v1356 = vmax.f32 %v1340, 0.0
          %v1357 = vmax.f32 %v1341, 0.0
          %v1358 = vmax.f32 %v1342, 0.0
          %v1359 = vmax.f32 %v1343, 0.0
          %v1360 = vmax.f32 %v1344, 0.0
          %v1361 = vmax.f32 %v1345, 0.0
          %v1362 = vmax.f32 %v1346, 0.0
          %v1363 = vmax.f32 %v1347, 0.0
          %v1364 = vmax.f32 %v1348, 0.0
          %v1365 = vmax.f32 %v1349, 0.0
          %v1366 = vmax.f32 %v1350, 0.0
          %v1367 = vmax.f32 %v1351, 0.0
          %v1368 = vmax.f32 %v1352, 0.0
          %v1369 = vmax.f32 %v1353, 0.0
          %v1370 = vmax.f32 %v1354, 0.0
          %v1371 = vmax.f32 %v1355, 0.0
          %1372 = vst.msk [vmem:[%s476] sm:$0xff] %vm1259, %v1356
          %1373 = vst.msk [vmem:[%s476 + $0x8] sm:$0xff] %vm1259, %v1357
          %1374 = vst.msk [vmem:[%s476 + $0x10] sm:$0xff] %vm1259, %v1358
          %1375 = vst.msk [vmem:[%s476 + $0x18] sm:$0xff] %vm1259, %v1359
          %1376 = vst.msk [vmem:[%s476 + $0x20] sm:$0xff] %vm1259, %v1360
          %1377 = vst.msk [vmem:[%s476 + $0x28] sm:$0xff] %vm1259, %v1361
          %1378 = vst.msk [vmem:[%s476 + $0x30] sm:$0xff] %vm1259, %v1362
          %1379 = vst.msk [vmem:[%s476 + $0x38] sm:$0xff] %vm1259, %v1363
          %1380 = vst.msk [vmem:[%s476 + $0x40] sm:$0xff] %vm1259, %v1364
          %1381 = vst.msk [vmem:[%s476 + $0x48] sm:$0xff] %vm1259, %v1365
          %1382 = vst.msk [vmem:[%s476 + $0x50] sm:$0xff] %vm1259, %v1366
          %1383 = vst.msk [vmem:[%s476 + $0x58] sm:$0xff] %vm1259, %v1367
          %1384 = vst.msk [vmem:[%s476 + $0x60] sm:$0xff] %vm1259, %v1368
          %1385 = vst.msk [vmem:[%s476 + $0x68] sm:$0xff] %vm1259, %v1369
          %1386 = vst.msk [vmem:[%s476 + $0x70] sm:$0xff] %vm1259, %v1370
          %1387 = vst.msk [vmem:[%s476 + $0x78] sm:$0xff] %vm1259, %v1371
          %v1388 = vld [vmem:[%s6] sm:$0xff]
          %v1389 = vld [vmem:[%s6 + $0x8] sm:$0xff]
          %v1391 = vsel %vm1259, %v1356, 0
          %v1394 = vsel %vm1259, %v1357, 0
          %v1397 = vsel %vm1259, %v1358, 0
          %v1400 = vsel %vm1259, %v1359, 0
          %v1403 = vsel %vm1259, %v1360, 0
          %v1406 = vsel %vm1259, %v1361, 0
          %v1409 = vsel %vm1259, %v1362, 0
          %v1412 = vsel %vm1259, %v1363, 0
          %v1415 = vsel %vm1259, %v1364, 0
          %v1418 = vsel %vm1259, %v1365, 0
          %v1421 = vsel %vm1259, %v1366, 0
          %v1424 = vsel %vm1259, %v1367, 0
          %v1427 = vsel %vm1259, %v1368, 0
          %v1430 = vsel %vm1259, %v1369, 0
          %v1433 = vsel %vm1259, %v1370, 0
          %v1436 = vsel %vm1259, %v1371, 0
          %1438 = vmatprep.subr.mxu0 0.0
          %1439 = vmatpush1.msra.mxu0 %v1388
          %1440 = vmatprep.subr.mxu0 0.0
          %1441 = vmatpush1.msra.mxu0 %v1389
          %1442 = vmatprep.subr.mxu0 0.0
          %1443 = vmatpush1.msra.mxu0 0.0
          %1444 = vmatprep.subr.mxu0 0.0
          %1445 = vmatpush1.msra.mxu0 0.0
          %1446 = vmatprep.subr.mxu0 0.0
          %1447 = vmatpush1.msra.mxu0 0.0
          %1448 = vmatprep.subr.mxu0 0.0
          %1449 = vmatpush1.msra.mxu0 0.0
          %1450 = vmatprep.subr.mxu0 0.0
          %1451 = vmatpush1.msra.mxu0 0.0
          %1452 = vmatprep.subr.mxu0 0.0
          %1453 = vmatpush1.msra.mxu0 0.0
          %1454 = vmatprep.subr.mxu0 0.0
          %1455 = vmatpush1.msra.mxu0 0.0
          %1456 = vmatprep.subr.mxu0 0.0
          %1457 = vmatpush1.msra.mxu0 0.0
          %1458 = vmatprep.subr.mxu0 0.0
          %1459 = vmatpush1.msra.mxu0 0.0
          %1460 = vmatprep.subr.mxu0 0.0
          %1461 = vmatpush1.msra.mxu0 0.0
          %1462 = vmatprep.subr.mxu0 0.0
          %1463 = vmatpush1.msra.mxu0 0.0
          %1464 = vmatprep.subr.mxu0 0.0
          %1465 = vmatpush1.msra.mxu0 0.0
          %1466 = vmatprep.subr.mxu0 0.0
          %1467 = vmatpush1.msra.mxu0 0.0
          %1468 = vmatprep.subr.mxu0 0.0
          %1469 = vmatpush1.msra.mxu0 0.0
          %1470 = vmatprep.subr.mxu0 0.0
          %1471 = vmatpush1.msra.mxu0 0.0
          %1472 = vmatprep.subr.mxu0 0.0
          %1473 = vmatpush1.msra.mxu0 0.0
          %1474 = vmatprep.subr.mxu0 0.0
          %1475 = vmatpush1.msra.mxu0 0.0
          %1476 = vmatprep.subr.mxu0 0.0
          %1477 = vmatpush1.msra.mxu0 0.0
          %1478 = vmatprep.subr.mxu0 0.0
          %1479 = vmatpush1.msra.mxu0 0.0
          %1480 = vmatprep.subr.mxu0 0.0
          %1481 = vmatpush1.msra.mxu0 0.0
          %1482 = vmatprep.subr.mxu0 0.0
          %1483 = vmatpush1.msra.mxu0 0.0
          %1484 = vmatprep.subr.mxu0 0.0
          %1485 = vmatpush1.msra.mxu0 0.0
          %1486 = vmatprep.subr.mxu0 0.0
          %1487 = vmatpush1.msra.mxu0 0.0
          %1488 = vmatprep.subr.mxu0 0.0
          %1489 = vmatpush1.msra.mxu0 0.0
          %1490 = vmatprep.subr.mxu0 0.0
          %1491 = vmatpush1.msra.mxu0 0.0
          %1492 = vmatprep.subr.mxu0 0.0
          %1493 = vmatpush1.msra.mxu0 0.0
          %1494 = vmatprep.subr.mxu0 0.0
          %1495 = vmatpush1.msra.mxu0 0.0
          %1496 = vmatprep.subr.mxu0 0.0
          %1497 = vmatpush1.msra.mxu0 0.0
          %1498 = vmatprep.subr.mxu0 0.0
          %1499 = vmatpush1.msra.mxu0 0.0
          %1500 = vmatprep.subr.mxu0 0.0
          %1501 = vmatpush1.msra.mxu0 0.0
          %1502 = vmatprep.mubr.f32.mxu0 0.0
          %1503 = vmatmul.mubr.f32.gmra.mrb[0].mxu0 %v1391
          %v1504 = vpop.f32.mrb[0].mxu0
          %v1505 = vadd.f32 0.0, %v1504
          %v1506 = vpop.f32.mrb[0].mxu0
          %1507 = vmatprep.mubr.f32.mxu0 0.0
          %1508 = vmatmul.mubr.f32.gmra.mrb[0].mxu0 %v1394
          %v1509 = vpop.f32.mrb[0].mxu0
          %v1510 = vadd.f32 0.0, %v1509
          %v1511 = vpop.f32.mrb[0].mxu0
          %1512 = vmatprep.mubr.f32.mxu0 0.0
          %1513 = vmatmul.mubr.f32.gmra.mrb[0].mxu0 %v1397
          %v1514 = vpop.f32.mrb[0].mxu0
          %v1515 = vadd.f32 0.0, %v1514
          %v1516 = vpop.f32.mrb[0].mxu0
          %1517 = vmatprep.mubr.f32.mxu0 0.0
          %1518 = vmatmul.mubr.f32.gmra.mrb[0].mxu0 %v1400
          %v1519 = vpop.f32.mrb[0].mxu0
          %v1520 = vadd.f32 0.0, %v1519
          %v1521 = vpop.f32.mrb[0].mxu0
          %1522 = vmatprep.mubr.f32.mxu0 0.0
          %1523 = vmatmul.mubr.f32.gmra.mrb[0].mxu0 %v1403
          %v1524 = vpop.f32.mrb[0].mxu0
          %v1525 = vadd.f32 0.0, %v1524
          %v1526 = vpop.f32.mrb[0].mxu0
          %1527 = vmatprep.mubr.f32.mxu0 0.0
          %1528 = vmatmul.mubr.f32.gmra.mrb[0].mxu0 %v1406
          %v1529 = vpop.f32.mrb[0].mxu0
          %v1530 = vadd.f32 0.0, %v1529
          %v1531 = vpop.f32.mrb[0].mxu0
          %1532 = vmatprep.mubr.f32.mxu0 0.0
          %1533 = vmatmul.mubr.f32.gmra.mrb[0].mxu0 %v1409
          %v1534 = vpop.f32.mrb[0].mxu0
          %v1535 = vadd.f32 0.0, %v1534
          %v1536 = vpop.f32.mrb[0].mxu0
          %1537 = vmatprep.mubr.f32.mxu0 0.0
          %1538 = vmatmul.mubr.f32.gmra.mrb[0].mxu0 %v1412
          %v1539 = vpop.f32.mrb[0].mxu0
          %v1540 = vadd.f32 0.0, %v1539
          %v1541 = vpop.f32.mrb[0].mxu0
          %1542 = vmatprep.mubr.f32.mxu0 0.0
          %1543 = vmatmul.mubr.f32.gmra.mrb[0].mxu0 %v1415
          %v1544 = vpop.f32.mrb[0].mxu0
          %v1545 = vadd.f32 0.0, %v1544
          %v1546 = vpop.f32.mrb[0].mxu0
          %1547 = vmatprep.mubr.f32.mxu0 0.0
          %1548 = vmatmul.mubr.f32.gmra.mrb[0].mxu0 %v1418
          %v1549 = vpop.f32.mrb[0].mxu0
          %v1550 = vadd.f32 0.0, %v1549
          %v1551 = vpop.f32.mrb[0].mxu0
          %1552 = vmatprep.mubr.f32.mxu0 0.0
          %1553 = vmatmul.mubr.f32.gmra.mrb[0].mxu0 %v1421
          %v1554 = vpop.f32.mrb[0].mxu0
          %v1555 = vadd.f32 0.0, %v1554
          %v1556 = vpop.f32.mrb[0].mxu0
          %1557 = vmatprep.mubr.f32.mxu0 0.0
          %1558 = vmatmul.mubr.f32.gmra.mrb[0].mxu0 %v1424
          %v1559 = vpop.f32.mrb[0].mxu0
          %v1560 = vadd.f32 0.0, %v1559
          %v1561 = vpop.f32.mrb[0].mxu0
          %1562 = vmatprep.mubr.f32.mxu0 0.0
          %1563 = vmatmul.mubr.f32.gmra.mrb[0].mxu0 %v1427
          %v1564 = vpop.f32.mrb[0].mxu0
          %v1565 = vadd.f32 0.0, %v1564
          %v1566 = vpop.f32.mrb[0].mxu0
          %1567 = vmatprep.mubr.f32.mxu0 0.0
          %1568 = vmatmul.mubr.f32.gmra.mrb[0].mxu0 %v1430
          %v1569 = vpop.f32.mrb[0].mxu0
          %v1570 = vadd.f32 0.0, %v1569
          %v1571 = vpop.f32.mrb[0].mxu0
          %1572 = vmatprep.mubr.f32.mxu0 0.0
          %1573 = vmatmul.mubr.f32.gmra.mrb[0].mxu0 %v1433
          %v1574 = vpop.f32.mrb[0].mxu0
          %v1575 = vadd.f32 0.0, %v1574
          %v1576 = vpop.f32.mrb[0].mxu0
          %1577 = vmatprep.mubr.f32.mxu0 0.0
          %1578 = vmatmul.mubr.f32.gmra.mrb[0].mxu0 %v1436
          %v1579 = vpop.f32.mrb[0].mxu0
          %v1580 = vadd.f32 0.0, %v1579
          %v1581 = vpop.f32.mrb[0].mxu0
          %1582 = vdwg.mxu0
          %v1583 = vpack.c.bf16 %v1510, %v1505
          %v1584 = vpack.c.bf16 %v1520, %v1515
          %v1585 = vpack.c.bf16 %v1530, %v1525
          %v1586 = vpack.c.bf16 %v1540, %v1535
          %v1587 = vpack.c.bf16 %v1550, %v1545
          %v1588 = vpack.c.bf16 %v1560, %v1555
          %v1589 = vpack.c.bf16 %v1570, %v1565
          %v1590 = vpack.c.bf16 %v1580, %v1575
          %v1599 = vunpack.c.l.b16 %v1583
          %v1600 = vunpack.c.h.b16 %v1583
          %v1601 = vunpack.c.l.b16 %v1584
          %v1602 = vunpack.c.h.b16 %v1584
          %v1603 = vunpack.c.l.b16 %v1585
          %v1604 = vunpack.c.h.b16 %v1585
          %v1605 = vunpack.c.l.b16 %v1586
          %v1606 = vunpack.c.h.b16 %v1586
          %v1607 = vunpack.c.l.b16 %v1587
          %v1608 = vunpack.c.h.b16 %v1587
          %v1609 = vunpack.c.l.b16 %v1588
          %v1610 = vunpack.c.h.b16 %v1588
          %v1611 = vunpack.c.l.b16 %v1589
          %v1612 = vunpack.c.h.b16 %v1589
          %v1613 = vunpack.c.l.b16 %v1590
          %v1614 = vunpack.c.h.b16 %v1590
          %v1615 = vpack.c.b16 %v1599, %v1599
          %v1616 = vpack.c.b16 %v1600, %v1600
          %v1617 = vpack.c.b16 %v1601, %v1601
          %v1618 = vpack.c.b16 %v1602, %v1602
          %v1619 = vpack.c.b16 %v1603, %v1603
          %v1620 = vpack.c.b16 %v1604, %v1604
          %v1621 = vpack.c.b16 %v1605, %v1605
          %v1622 = vpack.c.b16 %v1606, %v1606
          %v1623 = vpack.c.b16 %v1607, %v1607
          %v1624 = vpack.c.b16 %v1608, %v1608
          %v1625 = vpack.c.b16 %v1609, %v1609
          %v1626 = vpack.c.b16 %v1610, %v1610
          %v1627 = vpack.c.b16 %v1611, %v1611
          %v1628 = vpack.c.b16 %v1612, %v1612
          %v1629 = vpack.c.b16 %v1613, %v1613
          %v1630 = vpack.c.b16 %v1614, %v1614
          %vm1647 = vcmask 27648
          %1648 = vst.msk [vmem:[%s482] sm:$0xf] %vm1647, %v1615
          %1649 = vst.msk [vmem:[%s482 + $0x4] sm:$0xf] %vm1647, %v1616
          %1650 = vst.msk [vmem:[%s482 + $0x8] sm:$0xf] %vm1647, %v1617
          %1651 = vst.msk [vmem:[%s482 + $0xc] sm:$0xf] %vm1647, %v1618
          %1652 = vst.msk [vmem:[%s482 + $0x10] sm:$0xf] %vm1647, %v1619
          %1653 = vst.msk [vmem:[%s482 + $0x14] sm:$0xf] %vm1647, %v1620
          %1654 = vst.msk [vmem:[%s482 + $0x18] sm:$0xf] %vm1647, %v1621
          %1655 = vst.msk [vmem:[%s482 + $0x1c] sm:$0xf] %vm1647, %v1622
          %1656 = vst.msk [vmem:[%s482 + $0x20] sm:$0xf] %vm1647, %v1623
          %1657 = vst.msk [vmem:[%s482 + $0x24] sm:$0xf] %vm1647, %v1624
          %1658 = vst.msk [vmem:[%s482 + $0x28] sm:$0xf] %vm1647, %v1625
          %1659 = vst.msk [vmem:[%s482 + $0x2c] sm:$0xf] %vm1647, %v1626
          %1660 = vst.msk [vmem:[%s482 + $0x30] sm:$0xf] %vm1647, %v1627
          %1661 = vst.msk [vmem:[%s482 + $0x34] sm:$0xf] %vm1647, %v1628
          %1662 = vst.msk [vmem:[%s482 + $0x38] sm:$0xf] %vm1647, %v1629
          %1663 = vst.msk [vmem:[%s482 + $0x3c] sm:$0xf] %vm1647, %v1630
        $region97: #{net_tpsgx_forward.2} parent=84 // pred_fallthru
          _
        %s1664 = smul.u32 16, %s24
        %p1665 = scmp.lt.s32.totalorder %s1664, 31
        %s1666 = scalar_select %p1665, %s1664, 31
        %s1667 = smul.addr %s1666, 8
        %s1668 = scalar_lea.vmem %s7, %s1667
        %s1669 = smul.u32 16, %s24
        %p1670 = scmp.lt.s32.totalorder %s1669, 31
        %s1671 = scalar_select %p1670, %s1669, 31
        %s1672 = smul.addr %s1671, 4
        %s1673 = scalar_lea.vmem %s8, %s1672
        // Predicated region
        $region98: #{net_tpsgx_forward.2} parent=84 // pred_check
          %p1674 = pneg %p214
        $region99: #{net_tpsgx_forward.2} parent=84 // pred_check_branch
          %1676 = sbr.rel (%p1674) target = $region101
        $region100: #{net_tpsgx_forward.2} parent=84 // pred_region
          %s1677 = smul.u32 16, %s24
        $region101: #{net_tpsgx_forward.2} parent=84 // pred_fallthru
          _
        // Predicated region
        $region102: #{net_tpsgx_forward.2} parent=84 // pred_check
          %p1678 = pneg %p240
        $region103: #{net_tpsgx_forward.2} parent=84 // pred_check_branch
          %1680 = sbr.rel (%p1678) target = $region105
        $region104: #{net_tpsgx_forward.2} parent=84 // pred_region
          %s1681 = smul.u32 16, %s24
        $region105: #{net_tpsgx_forward.2} parent=84 // pred_fallthru
          _
      $region85: #{net_tpsgx_forward.2} parent=5 // pred_fallthru
        _
      %p1682 = scmp.le.s32.totalorder 2, %s15
      // Predicated region
      $region106: #{net_tpsgx_forward.2} parent=5 // pred_check
        %p1683 = pneg %p1682
      $region107: #{net_tpsgx_forward.2} parent=5 // pred_check_branch
        %1685 = sbr.rel (%p1683) target = $region109
      $region108: #{net_tpsgx_forward.2} parent=5 // pred_region
        %s1686 = ssub.s32 %s15, 2
        // Predicated region
        $region110: #{net_tpsgx_forward.2} parent=108 // pred_check
          %p1687 = pneg %p220
        $region111: #{net_tpsgx_forward.2} parent=108 // pred_check_branch
          %1689 = sbr.rel (%p1687) target = $region113
        $region112: #{net_tpsgx_forward.2} parent=108 // pred_region
          %s1690 = smul.u32 16, %s26
          %p1691 = scmp.lt.s32.totalorder %s1690, 31
          %s1692 = scalar_select %p1691, %s1690, 31
          %s1693 = smul.addr %s1692, 8
          %s1694 = scalar_lea.vmem %s7, %s1693
        $region113: #{net_tpsgx_forward.2} parent=108 // pred_fallthru
          _
        // Predicated region
        $region114: #{net_tpsgx_forward.2} parent=108 // pred_check
          %p1695 = pneg %p246
        $region115: #{net_tpsgx_forward.2} parent=108 // pred_check_branch
          %1697 = sbr.rel (%p1695) target = $region117
        $region116: #{net_tpsgx_forward.2} parent=108 // pred_region
          %s1698 = smul.u32 16, %s26
          %p1699 = scmp.lt.s32.totalorder %s1698, 31
          %s1700 = scalar_select %p1699, %s1698, 31
          %s1701 = smul.addr %s1700, 4
          %s1702 = scalar_lea.vmem %s8, %s1701
        $region117: #{net_tpsgx_forward.2} parent=108 // pred_fallthru
          _
      $region109: #{net_tpsgx_forward.2} parent=5 // pred_fallthru
        _
    $region6: #{net_tpsgx_forward.2} parent=1 // loop_footer
      %s19 = sadd.s32 1, %s15
    $region7: #{net_tpsgx_forward.2} parent=1 // loop_footer_branch
      %14 = sbr.rel target = $region3
    $region8: #{net_tpsgx_forward.2} parent=1 // loop_exit
      _

</llo_original>
